<compile_context>
chip_gen: v6e
topology: v6e:2x2x1
jax: 0.10.0
libtpu: 0.0.40
codegen_flags: <defaults>
</compile_context>

<pallas_src>
import functools
import numpy as np

import jax
import jax.numpy as jnp
from jax.experimental import pallas as pl
from jax.experimental.pallas import tpu as pltpu


_BN_EPS = 1e-5
_PAD_TOP = 8      # zero rows kept above the image in the conv scratch (sublane aligned)


# ------------------------- host-side weight packing ------------------------- #

def _interp_matrix(n_in, n_out):
    """1-D bilinear interpolation matrix, align_corners=True (matches nn.Upsample)."""
    A = np.zeros((n_out, n_in), np.float32)
    for p in range(n_out):
        src = p * (n_in - 1) / (n_out - 1) if n_out > 1 else 0.0
        i0 = min(int(np.floor(src)), n_in - 1)
        i1 = min(i0 + 1, n_in - 1)
        f = src - i0
        A[p, i0] += 1.0 - f
        A[p, i1] += f
    return A


def _conv_toeplitz(w, W):
    """w: (3,3,Cin,Cout) -> T: (3, W*Cin, W*Cout).

    y[i, j*Cout+co] = sum_ky  slab_ky[i, :] @ T[ky, :, j*Cout+co]
    where slab_ky[i, jp*Cin+ci] = x[i+ky-1, jp, ci] (zero outside the image).
    Horizontal taps / padding are baked into T (out-of-range taps are dropped).
    """
    _, _, Cin, Cout = w.shape
    T = np.zeros((3, W * Cin, W * Cout), np.float32)
    for ky in range(3):
        for kx in range(3):
            for j in range(W):
                jp = j + kx - 1
                if 0 <= jp < W:
                    T[ky, jp * Cin:(jp + 1) * Cin, j * Cout:(j + 1) * Cout] = w[ky, kx]
    return T


# --------------------------- parameters (synthetic) -------------------------- #

def make_conv_bn(key, cin, cout):
    """Conv2d(3x3, pad=1) + BatchNorm2d params, with BN (eval mode) folded in."""
    k = jax.random.split(key, 6)
    w = jax.random.normal(k[0], (3, 3, cin, cout), jnp.float32) * 0.1
    b = jax.random.normal(k[1], (cout,), jnp.float32) * 0.1
    gamma = 1.0 + 0.1 * jax.random.normal(k[2], (cout,), jnp.float32)
    beta = 0.1 * jax.random.normal(k[3], (cout,), jnp.float32)
    mean = 0.1 * jax.random.normal(k[4], (cout,), jnp.float32)
    var = 1.0 + 0.1 * jnp.abs(jax.random.normal(k[5], (cout,), jnp.float32))
    scale = gamma / jnp.sqrt(var + _BN_EPS)
    return w * scale, (b - mean) * scale + beta


def make_multiconv(key, cin, cout, cmid=None, num_convs=2):
    if cmid is None:
        cmid = cout
    chans = [cin] + [cmid] * (num_convs - 1) + [cout]
    keys = jax.random.split(key, len(chans) - 1)
    return [make_conv_bn(k, ci, co) for k, ci, co in zip(keys, chans[:-1], chans[1:])]


def make_unet_params(key, n_classes, num_down, num_up, in_channels=3,
                     base_channels=64, num_convs=2, bilinear=True):
    """Mirrors UNet.__init__ channel arithmetic (batchnorm=True, bilinear)."""
    assert num_down >= num_up
    keys = iter(jax.random.split(key, num_down + num_up + 2))
    params = {}
    params['inc'] = make_multiconv(next(keys), in_channels, base_channels,
                                   num_convs=num_convs)
    down = []
    channels = base_channels
    out_channels = 2 * channels
    for _ in range(num_down - 1):
        down.append(make_multiconv(next(keys), channels, out_channels,
                                   num_convs=num_convs))
        channels = out_channels
        out_channels *= 2
    factor = 2 if bilinear else 1
    down.append(make_multiconv(next(keys), channels, out_channels // factor,
                               num_convs=num_convs))
    params['down'] = down

    up = []
    channels *= 2
    out_channels = channels // 2
    for _ in range(num_up - 1):
        up.append(make_multiconv(next(keys), channels, out_channels // factor,
                                 channels // 2, num_convs))
        channels = out_channels
        out_channels = channels // 2
    up.append(make_multiconv(next(keys), channels, out_channels,
                             channels // 2, num_convs))
    params['up'] = up

    ko = jax.random.split(next(keys), 2)
    params['outc'] = (jax.random.normal(ko[0], (out_channels, n_classes), jnp.float32) * 0.1,
                      jax.random.normal(ko[1], (n_classes,), jnp.float32) * 0.1)
    return params


# --------------------- fuse the whole UNet into one plan --------------------- #

def build_fused_unet(params, H0, W0, C0):
    """Packs UNet params into lane-dense matmul operands + a static op plan."""
    operands, ops = [], []

    def add(arr):
        operands.append(jnp.asarray(np.asarray(arr), jnp.float32))
        return len(operands) - 1

    def emit_conv(cw, cb, H, W, C):
        cw = np.asarray(cw)
        cb = np.asarray(cb)
        Cin, Cout = cw.shape[2], cw.shape[3]
        assert Cin == C
        ops.append(('conv', dict(H=H, W=W, Cin=Cin, Cout=Cout,
                                 t=add(_conv_toeplitz(cw, W)),
                                 b=add(np.tile(cb, W)[None, :]))))
        return Cout

    def emit_pool(H, W, C):
        H2, W2 = H // 2, W // 2
        seh = np.zeros((H2, H), np.float32)
        soh = np.zeros((H2, H), np.float32)
        seh[np.arange(H2), 2 * np.arange(H2)] = 1.0
        soh[np.arange(H2), 2 * np.arange(H2) + 1] = 1.0
        sew = np.zeros((W * C, W2 * C), np.float32)
        sow = np.zeros((W * C, W2 * C), np.float32)
        eye = np.eye(C, dtype=np.float32)
        for j in range(W2):
            sew[(2 * j) * C:(2 * j + 1) * C, j * C:(j + 1) * C] = eye
            sow[(2 * j + 1) * C:(2 * j + 2) * C, j * C:(j + 1) * C] = eye
        ops.append(('pool', dict(seh=add(seh), soh=add(soh),
                                 sew=add(sew), sow=add(sow))))
        return H2, W2

    H, W, C = H0, W0, C0
    for cw, cb in params['inc']:
        C = emit_conv(cw, cb, H, W, C)

    saved_meta = []
    for mc in params['down']:
        H, W = emit_pool(H, W, C)
        for cw, cb in mc:
            C = emit_conv(cw, cb, H, W, C)
        ops.append(('save', {}))
        saved_meta.append((H, W, C))

    for i, mc in enumerate(params['up']):
        skip = len(saved_meta) - (i + 2)
        Hs, Ws, Cs = saved_meta[skip]
        H2, W2 = 2 * H, 2 * W
        # TODO(synk): F.pad for diffX/diffY != 0 (odd spatial sizes) is not implemented.
        assert (H2, W2) == (Hs, Ws), "skip / upsample spatial mismatch"
        Ah = _interp_matrix(H, H2)                     # (H2, H)  left interpolation
        Bm = _interp_matrix(W, W2)                     # (W2, W)
        Bw = np.zeros((W * C, W2 * C), np.float32)     # right interpolation (channel packed)
        eye = np.eye(C, dtype=np.float32)
        for j in range(W2):
            for wi in range(W):
                Bw[wi * C:(wi + 1) * C, j * C:(j + 1) * C] = Bm[j, wi] * eye
        ops.append(('up', dict(ah=add(Ah), bw=add(Bw))))
        H, W = H2, W2

        cw0, cb0 = mc[0]
        cw0 = np.asarray(cw0)
        cb0 = np.asarray(cb0)
        Cout0 = cw0.shape[3]
        assert cw0.shape[2] == Cs + C
        ops.append(('catconv', dict(H=H, W=W, C2=Cs, C1=C, Cout=Cout0, skip=skip,
                                    t2=add(_conv_toeplitz(cw0[:, :, :Cs, :], W)),
                                    t1=add(_conv_toeplitz(cw0[:, :, Cs:, :], W)),
                                    b=add(np.tile(cb0, W)[None, :]))))
        C = Cout0
        for cw, cb in mc[1:]:
            C = emit_conv(cw, cb, H, W, C)

    wo, bo = params['outc']
    wo = np.asarray(wo)
    bo = np.asarray(bo)
    assert wo.shape[0] == C
    nc = wo.shape[1]
    Wp = np.zeros((W * C, W * nc), np.float32)         # block-diagonal 1x1 conv
    for j in range(W):
        Wp[j * C:(j + 1) * C, j * nc:(j + 1) * nc] = wo
    ops.append(('outc', dict(wt=add(Wp), b=add(np.tile(bo, W)[None, :]))))

    max_h, max_cols = 0, 0
    for kind, p in ops:
        if kind == 'conv':
            max_h = max(max_h, p['H'])
            max_cols = max(max_cols, p['W'] * p['Cin'])
        elif kind == 'catconv':
            max_h = max(max_h, p['H'])
            max_cols = max(max_cols, p['W'] * p['C2'], p['W'] * p['C1'])
    pad_shape = (_PAD_TOP + max_h + 1, max_cols)
    return operands, ops, pad_shape, (H, W, nc)


# ------------------------------ the fused kernel ----------------------------- #

def _make_unet_kernel(ops, n_operands):
    def kernel(*refs):
        x_ref = refs[0]
        w = refs[1:1 + n_operands]
        out_ref = refs[1 + n_operands]
        pad = refs[2 + n_operands]                      # VMEM scratch for vertical padding

        def conv_terms(xv, H, W, Cin, t_ref, acc):
            """3x3 conv of the (H, W*Cin) slab `xv` as 3 Toeplitz matmuls."""
            pad[...] = jnp.zeros_like(pad)
            pad[_PAD_TOP:_PAD_TOP + H, 0:W * Cin] = xv
            for ky in range(3):
                r0 = _PAD_TOP - 1 + ky
                slab = pad[r0:r0 + H, 0:W * Cin]
                term = jnp.dot(slab, t_ref[ky], preferred_element_type=jnp.float32)
                acc = term if acc is None else acc + term
            return acc

        x = x_ref[0]                                    # (H0, W0*C0) lane-dense slab
        saved = []
        for kind, p in ops:
            if kind == 'conv':                          # conv3x3 + folded BN + ReLU
                acc = conv_terms(x, p['H'], p['W'], p['Cin'], w[p['t']], None)
                x = jnp.maximum(acc + w[p['b']][...], 0.0)
            elif kind == 'pool':                        # 2x2 max pool via 0/1 selection matmuls
                rp = jnp.maximum(
                    jnp.dot(w[p['seh']][...], x, preferred_element_type=jnp.float32),
                    jnp.dot(w[p['soh']][...], x, preferred_element_type=jnp.float32))
                x = jnp.maximum(
                    jnp.dot(rp, w[p['sew']][...], preferred_element_type=jnp.float32),
                    jnp.dot(rp, w[p['sow']][...], preferred_element_type=jnp.float32))
            elif kind == 'save':                        # skip connection kept in VMEM/vregs
                saved.append(x)
            elif kind == 'up':                          # bilinear x2 (align_corners) as 2 matmuls
                xh = jnp.dot(w[p['ah']][...], x, preferred_element_type=jnp.float32)
                x = jnp.dot(xh, w[p['bw']][...], preferred_element_type=jnp.float32)
            elif kind == 'catconv':                     # conv3x3 on cat([skip, x]) without concat
                acc = conv_terms(saved[p['skip']], p['H'], p['W'], p['C2'], w[p['t2']], None)
                acc = conv_terms(x, p['H'], p['W'], p['C1'], w[p['t1']], acc)
                x = jnp.maximum(acc + w[p['b']][...], 0.0)
            elif kind == 'outc':                        # 1x1 conv (block-diagonal matmul)
                y = jnp.dot(x, w[p['wt']][...], preferred_element_type=jnp.float32)
                out_ref[0] = (y + w[p['b']][...]).astype(out_ref.dtype)
            else:
                raise ValueError(kind)

    return kernel


def _const_index_map(ndim):
    def imap(n):
        return (0,) * ndim
    return imap


def unet_forward_fused(x_nchw, operands, *, ops, pad_shape, out_meta):
    N, C0, H0, W0 = x_nchw.shape
    Ho, Wo, nc = out_meta
    # NCHW -> lane-dense (N, H, W*C) slabs (channel minor).
    xp = jnp.transpose(x_nchw, (0, 2, 3, 1)).reshape(N, H0, W0 * C0).astype(jnp.float32)

    in_specs = [pl.BlockSpec((1, H0, W0 * C0), lambda n: (n, 0, 0))]
    for arr in operands:
        in_specs.append(pl.BlockSpec(tuple(arr.shape), _const_index_map(arr.ndim)))

    out = pl.pallas_call(
        _make_unet_kernel(ops, len(operands)),
        out_shape=jax.ShapeDtypeStruct((N, Ho, Wo * nc), jnp.float32),
        grid_spec=pltpu.PrefetchScalarGridSpec(
            num_scalar_prefetch=0,
            grid=(N,),
            in_specs=in_specs,
            out_specs=pl.BlockSpec((1, Ho, Wo * nc), lambda n: (n, 0, 0)),
            scratch_shapes=[pltpu.VMEM(pad_shape, jnp.float32)]),
        compiler_params=pltpu.CompilerParams(
            dimension_semantics=("parallel",)),            # batch is independent (v7x megacore)
    )(xp, *operands)

    return jnp.transpose(out.reshape(N, Ho, Wo, nc), (0, 3, 1, 2))   # -> NCHW


# ----------------------------------- main ------------------------------------ #

if __name__ == "__main__":
    key = jax.random.PRNGKey(0)
    kx, kp = jax.random.split(key)

    N, CIN, H, W = 2, 3, 16, 16
    N_CLASSES, NUM_DOWN, NUM_UP, BASE_CH = 3, 2, 1, 8

    x = jax.random.normal(kx, (N, CIN, H, W), jnp.float32)
    params = make_unet_params(kp, n_classes=N_CLASSES, num_down=NUM_DOWN,
                              num_up=NUM_UP, in_channels=CIN,
                              base_channels=BASE_CH, num_convs=2, bilinear=True)

    operands, ops, pad_shape, out_meta = build_fused_unet(params, H, W, CIN)

    fwd = jax.jit(functools.partial(unet_forward_fused, ops=ops,
                                    pad_shape=pad_shape, out_meta=out_meta))
    logits = fwd(x, operands)
    jax.block_until_ready(logits)

    # With num_down=2 / num_up=1 the output spatial resolution is H/2 x W/2.
    assert logits.shape == (N, N_CLASSES, H // 2, W // 2), logits.shape
    assert logits.dtype == jnp.float32
    print("KERNEL_OK")
</pallas_src>

<mosaic_0001>
module attributes {stable_mosaic.version = 11 : i64} {
  func.func @kernel(%arg0: i32, %arg1: memref<1x16x48xf32, #tpu.memory_space<vmem>>, %arg2: memref<3x48x128xf32, #tpu.memory_space<vmem>>, %arg3: memref<1x128xf32, #tpu.memory_space<vmem>>, %arg4: memref<3x128x128xf32, #tpu.memory_space<vmem>>, %arg5: memref<1x128xf32, #tpu.memory_space<vmem>>, %arg6: memref<8x16xf32, #tpu.memory_space<vmem>>, %arg7: memref<8x16xf32, #tpu.memory_space<vmem>>, %arg8: memref<128x64xf32, #tpu.memory_space<vmem>>, %arg9: memref<128x64xf32, #tpu.memory_space<vmem>>, %arg10: memref<3x64x128xf32, #tpu.memory_space<vmem>>, %arg11: memref<1x128xf32, #tpu.memory_space<vmem>>, %arg12: memref<3x128x128xf32, #tpu.memory_space<vmem>>, %arg13: memref<1x128xf32, #tpu.memory_space<vmem>>, %arg14: memref<4x8xf32, #tpu.memory_space<vmem>>, %arg15: memref<4x8xf32, #tpu.memory_space<vmem>>, %arg16: memref<128x64xf32, #tpu.memory_space<vmem>>, %arg17: memref<128x64xf32, #tpu.memory_space<vmem>>, %arg18: memref<3x64x64xf32, #tpu.memory_space<vmem>>, %arg19: memref<1x64xf32, #tpu.memory_space<vmem>>, %arg20: memref<3x64x64xf32, #tpu.memory_space<vmem>>, %arg21: memref<1x64xf32, #tpu.memory_space<vmem>>, %arg22: memref<8x4xf32, #tpu.memory_space<vmem>>, %arg23: memref<64x128xf32, #tpu.memory_space<vmem>>, %arg24: memref<3x128x128xf32, #tpu.memory_space<vmem>>, %arg25: memref<3x128x128xf32, #tpu.memory_space<vmem>>, %arg26: memref<1x128xf32, #tpu.memory_space<vmem>>, %arg27: memref<3x128x128xf32, #tpu.memory_space<vmem>>, %arg28: memref<1x128xf32, #tpu.memory_space<vmem>>, %arg29: memref<128x24xf32, #tpu.memory_space<vmem>>, %arg30: memref<1x24xf32, #tpu.memory_space<vmem>>, %arg31: memref<1x8x24xf32, #tpu.memory_space<vmem>>, %arg32: memref<25x128xf32, #tpu.memory_space<vmem>>) attributes {dimension_semantics = [#tpu.dimension_semantics<parallel>], iteration_bounds = array<i64: 2>, scalar_prefetch = 0 : i64, scratch_operands = 1 : i64, tpu.core_type = #tpu.core_type<tc>, window_params = [{transform_indices = @transform_0, window_bounds = array<i64: 1, 16, 48>}, {pipeline_mode = #tpu.pipeline_mode<synchronous>, transform_indices = @transform_1, window_bounds = array<i64: 3, 48, 128>}, {pipeline_mode = #tpu.pipeline_mode<synchronous>, transform_indices = @transform_2, window_bounds = array<i64: 1, 128>}, {pipeline_mode = #tpu.pipeline_mode<synchronous>, transform_indices = @transform_3, window_bounds = array<i64: 3, 128, 128>}, {pipeline_mode = #tpu.pipeline_mode<synchronous>, transform_indices = @transform_4, window_bounds = array<i64: 1, 128>}, {pipeline_mode = #tpu.pipeline_mode<synchronous>, transform_indices = @transform_5, window_bounds = array<i64: 8, 16>}, {pipeline_mode = #tpu.pipeline_mode<synchronous>, transform_indices = @transform_6, window_bounds = array<i64: 8, 16>}, {pipeline_mode = #tpu.pipeline_mode<synchronous>, transform_indices = @transform_7, window_bounds = array<i64: 128, 64>}, {pipeline_mode = #tpu.pipeline_mode<synchronous>, transform_indices = @transform_8, window_bounds = array<i64: 128, 64>}, {pipeline_mode = #tpu.pipeline_mode<synchronous>, transform_indices = @transform_9, window_bounds = array<i64: 3, 64, 128>}, {pipeline_mode = #tpu.pipeline_mode<synchronous>, transform_indices = @transform_10, window_bounds = array<i64: 1, 128>}, {pipeline_mode = #tpu.pipeline_mode<synchronous>, transform_indices = @transform_11, window_bounds = array<i64: 3, 128, 128>}, {pipeline_mode = #tpu.pipeline_mode<synchronous>, transform_indices = @transform_12, window_bounds = array<i64: 1, 128>}, {pipeline_mode = #tpu.pipeline_mode<synchronous>, transform_indices = @transform_13, window_bounds = array<i64: 4, 8>}, {pipeline_mode = #tpu.pipeline_mode<synchronous>, transform_indices = @transform_14, window_bounds = array<i64: 4, 8>}, {pipeline_mode = #tpu.pipeline_mode<synchronous>, transform_indices = @transform_15, window_bounds = array<i64: 128, 64>}, {pipeline_mode = #tpu.pipeline_mode<synchronous>, transform_indices = @transform_16, window_bounds = array<i64: 128, 64>}, {pipeline_mode = #tpu.pipeline_mode<synchronous>, transform_indices = @transform_17, window_bounds = array<i64: 3, 64, 64>}, {pipeline_mode = #tpu.pipeline_mode<synchronous>, transform_indices = @transform_18, window_bounds = array<i64: 1, 64>}, {pipeline_mode = #tpu.pipeline_mode<synchronous>, transform_indices = @transform_19, window_bounds = array<i64: 3, 64, 64>}, {pipeline_mode = #tpu.pipeline_mode<synchronous>, transform_indices = @transform_20, window_bounds = array<i64: 1, 64>}, {pipeline_mode = #tpu.pipeline_mode<synchronous>, transform_indices = @transform_21, window_bounds = array<i64: 8, 4>}, {pipeline_mode = #tpu.pipeline_mode<synchronous>, transform_indices = @transform_22, window_bounds = array<i64: 64, 128>}, {pipeline_mode = #tpu.pipeline_mode<synchronous>, transform_indices = @transform_23, window_bounds = array<i64: 3, 128, 128>}, {pipeline_mode = #tpu.pipeline_mode<synchronous>, transform_indices = @transform_24, window_bounds = array<i64: 3, 128, 128>}, {pipeline_mode = #tpu.pipeline_mode<synchronous>, transform_indices = @transform_25, window_bounds = array<i64: 1, 128>}, {pipeline_mode = #tpu.pipeline_mode<synchronous>, transform_indices = @transform_26, window_bounds = array<i64: 3, 128, 128>}, {pipeline_mode = #tpu.pipeline_mode<synchronous>, transform_indices = @transform_27, window_bounds = array<i64: 1, 128>}, {pipeline_mode = #tpu.pipeline_mode<synchronous>, transform_indices = @transform_28, window_bounds = array<i64: 128, 24>}, {pipeline_mode = #tpu.pipeline_mode<synchronous>, transform_indices = @transform_29, window_bounds = array<i64: 1, 24>}, {transform_indices = @transform_30, window_bounds = array<i64: 1, 8, 24>}]} {
    %c0 = arith.constant 0 : index
    %c0_0 = arith.constant 0 : index
    %c0_1 = arith.constant 0 : index
    %0 = vector.load %arg1[%c0, %c0_0, %c0_1] : memref<1x16x48xf32, #tpu.memory_space<vmem>>, vector<1x16x48xf32>
    %1 = vector.shape_cast %0 : vector<1x16x48xf32> to vector<16x48xf32>
    %cst = arith.constant 0.000000e+00 : f32
    %2 = vector.broadcast %cst : f32 to vector<25x128xf32>
    %c0_2 = arith.constant 0 : index
    %c0_3 = arith.constant 0 : index
    %3 = vector.load %arg32[%c0_2, %c0_3] : memref<25x128xf32, #tpu.memory_space<vmem>>, vector<25x128xf32>
    tpu.vector_store %arg32[%c0_2, %c0_3], %2 {strides = array<i32>} : memref<25x128xf32, #tpu.memory_space<vmem>>, vector<25x128xf32>,
    %c8 = arith.constant 8 : index
    %c0_4 = arith.constant 0 : index
    %4 = vector.load %arg32[%c8, %c0_4] : memref<25x128xf32, #tpu.memory_space<vmem>>, vector<16x48xf32>
    tpu.vector_store %arg32[%c8, %c0_4], %1 {strides = array<i32>} : memref<25x128xf32, #tpu.memory_space<vmem>>, vector<16x48xf32>,
    %c7 = arith.constant 7 : index
    %c0_5 = arith.constant 0 : index
    %5 = vector.load %arg32[%c7, %c0_5] : memref<25x128xf32, #tpu.memory_space<vmem>>, vector<16x48xf32>
    %c0_6 = arith.constant 0 : index
    %c0_7 = arith.constant 0 : index
    %c0_8 = arith.constant 0 : index
    %6 = vector.load %arg2[%c0_6, %c0_7, %c0_8] : memref<3x48x128xf32, #tpu.memory_space<vmem>>, vector<1x48x128xf32>
    %7 = vector.shape_cast %6 : vector<1x48x128xf32> to vector<48x128xf32>
    %cst_9 = arith.constant dense<0.000000e+00> : vector<16x128xf32>
    %8 = tpu.matmul %5, %7, %cst_9 {dimension_numbers = #tpu.dot_dimension_numbers<[1], [0], [0], [1], [0, 0, 1, 1], [], []>} : vector<16x48xf32>, vector<48x128xf32>, vector<16x128xf32> -> vector<16x128xf32>
    %c8_10 = arith.constant 8 : index
    %c0_11 = arith.constant 0 : index
    %9 = vector.load %arg32[%c8_10, %c0_11] : memref<25x128xf32, #tpu.memory_space<vmem>>, vector<16x48xf32>
    %c1 = arith.constant 1 : index
    %c0_12 = arith.constant 0 : index
    %c0_13 = arith.constant 0 : index
    %10 = vector.load %arg2[%c1, %c0_12, %c0_13] : memref<3x48x128xf32, #tpu.memory_space<vmem>>, vector<1x48x128xf32>
    %11 = vector.shape_cast %10 : vector<1x48x128xf32> to vector<48x128xf32>
    %cst_14 = arith.constant dense<0.000000e+00> : vector<16x128xf32>
    %12 = tpu.matmul %9, %11, %cst_14 {dimension_numbers = #tpu.dot_dimension_numbers<[1], [0], [0], [1], [0, 0, 1, 1], [], []>} : vector<16x48xf32>, vector<48x128xf32>, vector<16x128xf32> -> vector<16x128xf32>
    %13 = arith.addf %8, %12 : vector<16x128xf32>
    %c9 = arith.constant 9 : index
    %c0_15 = arith.constant 0 : index
    %14 = vector.load %arg32[%c9, %c0_15] : memref<25x128xf32, #tpu.memory_space<vmem>>, vector<16x48xf32>
    %c2 = arith.constant 2 : index
    %c0_16 = arith.constant 0 : index
    %c0_17 = arith.constant 0 : index
    %15 = vector.load %arg2[%c2, %c0_16, %c0_17] : memref<3x48x128xf32, #tpu.memory_space<vmem>>, vector<1x48x128xf32>
    %16 = vector.shape_cast %15 : vector<1x48x128xf32> to vector<48x128xf32>
    %cst_18 = arith.constant dense<0.000000e+00> : vector<16x128xf32>
    %17 = tpu.matmul %14, %16, %cst_18 {dimension_numbers = #tpu.dot_dimension_numbers<[1], [0], [0], [1], [0, 0, 1, 1], [], []>} : vector<16x48xf32>, vector<48x128xf32>, vector<16x128xf32> -> vector<16x128xf32>
    %18 = arith.addf %13, %17 : vector<16x128xf32>
    %c0_19 = arith.constant 0 : index
    %c0_20 = arith.constant 0 : index
    %19 = vector.load %arg3[%c0_19, %c0_20] : memref<1x128xf32, #tpu.memory_space<vmem>>, vector<1x128xf32>
    %20 = vector.broadcast %19 : vector<1x128xf32> to vector<16x128xf32>
    %21 = arith.addf %18, %20 : vector<16x128xf32>
    %cst_21 = arith.constant 0.000000e+00 : f32
    %22 = vector.broadcast %cst_21 : f32 to vector<16x128xf32>
    %23 = arith.maximumf %21, %22 : vector<16x128xf32>
    %cst_22 = arith.constant 0.000000e+00 : f32
    %24 = vector.broadcast %cst_22 : f32 to vector<25x128xf32>
    %c0_23 = arith.constant 0 : index
    %c0_24 = arith.constant 0 : index
    %25 = vector.load %arg32[%c0_23, %c0_24] : memref<25x128xf32, #tpu.memory_space<vmem>>, vector<25x128xf32>
    tpu.vector_store %arg32[%c0_23, %c0_24], %24 {strides = array<i32>} : memref<25x128xf32, #tpu.memory_space<vmem>>, vector<25x128xf32>,
    %c8_25 = arith.constant 8 : index
    %c0_26 = arith.constant 0 : index
    %26 = vector.load %arg32[%c8_25, %c0_26] : memref<25x128xf32, #tpu.memory_space<vmem>>, vector<16x128xf32>
    tpu.vector_store %arg32[%c8_25, %c0_26], %23 {strides = array<i32>} : memref<25x128xf32, #tpu.memory_space<vmem>>, vector<16x128xf32>,
    %c7_27 = arith.constant 7 : index
    %c0_28 = arith.constant 0 : index
    %27 = vector.load %arg32[%c7_27, %c0_28] : memref<25x128xf32, #tpu.memory_space<vmem>>, vector<16x128xf32>
    %c0_29 = arith.constant 0 : index
    %c0_30 = arith.constant 0 : index
    %c0_31 = arith.constant 0 : index
    %28 = vector.load %arg4[%c0_29, %c0_30, %c0_31] : memref<3x128x128xf32, #tpu.memory_space<vmem>>, vector<1x128x128xf32>
    %29 = vector.shape_cast %28 : vector<1x128x128xf32> to vector<128x128xf32>
    %cst_32 = arith.constant dense<0.000000e+00> : vector<16x128xf32>
    %30 = tpu.matmul %27, %29, %cst_32 {dimension_numbers = #tpu.dot_dimension_numbers<[1], [0], [0], [1], [0, 0, 1, 1], [], []>} : vector<16x128xf32>, vector<128x128xf32>, vector<16x128xf32> -> vector<16x128xf32>
    %c8_33 = arith.constant 8 : index
    %c0_34 = arith.constant 0 : index
    %31 = vector.load %arg32[%c8_33, %c0_34] : memref<25x128xf32, #tpu.memory_space<vmem>>, vector<16x128xf32>
    %c1_35 = arith.constant 1 : index
    %c0_36 = arith.constant 0 : index
    %c0_37 = arith.constant 0 : index
    %32 = vector.load %arg4[%c1_35, %c0_36, %c0_37] : memref<3x128x128xf32, #tpu.memory_space<vmem>>, vector<1x128x128xf32>
    %33 = vector.shape_cast %32 : vector<1x128x128xf32> to vector<128x128xf32>
    %cst_38 = arith.constant dense<0.000000e+00> : vector<16x128xf32>
    %34 = tpu.matmul %31, %33, %cst_38 {dimension_numbers = #tpu.dot_dimension_numbers<[1], [0], [0], [1], [0, 0, 1, 1], [], []>} : vector<16x128xf32>, vector<128x128xf32>, vector<16x128xf32> -> vector<16x128xf32>
    %35 = arith.addf %30, %34 : vector<16x128xf32>
    %c9_39 = arith.constant 9 : index
    %c0_40 = arith.constant 0 : index
    %36 = vector.load %arg32[%c9_39, %c0_40] : memref<25x128xf32, #tpu.memory_space<vmem>>, vector<16x128xf32>
    %c2_41 = arith.constant 2 : index
    %c0_42 = arith.constant 0 : index
    %c0_43 = arith.constant 0 : index
    %37 = vector.load %arg4[%c2_41, %c0_42, %c0_43] : memref<3x128x128xf32, #tpu.memory_space<vmem>>, vector<1x128x128xf32>
    %38 = vector.shape_cast %37 : vector<1x128x128xf32> to vector<128x128xf32>
    %cst_44 = arith.constant dense<0.000000e+00> : vector<16x128xf32>
    %39 = tpu.matmul %36, %38, %cst_44 {dimension_numbers = #tpu.dot_dimension_numbers<[1], [0], [0], [1], [0, 0, 1, 1], [], []>} : vector<16x128xf32>, vector<128x128xf32>, vector<16x128xf32> -> vector<16x128xf32>
    %40 = arith.addf %35, %39 : vector<16x128xf32>
    %c0_45 = arith.constant 0 : index
    %c0_46 = arith.constant 0 : index
    %41 = vector.load %arg5[%c0_45, %c0_46] : memref<1x128xf32, #tpu.memory_space<vmem>>, vector<1x128xf32>
    %42 = vector.broadcast %41 : vector<1x128xf32> to vector<16x128xf32>
    %43 = arith.addf %40, %42 : vector<16x128xf32>
    %cst_47 = arith.constant 0.000000e+00 : f32
    %44 = vector.broadcast %cst_47 : f32 to vector<16x128xf32>
    %45 = arith.maximumf %43, %44 : vector<16x128xf32>
    %c0_48 = arith.constant 0 : index
    %c0_49 = arith.constant 0 : index
    %46 = vector.load %arg6[%c0_48, %c0_49] : memref<8x16xf32, #tpu.memory_space<vmem>>, vector<8x16xf32>
    %cst_50 = arith.constant dense<0.000000e+00> : vector<8x128xf32>
    %47 = tpu.matmul %46, %45, %cst_50 {dimension_numbers = #tpu.dot_dimension_numbers<[1], [0], [0], [1], [0, 0, 1, 1], [], []>} : vector<8x16xf32>, vector<16x128xf32>, vector<8x128xf32> -> vector<8x128xf32>
    %c0_51 = arith.constant 0 : index
    %c0_52 = arith.constant 0 : index
    %48 = vector.load %arg7[%c0_51, %c0_52] : memref<8x16xf32, #tpu.memory_space<vmem>>, vector<8x16xf32>
    %cst_53 = arith.constant dense<0.000000e+00> : vector<8x128xf32>
    %49 = tpu.matmul %48, %45, %cst_53 {dimension_numbers = #tpu.dot_dimension_numbers<[1], [0], [0], [1], [0, 0, 1, 1], [], []>} : vector<8x16xf32>, vector<16x128xf32>, vector<8x128xf32> -> vector<8x128xf32>
    %50 = arith.maximumf %47, %49 : vector<8x128xf32>
    %c0_54 = arith.constant 0 : index
    %c0_55 = arith.constant 0 : index
    %51 = vector.load %arg8[%c0_54, %c0_55] : memref<128x64xf32, #tpu.memory_space<vmem>>, vector<128x64xf32>
    %cst_56 = arith.constant dense<0.000000e+00> : vector<8x64xf32>
    %52 = tpu.matmul %50, %51, %cst_56 {dimension_numbers = #tpu.dot_dimension_numbers<[1], [0], [0], [1], [0, 0, 1, 1], [], []>} : vector<8x128xf32>, vector<128x64xf32>, vector<8x64xf32> -> vector<8x64xf32>
    %c0_57 = arith.constant 0 : index
    %c0_58 = arith.constant 0 : index
    %53 = vector.load %arg9[%c0_57, %c0_58] : memref<128x64xf32, #tpu.memory_space<vmem>>, vector<128x64xf32>
    %cst_59 = arith.constant dense<0.000000e+00> : vector<8x64xf32>
    %54 = tpu.matmul %50, %53, %cst_59 {dimension_numbers = #tpu.dot_dimension_numbers<[1], [0], [0], [1], [0, 0, 1, 1], [], []>} : vector<8x128xf32>, vector<128x64xf32>, vector<8x64xf32> -> vector<8x64xf32>
    %55 = arith.maximumf %52, %54 : vector<8x64xf32>
    %cst_60 = arith.constant 0.000000e+00 : f32
    %56 = vector.broadcast %cst_60 : f32 to vector<25x128xf32>
    %c0_61 = arith.constant 0 : index
    %c0_62 = arith.constant 0 : index
    %57 = vector.load %arg32[%c0_61, %c0_62] : memref<25x128xf32, #tpu.memory_space<vmem>>, vector<25x128xf32>
    tpu.vector_store %arg32[%c0_61, %c0_62], %56 {strides = array<i32>} : memref<25x128xf32, #tpu.memory_space<vmem>>, vector<25x128xf32>,
    %c8_63 = arith.constant 8 : index
    %c0_64 = arith.constant 0 : index
    %58 = vector.load %arg32[%c8_63, %c0_64] : memref<25x128xf32, #tpu.memory_space<vmem>>, vector<8x64xf32>
    tpu.vector_store %arg32[%c8_63, %c0_64], %55 {strides = array<i32>} : memref<25x128xf32, #tpu.memory_space<vmem>>, vector<8x64xf32>,
    %c7_65 = arith.constant 7 : index
    %c0_66 = arith.constant 0 : index
    %59 = vector.load %arg32[%c7_65, %c0_66] : memref<25x128xf32, #tpu.memory_space<vmem>>, vector<8x64xf32>
    %c0_67 = arith.constant 0 : index
    %c0_68 = arith.constant 0 : index
    %c0_69 = arith.constant 0 : index
    %60 = vector.load %arg10[%c0_67, %c0_68, %c0_69] : memref<3x64x128xf32, #tpu.memory_space<vmem>>, vector<1x64x128xf32>
    %61 = vector.shape_cast %60 : vector<1x64x128xf32> to vector<64x128xf32>
    %cst_70 = arith.constant dense<0.000000e+00> : vector<8x128xf32>
    %62 = tpu.matmul %59, %61, %cst_70 {dimension_numbers = #tpu.dot_dimension_numbers<[1], [0], [0], [1], [0, 0, 1, 1], [], []>} : vector<8x64xf32>, vector<64x128xf32>, vector<8x128xf32> -> vector<8x128xf32>
    %c8_71 = arith.constant 8 : index
    %c0_72 = arith.constant 0 : index
    %63 = vector.load %arg32[%c8_71, %c0_72] : memref<25x128xf32, #tpu.memory_space<vmem>>, vector<8x64xf32>
    %c1_73 = arith.constant 1 : index
    %c0_74 = arith.constant 0 : index
    %c0_75 = arith.constant 0 : index
    %64 = vector.load %arg10[%c1_73, %c0_74, %c0_75] : memref<3x64x128xf32, #tpu.memory_space<vmem>>, vector<1x64x128xf32>
    %65 = vector.shape_cast %64 : vector<1x64x128xf32> to vector<64x128xf32>
    %cst_76 = arith.constant dense<0.000000e+00> : vector<8x128xf32>
    %66 = tpu.matmul %63, %65, %cst_76 {dimension_numbers = #tpu.dot_dimension_numbers<[1], [0], [0], [1], [0, 0, 1, 1], [], []>} : vector<8x64xf32>, vector<64x128xf32>, vector<8x128xf32> -> vector<8x128xf32>
    %67 = arith.addf %62, %66 : vector<8x128xf32>
    %c9_77 = arith.constant 9 : index
    %c0_78 = arith.constant 0 : index
    %68 = vector.load %arg32[%c9_77, %c0_78] : memref<25x128xf32, #tpu.memory_space<vmem>>, vector<8x64xf32>
    %c2_79 = arith.constant 2 : index
    %c0_80 = arith.constant 0 : index
    %c0_81 = arith.constant 0 : index
    %69 = vector.load %arg10[%c2_79, %c0_80, %c0_81] : memref<3x64x128xf32, #tpu.memory_space<vmem>>, vector<1x64x128xf32>
    %70 = vector.shape_cast %69 : vector<1x64x128xf32> to vector<64x128xf32>
    %cst_82 = arith.constant dense<0.000000e+00> : vector<8x128xf32>
    %71 = tpu.matmul %68, %70, %cst_82 {dimension_numbers = #tpu.dot_dimension_numbers<[1], [0], [0], [1], [0, 0, 1, 1], [], []>} : vector<8x64xf32>, vector<64x128xf32>, vector<8x128xf32> -> vector<8x128xf32>
    %72 = arith.addf %67, %71 : vector<8x128xf32>
    %c0_83 = arith.constant 0 : index
    %c0_84 = arith.constant 0 : index
    %73 = vector.load %arg11[%c0_83, %c0_84] : memref<1x128xf32, #tpu.memory_space<vmem>>, vector<1x128xf32>
    %74 = vector.broadcast %73 : vector<1x128xf32> to vector<8x128xf32>
    %75 = arith.addf %72, %74 : vector<8x128xf32>
    %cst_85 = arith.constant 0.000000e+00 : f32
    %76 = vector.broadcast %cst_85 : f32 to vector<8x128xf32>
    %77 = arith.maximumf %75, %76 : vector<8x128xf32>
    %cst_86 = arith.constant 0.000000e+00 : f32
    %78 = vector.broadcast %cst_86 : f32 to vector<25x128xf32>
    %c0_87 = arith.constant 0 : index
    %c0_88 = arith.constant 0 : index
    %79 = vector.load %arg32[%c0_87, %c0_88] : memref<25x128xf32, #tpu.memory_space<vmem>>, vector<25x128xf32>
    tpu.vector_store %arg32[%c0_87, %c0_88], %78 {strides = array<i32>} : memref<25x128xf32, #tpu.memory_space<vmem>>, vector<25x128xf32>,
    %c8_89 = arith.constant 8 : index
    %c0_90 = arith.constant 0 : index
    %80 = vector.load %arg32[%c8_89, %c0_90] : memref<25x128xf32, #tpu.memory_space<vmem>>, vector<8x128xf32>
    tpu.vector_store %arg32[%c8_89, %c0_90], %77 {strides = array<i32>} : memref<25x128xf32, #tpu.memory_space<vmem>>, vector<8x128xf32>,
    %c7_91 = arith.constant 7 : index
    %c0_92 = arith.constant 0 : index
    %81 = vector.load %arg32[%c7_91, %c0_92] : memref<25x128xf32, #tpu.memory_space<vmem>>, vector<8x128xf32>
    %c0_93 = arith.constant 0 : index
    %c0_94 = arith.constant 0 : index
    %c0_95 = arith.constant 0 : index
    %82 = vector.load %arg12[%c0_93, %c0_94, %c0_95] : memref<3x128x128xf32, #tpu.memory_space<vmem>>, vector<1x128x128xf32>
    %83 = vector.shape_cast %82 : vector<1x128x128xf32> to vector<128x128xf32>
    %cst_96 = arith.constant dense<0.000000e+00> : vector<8x128xf32>
    %84 = tpu.matmul %81, %83, %cst_96 {dimension_numbers = #tpu.dot_dimension_numbers<[1], [0], [0], [1], [0, 0, 1, 1], [], []>} : vector<8x128xf32>, vector<128x128xf32>, vector<8x128xf32> -> vector<8x128xf32>
    %c8_97 = arith.constant 8 : index
    %c0_98 = arith.constant 0 : index
    %85 = vector.load %arg32[%c8_97, %c0_98] : memref<25x128xf32, #tpu.memory_space<vmem>>, vector<8x128xf32>
    %c1_99 = arith.constant 1 : index
    %c0_100 = arith.constant 0 : index
    %c0_101 = arith.constant 0 : index
    %86 = vector.load %arg12[%c1_99, %c0_100, %c0_101] : memref<3x128x128xf32, #tpu.memory_space<vmem>>, vector<1x128x128xf32>
    %87 = vector.shape_cast %86 : vector<1x128x128xf32> to vector<128x128xf32>
    %cst_102 = arith.constant dense<0.000000e+00> : vector<8x128xf32>
    %88 = tpu.matmul %85, %87, %cst_102 {dimension_numbers = #tpu.dot_dimension_numbers<[1], [0], [0], [1], [0, 0, 1, 1], [], []>} : vector<8x128xf32>, vector<128x128xf32>, vector<8x128xf32> -> vector<8x128xf32>
    %89 = arith.addf %84, %88 : vector<8x128xf32>
    %c9_103 = arith.constant 9 : index
    %c0_104 = arith.constant 0 : index
    %90 = vector.load %arg32[%c9_103, %c0_104] : memref<25x128xf32, #tpu.memory_space<vmem>>, vector<8x128xf32>
    %c2_105 = arith.constant 2 : index
    %c0_106 = arith.constant 0 : index
    %c0_107 = arith.constant 0 : index
    %91 = vector.load %arg12[%c2_105, %c0_106, %c0_107] : memref<3x128x128xf32, #tpu.memory_space<vmem>>, vector<1x128x128xf32>
    %92 = vector.shape_cast %91 : vector<1x128x128xf32> to vector<128x128xf32>
    %cst_108 = arith.constant dense<0.000000e+00> : vector<8x128xf32>
    %93 = tpu.matmul %90, %92, %cst_108 {dimension_numbers = #tpu.dot_dimension_numbers<[1], [0], [0], [1], [0, 0, 1, 1], [], []>} : vector<8x128xf32>, vector<128x128xf32>, vector<8x128xf32> -> vector<8x128xf32>
    %94 = arith.addf %89, %93 : vector<8x128xf32>
    %c0_109 = arith.constant 0 : index
    %c0_110 = arith.constant 0 : index
    %95 = vector.load %arg13[%c0_109, %c0_110] : memref<1x128xf32, #tpu.memory_space<vmem>>, vector<1x128xf32>
    %96 = vector.broadcast %95 : vector<1x128xf32> to vector<8x128xf32>
    %97 = arith.addf %94, %96 : vector<8x128xf32>
    %cst_111 = arith.constant 0.000000e+00 : f32
    %98 = vector.broadcast %cst_111 : f32 to vector<8x128xf32>
    %99 = arith.maximumf %97, %98 : vector<8x128xf32>
    %c0_112 = arith.constant 0 : index
    %c0_113 = arith.constant 0 : index
    %100 = vector.load %arg14[%c0_112, %c0_113] : memref<4x8xf32, #tpu.memory_space<vmem>>, vector<4x8xf32>
    %cst_114 = arith.constant dense<0.000000e+00> : vector<4x128xf32>
    %101 = tpu.matmul %100, %99, %cst_114 {dimension_numbers = #tpu.dot_dimension_numbers<[1], [0], [0], [1], [0, 0, 1, 1], [], []>} : vector<4x8xf32>, vector<8x128xf32>, vector<4x128xf32> -> vector<4x128xf32>
    %c0_115 = arith.constant 0 : index
    %c0_116 = arith.constant 0 : index
    %102 = vector.load %arg15[%c0_115, %c0_116] : memref<4x8xf32, #tpu.memory_space<vmem>>, vector<4x8xf32>
    %cst_117 = arith.constant dense<0.000000e+00> : vector<4x128xf32>
    %103 = tpu.matmul %102, %99, %cst_117 {dimension_numbers = #tpu.dot_dimension_numbers<[1], [0], [0], [1], [0, 0, 1, 1], [], []>} : vector<4x8xf32>, vector<8x128xf32>, vector<4x128xf32> -> vector<4x128xf32>
    %104 = arith.maximumf %101, %103 : vector<4x128xf32>
    %c0_118 = arith.constant 0 : index
    %c0_119 = arith.constant 0 : index
    %105 = vector.load %arg16[%c0_118, %c0_119] : memref<128x64xf32, #tpu.memory_space<vmem>>, vector<128x64xf32>
    %cst_120 = arith.constant dense<0.000000e+00> : vector<4x64xf32>
    %106 = tpu.matmul %104, %105, %cst_120 {dimension_numbers = #tpu.dot_dimension_numbers<[1], [0], [0], [1], [0, 0, 1, 1], [], []>} : vector<4x128xf32>, vector<128x64xf32>, vector<4x64xf32> -> vector<4x64xf32>
    %c0_121 = arith.constant 0 : index
    %c0_122 = arith.constant 0 : index
    %107 = vector.load %arg17[%c0_121, %c0_122] : memref<128x64xf32, #tpu.memory_space<vmem>>, vector<128x64xf32>
    %cst_123 = arith.constant dense<0.000000e+00> : vector<4x64xf32>
    %108 = tpu.matmul %104, %107, %cst_123 {dimension_numbers = #tpu.dot_dimension_numbers<[1], [0], [0], [1], [0, 0, 1, 1], [], []>} : vector<4x128xf32>, vector<128x64xf32>, vector<4x64xf32> -> vector<4x64xf32>
    %109 = arith.maximumf %106, %108 : vector<4x64xf32>
    %cst_124 = arith.constant 0.000000e+00 : f32
    %110 = vector.broadcast %cst_124 : f32 to vector<25x128xf32>
    %c0_125 = arith.constant 0 : index
    %c0_126 = arith.constant 0 : index
    %111 = vector.load %arg32[%c0_125, %c0_126] : memref<25x128xf32, #tpu.memory_space<vmem>>, vector<25x128xf32>
    tpu.vector_store %arg32[%c0_125, %c0_126], %110 {strides = array<i32>} : memref<25x128xf32, #tpu.memory_space<vmem>>, vector<25x128xf32>,
    %c8_127 = arith.constant 8 : index
    %c0_128 = arith.constant 0 : index
    %112 = vector.load %arg32[%c8_127, %c0_128] : memref<25x128xf32, #tpu.memory_space<vmem>>, vector<4x64xf32>
    tpu.vector_store %arg32[%c8_127, %c0_128], %109 {strides = array<i32>} : memref<25x128xf32, #tpu.memory_space<vmem>>, vector<4x64xf32>,
    %c7_129 = arith.constant 7 : index
    %c0_130 = arith.constant 0 : index
    %113 = vector.load %arg32[%c7_129, %c0_130] : memref<25x128xf32, #tpu.memory_space<vmem>>, vector<4x64xf32>
    %c0_131 = arith.constant 0 : index
    %c0_132 = arith.constant 0 : index
    %c0_133 = arith.constant 0 : index
    %114 = vector.load %arg18[%c0_131, %c0_132, %c0_133] : memref<3x64x64xf32, #tpu.memory_space<vmem>>, vector<1x64x64xf32>
    %115 = vector.shape_cast %114 : vector<1x64x64xf32> to vector<64x64xf32>
    %cst_134 = arith.constant dense<0.000000e+00> : vector<4x64xf32>
    %116 = tpu.matmul %113, %115, %cst_134 {dimension_numbers = #tpu.dot_dimension_numbers<[1], [0], [0], [1], [0, 0, 1, 1], [], []>} : vector<4x64xf32>, vector<64x64xf32>, vector<4x64xf32> -> vector<4x64xf32>
    %c8_135 = arith.constant 8 : index
    %c0_136 = arith.constant 0 : index
    %117 = vector.load %arg32[%c8_135, %c0_136] : memref<25x128xf32, #tpu.memory_space<vmem>>, vector<4x64xf32>
    %c1_137 = arith.constant 1 : index
    %c0_138 = arith.constant 0 : index
    %c0_139 = arith.constant 0 : index
    %118 = vector.load %arg18[%c1_137, %c0_138, %c0_139] : memref<3x64x64xf32, #tpu.memory_space<vmem>>, vector<1x64x64xf32>
    %119 = vector.shape_cast %118 : vector<1x64x64xf32> to vector<64x64xf32>
    %cst_140 = arith.constant dense<0.000000e+00> : vector<4x64xf32>
    %120 = tpu.matmul %117, %119, %cst_140 {dimension_numbers = #tpu.dot_dimension_numbers<[1], [0], [0], [1], [0, 0, 1, 1], [], []>} : vector<4x64xf32>, vector<64x64xf32>, vector<4x64xf32> -> vector<4x64xf32>
    %121 = arith.addf %116, %120 : vector<4x64xf32>
    %c9_141 = arith.constant 9 : index
    %c0_142 = arith.constant 0 : index
    %122 = vector.load %arg32[%c9_141, %c0_142] : memref<25x128xf32, #tpu.memory_space<vmem>>, vector<4x64xf32>
    %c2_143 = arith.constant 2 : index
    %c0_144 = arith.constant 0 : index
    %c0_145 = arith.constant 0 : index
    %123 = vector.load %arg18[%c2_143, %c0_144, %c0_145] : memref<3x64x64xf32, #tpu.memory_space<vmem>>, vector<1x64x64xf32>
    %124 = vector.shape_cast %123 : vector<1x64x64xf32> to vector<64x64xf32>
    %cst_146 = arith.constant dense<0.000000e+00> : vector<4x64xf32>
    %125 = tpu.matmul %122, %124, %cst_146 {dimension_numbers = #tpu.dot_dimension_numbers<[1], [0], [0], [1], [0, 0, 1, 1], [], []>} : vector<4x64xf32>, vector<64x64xf32>, vector<4x64xf32> -> vector<4x64xf32>
    %126 = arith.addf %121, %125 : vector<4x64xf32>
    %c0_147 = arith.constant 0 : index
    %c0_148 = arith.constant 0 : index
    %127 = vector.load %arg19[%c0_147, %c0_148] : memref<1x64xf32, #tpu.memory_space<vmem>>, vector<1x64xf32>
    %128 = vector.broadcast %127 : vector<1x64xf32> to vector<4x64xf32>
    %129 = arith.addf %126, %128 : vector<4x64xf32>
    %cst_149 = arith.constant 0.000000e+00 : f32
    %130 = vector.broadcast %cst_149 : f32 to vector<4x64xf32>
    %131 = arith.maximumf %129, %130 : vector<4x64xf32>
    %cst_150 = arith.constant 0.000000e+00 : f32
    %132 = vector.broadcast %cst_150 : f32 to vector<25x128xf32>
    %c0_151 = arith.constant 0 : index
    %c0_152 = arith.constant 0 : index
    %133 = vector.load %arg32[%c0_151, %c0_152] : memref<25x128xf32, #tpu.memory_space<vmem>>, vector<25x128xf32>
    tpu.vector_store %arg32[%c0_151, %c0_152], %132 {strides = array<i32>} : memref<25x128xf32, #tpu.memory_space<vmem>>, vector<25x128xf32>,
    %c8_153 = arith.constant 8 : index
    %c0_154 = arith.constant 0 : index
    %134 = vector.load %arg32[%c8_153, %c0_154] : memref<25x128xf32, #tpu.memory_space<vmem>>, vector<4x64xf32>
    tpu.vector_store %arg32[%c8_153, %c0_154], %131 {strides = array<i32>} : memref<25x128xf32, #tpu.memory_space<vmem>>, vector<4x64xf32>,
    %c7_155 = arith.constant 7 : index
    %c0_156 = arith.constant 0 : index
    %135 = vector.load %arg32[%c7_155, %c0_156] : memref<25x128xf32, #tpu.memory_space<vmem>>, vector<4x64xf32>
    %c0_157 = arith.constant 0 : index
    %c0_158 = arith.constant 0 : index
    %c0_159 = arith.constant 0 : index
    %136 = vector.load %arg20[%c0_157, %c0_158, %c0_159] : memref<3x64x64xf32, #tpu.memory_space<vmem>>, vector<1x64x64xf32>
    %137 = vector.shape_cast %136 : vector<1x64x64xf32> to vector<64x64xf32>
    %cst_160 = arith.constant dense<0.000000e+00> : vector<4x64xf32>
    %138 = tpu.matmul %135, %137, %cst_160 {dimension_numbers = #tpu.dot_dimension_numbers<[1], [0], [0], [1], [0, 0, 1, 1], [], []>} : vector<4x64xf32>, vector<64x64xf32>, vector<4x64xf32> -> vector<4x64xf32>
    %c8_161 = arith.constant 8 : index
    %c0_162 = arith.constant 0 : index
    %139 = vector.load %arg32[%c8_161, %c0_162] : memref<25x128xf32, #tpu.memory_space<vmem>>, vector<4x64xf32>
    %c1_163 = arith.constant 1 : index
    %c0_164 = arith.constant 0 : index
    %c0_165 = arith.constant 0 : index
    %140 = vector.load %arg20[%c1_163, %c0_164, %c0_165] : memref<3x64x64xf32, #tpu.memory_space<vmem>>, vector<1x64x64xf32>
    %141 = vector.shape_cast %140 : vector<1x64x64xf32> to vector<64x64xf32>
    %cst_166 = arith.constant dense<0.000000e+00> : vector<4x64xf32>
    %142 = tpu.matmul %139, %141, %cst_166 {dimension_numbers = #tpu.dot_dimension_numbers<[1], [0], [0], [1], [0, 0, 1, 1], [], []>} : vector<4x64xf32>, vector<64x64xf32>, vector<4x64xf32> -> vector<4x64xf32>
    %143 = arith.addf %138, %142 : vector<4x64xf32>
    %c9_167 = arith.constant 9 : index
    %c0_168 = arith.constant 0 : index
    %144 = vector.load %arg32[%c9_167, %c0_168] : memref<25x128xf32, #tpu.memory_space<vmem>>, vector<4x64xf32>
    %c2_169 = arith.constant 2 : index
    %c0_170 = arith.constant 0 : index
    %c0_171 = arith.constant 0 : index
    %145 = vector.load %arg20[%c2_169, %c0_170, %c0_171] : memref<3x64x64xf32, #tpu.memory_space<vmem>>, vector<1x64x64xf32>
    %146 = vector.shape_cast %145 : vector<1x64x64xf32> to vector<64x64xf32>
    %cst_172 = arith.constant dense<0.000000e+00> : vector<4x64xf32>
    %147 = tpu.matmul %144, %146, %cst_172 {dimension_numbers = #tpu.dot_dimension_numbers<[1], [0], [0], [1], [0, 0, 1, 1], [], []>} : vector<4x64xf32>, vector<64x64xf32>, vector<4x64xf32> -> vector<4x64xf32>
    %148 = arith.addf %143, %147 : vector<4x64xf32>
    %c0_173 = arith.constant 0 : index
    %c0_174 = arith.constant 0 : index
    %149 = vector.load %arg21[%c0_173, %c0_174] : memref<1x64xf32, #tpu.memory_space<vmem>>, vector<1x64xf32>
    %150 = vector.broadcast %149 : vector<1x64xf32> to vector<4x64xf32>
    %151 = arith.addf %148, %150 : vector<4x64xf32>
    %cst_175 = arith.constant 0.000000e+00 : f32
    %152 = vector.broadcast %cst_175 : f32 to vector<4x64xf32>
    %153 = arith.maximumf %151, %152 : vector<4x64xf32>
    %c0_176 = arith.constant 0 : index
    %c0_177 = arith.constant 0 : index
    %154 = vector.load %arg22[%c0_176, %c0_177] : memref<8x4xf32, #tpu.memory_space<vmem>>, vector<8x4xf32>
    %cst_178 = arith.constant dense<0.000000e+00> : vector<8x64xf32>
    %155 = tpu.matmul %154, %153, %cst_178 {dimension_numbers = #tpu.dot_dimension_numbers<[1], [0], [0], [1], [0, 0, 1, 1], [], []>} : vector<8x4xf32>, vector<4x64xf32>, vector<8x64xf32> -> vector<8x64xf32>
    %c0_179 = arith.constant 0 : index
    %c0_180 = arith.constant 0 : index
    %156 = vector.load %arg23[%c0_179, %c0_180] : memref<64x128xf32, #tpu.memory_space<vmem>>, vector<64x128xf32>
    %cst_181 = arith.constant dense<0.000000e+00> : vector<8x128xf32>
    %157 = tpu.matmul %155, %156, %cst_181 {dimension_numbers = #tpu.dot_dimension_numbers<[1], [0], [0], [1], [0, 0, 1, 1], [], []>} : vector<8x64xf32>, vector<64x128xf32>, vector<8x128xf32> -> vector<8x128xf32>
    %cst_182 = arith.constant 0.000000e+00 : f32
    %158 = vector.broadcast %cst_182 : f32 to vector<25x128xf32>
    %c0_183 = arith.constant 0 : index
    %c0_184 = arith.constant 0 : index
    %159 = vector.load %arg32[%c0_183, %c0_184] : memref<25x128xf32, #tpu.memory_space<vmem>>, vector<25x128xf32>
    tpu.vector_store %arg32[%c0_183, %c0_184], %158 {strides = array<i32>} : memref<25x128xf32, #tpu.memory_space<vmem>>, vector<25x128xf32>,
    %c8_185 = arith.constant 8 : index
    %c0_186 = arith.constant 0 : index
    %160 = vector.load %arg32[%c8_185, %c0_186] : memref<25x128xf32, #tpu.memory_space<vmem>>, vector<8x128xf32>
    tpu.vector_store %arg32[%c8_185, %c0_186], %99 {strides = array<i32>} : memref<25x128xf32, #tpu.memory_space<vmem>>, vector<8x128xf32>,
    %c7_187 = arith.constant 7 : index
    %c0_188 = arith.constant 0 : index
    %161 = vector.load %arg32[%c7_187, %c0_188] : memref<25x128xf32, #tpu.memory_space<vmem>>, vector<8x128xf32>
    %c0_189 = arith.constant 0 : index
    %c0_190 = arith.constant 0 : index
    %c0_191 = arith.constant 0 : index
    %162 = vector.load %arg24[%c0_189, %c0_190, %c0_191] : memref<3x128x128xf32, #tpu.memory_space<vmem>>, vector<1x128x128xf32>
    %163 = vector.shape_cast %162 : vector<1x128x128xf32> to vector<128x128xf32>
    %cst_192 = arith.constant dense<0.000000e+00> : vector<8x128xf32>
    %164 = tpu.matmul %161, %163, %cst_192 {dimension_numbers = #tpu.dot_dimension_numbers<[1], [0], [0], [1], [0, 0, 1, 1], [], []>} : vector<8x128xf32>, vector<128x128xf32>, vector<8x128xf32> -> vector<8x128xf32>
    %c8_193 = arith.constant 8 : index
    %c0_194 = arith.constant 0 : index
    %165 = vector.load %arg32[%c8_193, %c0_194] : memref<25x128xf32, #tpu.memory_space<vmem>>, vector<8x128xf32>
    %c1_195 = arith.constant 1 : index
    %c0_196 = arith.constant 0 : index
    %c0_197 = arith.constant 0 : index
    %166 = vector.load %arg24[%c1_195, %c0_196, %c0_197] : memref<3x128x128xf32, #tpu.memory_space<vmem>>, vector<1x128x128xf32>
    %167 = vector.shape_cast %166 : vector<1x128x128xf32> to vector<128x128xf32>
    %cst_198 = arith.constant dense<0.000000e+00> : vector<8x128xf32>
    %168 = tpu.matmul %165, %167, %cst_198 {dimension_numbers = #tpu.dot_dimension_numbers<[1], [0], [0], [1], [0, 0, 1, 1], [], []>} : vector<8x128xf32>, vector<128x128xf32>, vector<8x128xf32> -> vector<8x128xf32>
    %169 = arith.addf %164, %168 : vector<8x128xf32>
    %c9_199 = arith.constant 9 : index
    %c0_200 = arith.constant 0 : index
    %170 = vector.load %arg32[%c9_199, %c0_200] : memref<25x128xf32, #tpu.memory_space<vmem>>, vector<8x128xf32>
    %c2_201 = arith.constant 2 : index
    %c0_202 = arith.constant 0 : index
    %c0_203 = arith.constant 0 : index
    %171 = vector.load %arg24[%c2_201, %c0_202, %c0_203] : memref<3x128x128xf32, #tpu.memory_space<vmem>>, vector<1x128x128xf32>
    %172 = vector.shape_cast %171 : vector<1x128x128xf32> to vector<128x128xf32>
    %cst_204 = arith.constant dense<0.000000e+00> : vector<8x128xf32>
    %173 = tpu.matmul %170, %172, %cst_204 {dimension_numbers = #tpu.dot_dimension_numbers<[1], [0], [0], [1], [0, 0, 1, 1], [], []>} : vector<8x128xf32>, vector<128x128xf32>, vector<8x128xf32> -> vector<8x128xf32>
    %174 = arith.addf %169, %173 : vector<8x128xf32>
    %cst_205 = arith.constant 0.000000e+00 : f32
    %175 = vector.broadcast %cst_205 : f32 to vector<25x128xf32>
    %c0_206 = arith.constant 0 : index
    %c0_207 = arith.constant 0 : index
    %176 = vector.load %arg32[%c0_206, %c0_207] : memref<25x128xf32, #tpu.memory_space<vmem>>, vector<25x128xf32>
    tpu.vector_store %arg32[%c0_206, %c0_207], %175 {strides = array<i32>} : memref<25x128xf32, #tpu.memory_space<vmem>>, vector<25x128xf32>,
    %c8_208 = arith.constant 8 : index
    %c0_209 = arith.constant 0 : index
    %177 = vector.load %arg32[%c8_208, %c0_209] : memref<25x128xf32, #tpu.memory_space<vmem>>, vector<8x128xf32>
    tpu.vector_store %arg32[%c8_208, %c0_209], %157 {strides = array<i32>} : memref<25x128xf32, #tpu.memory_space<vmem>>, vector<8x128xf32>,
    %c7_210 = arith.constant 7 : index
    %c0_211 = arith.constant 0 : index
    %178 = vector.load %arg32[%c7_210, %c0_211] : memref<25x128xf32, #tpu.memory_space<vmem>>, vector<8x128xf32>
    %c0_212 = arith.constant 0 : index
    %c0_213 = arith.constant 0 : index
    %c0_214 = arith.constant 0 : index
    %179 = vector.load %arg25[%c0_212, %c0_213, %c0_214] : memref<3x128x128xf32, #tpu.memory_space<vmem>>, vector<1x128x128xf32>
    %180 = vector.shape_cast %179 : vector<1x128x128xf32> to vector<128x128xf32>
    %cst_215 = arith.constant dense<0.000000e+00> : vector<8x128xf32>
    %181 = tpu.matmul %178, %180, %cst_215 {dimension_numbers = #tpu.dot_dimension_numbers<[1], [0], [0], [1], [0, 0, 1, 1], [], []>} : vector<8x128xf32>, vector<128x128xf32>, vector<8x128xf32> -> vector<8x128xf32>
    %182 = arith.addf %174, %181 : vector<8x128xf32>
    %c8_216 = arith.constant 8 : index
    %c0_217 = arith.constant 0 : index
    %183 = vector.load %arg32[%c8_216, %c0_217] : memref<25x128xf32, #tpu.memory_space<vmem>>, vector<8x128xf32>
    %c1_218 = arith.constant 1 : index
    %c0_219 = arith.constant 0 : index
    %c0_220 = arith.constant 0 : index
    %184 = vector.load %arg25[%c1_218, %c0_219, %c0_220] : memref<3x128x128xf32, #tpu.memory_space<vmem>>, vector<1x128x128xf32>
    %185 = vector.shape_cast %184 : vector<1x128x128xf32> to vector<128x128xf32>
    %cst_221 = arith.constant dense<0.000000e+00> : vector<8x128xf32>
    %186 = tpu.matmul %183, %185, %cst_221 {dimension_numbers = #tpu.dot_dimension_numbers<[1], [0], [0], [1], [0, 0, 1, 1], [], []>} : vector<8x128xf32>, vector<128x128xf32>, vector<8x128xf32> -> vector<8x128xf32>
    %187 = arith.addf %182, %186 : vector<8x128xf32>
    %c9_222 = arith.constant 9 : index
    %c0_223 = arith.constant 0 : index
    %188 = vector.load %arg32[%c9_222, %c0_223] : memref<25x128xf32, #tpu.memory_space<vmem>>, vector<8x128xf32>
    %c2_224 = arith.constant 2 : index
    %c0_225 = arith.constant 0 : index
    %c0_226 = arith.constant 0 : index
    %189 = vector.load %arg25[%c2_224, %c0_225, %c0_226] : memref<3x128x128xf32, #tpu.memory_space<vmem>>, vector<1x128x128xf32>
    %190 = vector.shape_cast %189 : vector<1x128x128xf32> to vector<128x128xf32>
    %cst_227 = arith.constant dense<0.000000e+00> : vector<8x128xf32>
    %191 = tpu.matmul %188, %190, %cst_227 {dimension_numbers = #tpu.dot_dimension_numbers<[1], [0], [0], [1], [0, 0, 1, 1], [], []>} : vector<8x128xf32>, vector<128x128xf32>, vector<8x128xf32> -> vector<8x128xf32>
    %192 = arith.addf %187, %191 : vector<8x128xf32>
    %c0_228 = arith.constant 0 : index
    %c0_229 = arith.constant 0 : index
    %193 = vector.load %arg26[%c0_228, %c0_229] : memref<1x128xf32, #tpu.memory_space<vmem>>, vector<1x128xf32>
    %194 = vector.broadcast %193 : vector<1x128xf32> to vector<8x128xf32>
    %195 = arith.addf %192, %194 : vector<8x128xf32>
    %cst_230 = arith.constant 0.000000e+00 : f32
    %196 = vector.broadcast %cst_230 : f32 to vector<8x128xf32>
    %197 = arith.maximumf %195, %196 : vector<8x128xf32>
    %cst_231 = arith.constant 0.000000e+00 : f32
    %198 = vector.broadcast %cst_231 : f32 to vector<25x128xf32>
    %c0_232 = arith.constant 0 : index
    %c0_233 = arith.constant 0 : index
    %199 = vector.load %arg32[%c0_232, %c0_233] : memref<25x128xf32, #tpu.memory_space<vmem>>, vector<25x128xf32>
    tpu.vector_store %arg32[%c0_232, %c0_233], %198 {strides = array<i32>} : memref<25x128xf32, #tpu.memory_space<vmem>>, vector<25x128xf32>,
    %c8_234 = arith.constant 8 : index
    %c0_235 = arith.constant 0 : index
    %200 = vector.load %arg32[%c8_234, %c0_235] : memref<25x128xf32, #tpu.memory_space<vmem>>, vector<8x128xf32>
    tpu.vector_store %arg32[%c8_234, %c0_235], %197 {strides = array<i32>} : memref<25x128xf32, #tpu.memory_space<vmem>>, vector<8x128xf32>,
    %c7_236 = arith.constant 7 : index
    %c0_237 = arith.constant 0 : index
    %201 = vector.load %arg32[%c7_236, %c0_237] : memref<25x128xf32, #tpu.memory_space<vmem>>, vector<8x128xf32>
    %c0_238 = arith.constant 0 : index
    %c0_239 = arith.constant 0 : index
    %c0_240 = arith.constant 0 : index
    %202 = vector.load %arg27[%c0_238, %c0_239, %c0_240] : memref<3x128x128xf32, #tpu.memory_space<vmem>>, vector<1x128x128xf32>
    %203 = vector.shape_cast %202 : vector<1x128x128xf32> to vector<128x128xf32>
    %cst_241 = arith.constant dense<0.000000e+00> : vector<8x128xf32>
    %204 = tpu.matmul %201, %203, %cst_241 {dimension_numbers = #tpu.dot_dimension_numbers<[1], [0], [0], [1], [0, 0, 1, 1], [], []>} : vector<8x128xf32>, vector<128x128xf32>, vector<8x128xf32> -> vector<8x128xf32>
    %c8_242 = arith.constant 8 : index
    %c0_243 = arith.constant 0 : index
    %205 = vector.load %arg32[%c8_242, %c0_243] : memref<25x128xf32, #tpu.memory_space<vmem>>, vector<8x128xf32>
    %c1_244 = arith.constant 1 : index
    %c0_245 = arith.constant 0 : index
    %c0_246 = arith.constant 0 : index
    %206 = vector.load %arg27[%c1_244, %c0_245, %c0_246] : memref<3x128x128xf32, #tpu.memory_space<vmem>>, vector<1x128x128xf32>
    %207 = vector.shape_cast %206 : vector<1x128x128xf32> to vector<128x128xf32>
    %cst_247 = arith.constant dense<0.000000e+00> : vector<8x128xf32>
    %208 = tpu.matmul %205, %207, %cst_247 {dimension_numbers = #tpu.dot_dimension_numbers<[1], [0], [0], [1], [0, 0, 1, 1], [], []>} : vector<8x128xf32>, vector<128x128xf32>, vector<8x128xf32> -> vector<8x128xf32>
    %209 = arith.addf %204, %208 : vector<8x128xf32>
    %c9_248 = arith.constant 9 : index
    %c0_249 = arith.constant 0 : index
    %210 = vector.load %arg32[%c9_248, %c0_249] : memref<25x128xf32, #tpu.memory_space<vmem>>, vector<8x128xf32>
    %c2_250 = arith.constant 2 : index
    %c0_251 = arith.constant 0 : index
    %c0_252 = arith.constant 0 : index
    %211 = vector.load %arg27[%c2_250, %c0_251, %c0_252] : memref<3x128x128xf32, #tpu.memory_space<vmem>>, vector<1x128x128xf32>
    %212 = vector.shape_cast %211 : vector<1x128x128xf32> to vector<128x128xf32>
    %cst_253 = arith.constant dense<0.000000e+00> : vector<8x128xf32>
    %213 = tpu.matmul %210, %212, %cst_253 {dimension_numbers = #tpu.dot_dimension_numbers<[1], [0], [0], [1], [0, 0, 1, 1], [], []>} : vector<8x128xf32>, vector<128x128xf32>, vector<8x128xf32> -> vector<8x128xf32>
    %214 = arith.addf %209, %213 : vector<8x128xf32>
    %c0_254 = arith.constant 0 : index
    %c0_255 = arith.constant 0 : index
    %215 = vector.load %arg28[%c0_254, %c0_255] : memref<1x128xf32, #tpu.memory_space<vmem>>, vector<1x128xf32>
    %216 = vector.broadcast %215 : vector<1x128xf32> to vector<8x128xf32>
    %217 = arith.addf %214, %216 : vector<8x128xf32>
    %cst_256 = arith.constant 0.000000e+00 : f32
    %218 = vector.broadcast %cst_256 : f32 to vector<8x128xf32>
    %219 = arith.maximumf %217, %218 : vector<8x128xf32>
    %c0_257 = arith.constant 0 : index
    %c0_258 = arith.constant 0 : index
    %220 = vector.load %arg29[%c0_257, %c0_258] : memref<128x24xf32, #tpu.memory_space<vmem>>, vector<128x24xf32>
    %cst_259 = arith.constant dense<0.000000e+00> : vector<8x24xf32>
    %221 = tpu.matmul %219, %220, %cst_259 {dimension_numbers = #tpu.dot_dimension_numbers<[1], [0], [0], [1], [0, 0, 1, 1], [], []>} : vector<8x128xf32>, vector<128x24xf32>, vector<8x24xf32> -> vector<8x24xf32>
    %c0_260 = arith.constant 0 : index
    %c0_261 = arith.constant 0 : index
    %222 = vector.load %arg30[%c0_260, %c0_261] : memref<1x24xf32, #tpu.memory_space<vmem>>, vector<1x24xf32>
    %223 = vector.broadcast %222 : vector<1x24xf32> to vector<8x24xf32>
    %224 = arith.addf %221, %223 : vector<8x24xf32>
    %c0_262 = arith.constant 0 : index
    %c0_263 = arith.constant 0 : index
    %c0_264 = arith.constant 0 : index
    %225 = vector.load %arg31[%c0_262, %c0_263, %c0_264] : memref<1x8x24xf32, #tpu.memory_space<vmem>>, vector<1x8x24xf32>
    %226 = vector.shape_cast %225 : vector<1x8x24xf32> to vector<8x24xf32>
    %227 = vector.shape_cast %224 : vector<8x24xf32> to vector<1x8x24xf32>
    tpu.vector_store %arg31[%c0_262, %c0_263, %c0_264], %227 {strides = array<i32>} : memref<1x8x24xf32, #tpu.memory_space<vmem>>, vector<1x8x24xf32>,
    return
  }
  func.func @transform_0(%arg0: i32) -> (i32, i32, i32) {
    %c0_i32 = arith.constant 0 : i32
    %c0_i32_0 = arith.constant 0 : i32
    %c0_i32_1 = arith.constant 0 : i32
    return %arg0, %c0_i32, %c0_i32_0 : i32, i32, i32
  }
  func.func @transform_1(%arg0: i32) -> (i32, i32, i32) {
    %c0_i32 = arith.constant 0 : i32
    %c0_i32_0 = arith.constant 0 : i32
    %c0_i32_1 = arith.constant 0 : i32
    %c0_i32_2 = arith.constant 0 : i32
    return %c0_i32, %c0_i32_0, %c0_i32_1 : i32, i32, i32
  }
  func.func @transform_2(%arg0: i32) -> (i32, i32) {
    %c0_i32 = arith.constant 0 : i32
    %c0_i32_0 = arith.constant 0 : i32
    %c0_i32_1 = arith.constant 0 : i32
    return %c0_i32, %c0_i32_0 : i32, i32
  }
  func.func @transform_3(%arg0: i32) -> (i32, i32, i32) {
    %c0_i32 = arith.constant 0 : i32
    %c0_i32_0 = arith.constant 0 : i32
    %c0_i32_1 = arith.constant 0 : i32
    %c0_i32_2 = arith.constant 0 : i32
    return %c0_i32, %c0_i32_0, %c0_i32_1 : i32, i32, i32
  }
  func.func @transform_4(%arg0: i32) -> (i32, i32) {
    %c0_i32 = arith.constant 0 : i32
    %c0_i32_0 = arith.constant 0 : i32
    %c0_i32_1 = arith.constant 0 : i32
    return %c0_i32, %c0_i32_0 : i32, i32
  }
  func.func @transform_5(%arg0: i32) -> (i32, i32) {
    %c0_i32 = arith.constant 0 : i32
    %c0_i32_0 = arith.constant 0 : i32
    %c0_i32_1 = arith.constant 0 : i32
    return %c0_i32, %c0_i32_0 : i32, i32
  }
  func.func @transform_6(%arg0: i32) -> (i32, i32) {
    %c0_i32 = arith.constant 0 : i32
    %c0_i32_0 = arith.constant 0 : i32
    %c0_i32_1 = arith.constant 0 : i32
    return %c0_i32, %c0_i32_0 : i32, i32
  }
  func.func @transform_7(%arg0: i32) -> (i32, i32) {
    %c0_i32 = arith.constant 0 : i32
    %c0_i32_0 = arith.constant 0 : i32
    %c0_i32_1 = arith.constant 0 : i32
    return %c0_i32, %c0_i32_0 : i32, i32
  }
  func.func @transform_8(%arg0: i32) -> (i32, i32) {
    %c0_i32 = arith.constant 0 : i32
    %c0_i32_0 = arith.constant 0 : i32
    %c0_i32_1 = arith.constant 0 : i32
    return %c0_i32, %c0_i32_0 : i32, i32
  }
  func.func @transform_9(%arg0: i32) -> (i32, i32, i32) {
    %c0_i32 = arith.constant 0 : i32
    %c0_i32_0 = arith.constant 0 : i32
    %c0_i32_1 = arith.constant 0 : i32
    %c0_i32_2 = arith.constant 0 : i32
    return %c0_i32, %c0_i32_0, %c0_i32_1 : i32, i32, i32
  }
  func.func @transform_10(%arg0: i32) -> (i32, i32) {
    %c0_i32 = arith.constant 0 : i32
    %c0_i32_0 = arith.constant 0 : i32
    %c0_i32_1 = arith.constant 0 : i32
    return %c0_i32, %c0_i32_0 : i32, i32
  }
  func.func @transform_11(%arg0: i32) -> (i32, i32, i32) {
    %c0_i32 = arith.constant 0 : i32
    %c0_i32_0 = arith.constant 0 : i32
    %c0_i32_1 = arith.constant 0 : i32
    %c0_i32_2 = arith.constant 0 : i32
    return %c0_i32, %c0_i32_0, %c0_i32_1 : i32, i32, i32
  }
  func.func @transform_12(%arg0: i32) -> (i32, i32) {
    %c0_i32 = arith.constant 0 : i32
    %c0_i32_0 = arith.constant 0 : i32
    %c0_i32_1 = arith.constant 0 : i32
    return %c0_i32, %c0_i32_0 : i32, i32
  }
  func.func @transform_13(%arg0: i32) -> (i32, i32) {
    %c0_i32 = arith.constant 0 : i32
    %c0_i32_0 = arith.constant 0 : i32
    %c0_i32_1 = arith.constant 0 : i32
    return %c0_i32, %c0_i32_0 : i32, i32
  }
  func.func @transform_14(%arg0: i32) -> (i32, i32) {
    %c0_i32 = arith.constant 0 : i32
    %c0_i32_0 = arith.constant 0 : i32
    %c0_i32_1 = arith.constant 0 : i32
    return %c0_i32, %c0_i32_0 : i32, i32
  }
  func.func @transform_15(%arg0: i32) -> (i32, i32) {
    %c0_i32 = arith.constant 0 : i32
    %c0_i32_0 = arith.constant 0 : i32
    %c0_i32_1 = arith.constant 0 : i32
    return %c0_i32, %c0_i32_0 : i32, i32
  }
  func.func @transform_16(%arg0: i32) -> (i32, i32) {
    %c0_i32 = arith.constant 0 : i32
    %c0_i32_0 = arith.constant 0 : i32
    %c0_i32_1 = arith.constant 0 : i32
    return %c0_i32, %c0_i32_0 : i32, i32
  }
  func.func @transform_17(%arg0: i32) -> (i32, i32, i32) {
    %c0_i32 = arith.constant 0 : i32
    %c0_i32_0 = arith.constant 0 : i32
    %c0_i32_1 = arith.constant 0 : i32
    %c0_i32_2 = arith.constant 0 : i32
    return %c0_i32, %c0_i32_0, %c0_i32_1 : i32, i32, i32
  }
  func.func @transform_18(%arg0: i32) -> (i32, i32) {
    %c0_i32 = arith.constant 0 : i32
    %c0_i32_0 = arith.constant 0 : i32
    %c0_i32_1 = arith.constant 0 : i32
    return %c0_i32, %c0_i32_0 : i32, i32
  }
  func.func @transform_19(%arg0: i32) -> (i32, i32, i32) {
    %c0_i32 = arith.constant 0 : i32
    %c0_i32_0 = arith.constant 0 : i32
    %c0_i32_1 = arith.constant 0 : i32
    %c0_i32_2 = arith.constant 0 : i32
    return %c0_i32, %c0_i32_0, %c0_i32_1 : i32, i32, i32
  }
  func.func @transform_20(%arg0: i32) -> (i32, i32) {
    %c0_i32 = arith.constant 0 : i32
    %c0_i32_0 = arith.constant 0 : i32
    %c0_i32_1 = arith.constant 0 : i32
    return %c0_i32, %c0_i32_0 : i32, i32
  }
  func.func @transform_21(%arg0: i32) -> (i32, i32) {
    %c0_i32 = arith.constant 0 : i32
    %c0_i32_0 = arith.constant 0 : i32
    %c0_i32_1 = arith.constant 0 : i32
    return %c0_i32, %c0_i32_0 : i32, i32
  }
  func.func @transform_22(%arg0: i32) -> (i32, i32) {
    %c0_i32 = arith.constant 0 : i32
    %c0_i32_0 = arith.constant 0 : i32
    %c0_i32_1 = arith.constant 0 : i32
    return %c0_i32, %c0_i32_0 : i32, i32
  }
  func.func @transform_23(%arg0: i32) -> (i32, i32, i32) {
    %c0_i32 = arith.constant 0 : i32
    %c0_i32_0 = arith.constant 0 : i32
    %c0_i32_1 = arith.constant 0 : i32
    %c0_i32_2 = arith.constant 0 : i32
    return %c0_i32, %c0_i32_0, %c0_i32_1 : i32, i32, i32
  }
  func.func @transform_24(%arg0: i32) -> (i32, i32, i32) {
    %c0_i32 = arith.constant 0 : i32
    %c0_i32_0 = arith.constant 0 : i32
    %c0_i32_1 = arith.constant 0 : i32
    %c0_i32_2 = arith.constant 0 : i32
    return %c0_i32, %c0_i32_0, %c0_i32_1 : i32, i32, i32
  }
  func.func @transform_25(%arg0: i32) -> (i32, i32) {
    %c0_i32 = arith.constant 0 : i32
    %c0_i32_0 = arith.constant 0 : i32
    %c0_i32_1 = arith.constant 0 : i32
    return %c0_i32, %c0_i32_0 : i32, i32
  }
  func.func @transform_26(%arg0: i32) -> (i32, i32, i32) {
    %c0_i32 = arith.constant 0 : i32
    %c0_i32_0 = arith.constant 0 : i32
    %c0_i32_1 = arith.constant 0 : i32
    %c0_i32_2 = arith.constant 0 : i32
    return %c0_i32, %c0_i32_0, %c0_i32_1 : i32, i32, i32
  }
  func.func @transform_27(%arg0: i32) -> (i32, i32) {
    %c0_i32 = arith.constant 0 : i32
    %c0_i32_0 = arith.constant 0 : i32
    %c0_i32_1 = arith.constant 0 : i32
    return %c0_i32, %c0_i32_0 : i32, i32
  }
  func.func @transform_28(%arg0: i32) -> (i32, i32) {
    %c0_i32 = arith.constant 0 : i32
    %c0_i32_0 = arith.constant 0 : i32
    %c0_i32_1 = arith.constant 0 : i32
    return %c0_i32, %c0_i32_0 : i32, i32
  }
  func.func @transform_29(%arg0: i32) -> (i32, i32) {
    %c0_i32 = arith.constant 0 : i32
    %c0_i32_0 = arith.constant 0 : i32
    %c0_i32_1 = arith.constant 0 : i32
    return %c0_i32, %c0_i32_0 : i32, i32
  }
  func.func @transform_30(%arg0: i32) -> (i32, i32, i32) {
    %c0_i32 = arith.constant 0 : i32
    %c0_i32_0 = arith.constant 0 : i32
    %c0_i32_1 = arith.constant 0 : i32
    return %arg0, %c0_i32, %c0_i32_0 : i32, i32, i32
  }
}

</mosaic_0001>

<llo_original>
// kernel: unet_forward_fused.1
$region0: #{unet_forward_fused.1}
  #allocation0 [shape = 'u32[]', space=smem, size = 0x4, offset = 0x4, fixed_abs, tag = 'smem constant byte address 0x4 - core index']
  #allocation1 [shape = 'u32[144,128]{1,0:T(1,128)}', space=vmem, size = 0x12000, scoped, tag = 'internal scratch']
  #allocation2 [shape = 'f32[25,128]{1,0:T(8,128)}', space=vmem, size = 0x4000, scoped, tag = 'scratch operand']
  %s0 = inlined_call_operand.smem [shape: u32[31], index: -1, kind: input, shape index: {}]
  %s1 = sld [smem:[%s0]]
  %s2 = scalar_lea.smem %s0, 1
  %s3 = sld [smem:[%s2]]
  %s4 = scalar_lea.smem %s0, 2
  %s5 = sld [smem:[%s4]]
  %s6 = scalar_lea.smem %s0, 3
  %s7 = sld [smem:[%s6]]
  %s8 = scalar_lea.smem %s0, 4
  %s9 = sld [smem:[%s8]]
  %s10 = scalar_lea.smem %s0, 5
  %s11 = sld [smem:[%s10]]
  %s12 = scalar_lea.smem %s0, 6
  %s13 = sld [smem:[%s12]]
  %s14 = scalar_lea.smem %s0, 7
  %s15 = sld [smem:[%s14]]
  %s16 = scalar_lea.smem %s0, 8
  %s17 = sld [smem:[%s16]]
  %s18 = scalar_lea.smem %s0, 9
  %s19 = sld [smem:[%s18]]
  %s20 = scalar_lea.smem %s0, 10
  %s21 = sld [smem:[%s20]]
  %s22 = scalar_lea.smem %s0, 11
  %s23 = sld [smem:[%s22]]
  %s24 = scalar_lea.smem %s0, 12
  %s25 = sld [smem:[%s24]]
  %s26 = scalar_lea.smem %s0, 13
  %s27 = sld [smem:[%s26]]
  %s28 = scalar_lea.smem %s0, 14
  %s29 = sld [smem:[%s28]]
  %s30 = scalar_lea.smem %s0, 15
  %s31 = sld [smem:[%s30]]
  %s32 = scalar_lea.smem %s0, 16
  %s33 = sld [smem:[%s32]]
  %s34 = scalar_lea.smem %s0, 17
  %s35 = sld [smem:[%s34]]
  %s36 = scalar_lea.smem %s0, 18
  %s37 = sld [smem:[%s36]]
  %s38 = scalar_lea.smem %s0, 19
  %s39 = sld [smem:[%s38]]
  %s40 = scalar_lea.smem %s0, 20
  %s41 = sld [smem:[%s40]]
  %s42 = scalar_lea.smem %s0, 21
  %s43 = sld [smem:[%s42]]
  %s44 = scalar_lea.smem %s0, 22
  %s45 = sld [smem:[%s44]]
  %s46 = scalar_lea.smem %s0, 23
  %s47 = sld [smem:[%s46]]
  %s48 = scalar_lea.smem %s0, 24
  %s49 = sld [smem:[%s48]]
  %s50 = scalar_lea.smem %s0, 25
  %s51 = sld [smem:[%s50]]
  %s52 = scalar_lea.smem %s0, 26
  %s53 = sld [smem:[%s52]]
  %s54 = scalar_lea.smem %s0, 27
  %s55 = sld [smem:[%s54]]
  %s56 = scalar_lea.smem %s0, 28
  %s57 = sld [smem:[%s56]]
  %s58 = scalar_lea.smem %s0, 29
  %s59 = sld [smem:[%s58]]
  %s60 = scalar_lea.smem %s0, 30
  %s61 = sld [smem:[%s60]]
  %s62 = sld [smem:[#allocation0]]
  $region233: #{unet_forward_fused.1} parent=0
    _
  %s64 = ssub.s32 1, %s62
  %s65 = scalar_select 0, %s64, %s62
  $region1: #{unet_forward_fused.1} parent=0
    #allocation3 [shape = 'u8[73728]{0}', space=vmem, size = 0x12000, scoped, tag = 'input window, operand 1, single buffered']
    #allocation4 [shape = 's32[2]{0}', space=sflag, size = 0x8, scoped, tag = 'scoped memory for unet_forward_fused.1']
    #allocation5 [shape = 'u8[512]{0}', space=vmem, size = 0x400, scoped, tag = 'input window, operand 2, single buffered']
    #allocation6 [shape = 's32[1]{0}', space=sflag, size = 0x4, scoped, tag = 'scoped memory for unet_forward_fused.1']
    #allocation7 [shape = 'u8[512]{0}', space=vmem, size = 0x400, scoped, tag = 'input window, operand 4, single buffered']
    #allocation8 [shape = 'u8[4096]{0}', space=vmem, size = 0x1000, scoped, tag = 'input window, operand 5, single buffered']
    #allocation9 [shape = 's32[1]{0}', space=sflag, size = 0x4, scoped, tag = 'scoped memory for unet_forward_fused.1']
    #allocation10 [shape = 'u8[4096]{0}', space=vmem, size = 0x1000, scoped, tag = 'input window, operand 6, single buffered']
    #allocation11 [shape = 'u8[98304]{0}', space=vmem, size = 0x18000, scoped, tag = 'input window, operand 9, single buffered']
    #allocation12 [shape = 's32[1]{0}', space=sflag, size = 0x4, scoped, tag = 'scoped memory for unet_forward_fused.1']
    #allocation13 [shape = 'u8[512]{0}', space=vmem, size = 0x400, scoped, tag = 'input window, operand 10, single buffered']
    #allocation14 [shape = 'u8[512]{0}', space=vmem, size = 0x400, scoped, tag = 'input window, operand 12, single buffered']
    #allocation15 [shape = 's32[1]{0}', space=sflag, size = 0x4, scoped, tag = 'scoped memory for unet_forward_fused.1']
    #allocation16 [shape = 'u8[2048]{0}', space=vmem, size = 0x800, scoped, tag = 'input window, operand 13, single buffered']
    #allocation17 [shape = 'u8[2048]{0}', space=vmem, size = 0x800, scoped, tag = 'input window, operand 14, single buffered']
    #allocation18 [shape = 's32[1]{0}', space=sflag, size = 0x4, scoped, tag = 'scoped memory for unet_forward_fused.1']
    #allocation19 [shape = 'u8[98304]{0}', space=vmem, size = 0x18000, scoped, tag = 'input window, operand 17, single buffered']
    #allocation20 [shape = 'u8[512]{0}', space=vmem, size = 0x400, scoped, tag = 'input window, operand 18, single buffered']
    #allocation21 [shape = 's32[1]{0}', space=sflag, size = 0x4, scoped, tag = 'scoped memory for unet_forward_fused.1']
    #allocation22 [shape = 'u8[98304]{0}', space=vmem, size = 0x18000, scoped, tag = 'input window, operand 19, single buffered']
    #allocation23 [shape = 'u8[512]{0}', space=vmem, size = 0x400, scoped, tag = 'input window, operand 20, single buffered']
    #allocation24 [shape = 's32[1]{0}', space=sflag, size = 0x4, scoped, tag = 'scoped memory for unet_forward_fused.1']
    #allocation25 [shape = 'u8[32768]{0}', space=vmem, size = 0x8000, scoped, tag = 'input window, operand 22, single buffered']
    #allocation26 [shape = 'u8[196608]{0}', space=vmem, size = 0x30000, scoped, tag = 'input window, operand 24, single buffered']
    #allocation27 [shape = 's32[1]{0}', space=sflag, size = 0x4, scoped, tag = 'scoped memory for unet_forward_fused.1']
    #allocation28 [shape = 'u8[512]{0}', space=vmem, size = 0x400, scoped, tag = 'input window, operand 25, single buffered']
    #allocation29 [shape = 'u8[196608]{0}', space=vmem, size = 0x30000, scoped, tag = 'input window, operand 26, single buffered']
    #allocation30 [shape = 's32[1]{0}', space=sflag, size = 0x4, scoped, tag = 'scoped memory for unet_forward_fused.1']
    #allocation31 [shape = 'u8[512]{0}', space=vmem, size = 0x400, scoped, tag = 'input window, operand 27, single buffered']
    #allocation32 [shape = 'u8[512]{0}', space=vmem, size = 0x400, scoped, tag = 'input window, operand 29, single buffered']
    #allocation33 [shape = 's32[1]{0}', space=sflag, size = 0x4, scoped, tag = 'scoped memory for unet_forward_fused.1']
    %66 = vsyncpa [#allocation4], 0
    %67 = vsyncpa [#allocation6], 0
    %68 = vsyncpa [#allocation9], 0
    %69 = vsyncpa [#allocation12], 0
    %70 = vsyncpa [#allocation15], 0
    %71 = vsyncpa [#allocation18], 0
    %72 = vsyncpa [#allocation21], 0
    %73 = vsyncpa [#allocation24], 0
    %74 = vsyncpa [#allocation27], 0
    %75 = vsyncpa [#allocation30], 0
    %76 = vsyncpa [#allocation33], 0
    loop: start=0, step=1, limit=4
    $region2: #{unet_forward_fused.1} parent=1 // loop_pre_header
      _
    $region3: #{unet_forward_fused.1} parent=1 // loop_header
      %s78 = sphi 0, %s82
      %p79 = scmp.ge.s32.totalorder %s78, 4
      %s88 = sphi 0, %s90
      %s91 = sphi 0, %s88
      %s92 = sphi 0, %s91
      %s108 = sphi 0, %s92
      %s112 = sphi 0, %s112
      %s114 = sphi 0, %s112
      %s115 = sphi 0, %s114
      %s129 = sphi 0, %s115
      %s133 = sphi 0, %s133
      %s135 = sphi 0, %s133
      %s136 = sphi 0, %s135
      %s150 = sphi 0, %s136
      %s154 = sphi 0, %s154
      %s156 = sphi 0, %s154
      %s157 = sphi 0, %s156
      %s171 = sphi 0, %s157
      %s175 = sphi 0, %s175
      %s177 = sphi 0, %s175
      %s178 = sphi 0, %s177
      %s192 = sphi 0, %s178
      %s196 = sphi 0, %s196
      %s198 = sphi 0, %s196
      %s199 = sphi 0, %s198
      %s213 = sphi 0, %s199
      %s217 = sphi 0, %s217
      %s219 = sphi 0, %s217
      %s220 = sphi 0, %s219
      %s234 = sphi 0, %s220
      %s238 = sphi 0, %s238
      %s240 = sphi 0, %s238
      %s241 = sphi 0, %s240
      %s255 = sphi 0, %s241
      %s259 = sphi 0, %s259
      %s261 = sphi 0, %s259
      %s262 = sphi 0, %s261
      %s276 = sphi 0, %s262
      %s280 = sphi 0, %s280
      %s282 = sphi 0, %s280
      %s283 = sphi 0, %s282
      %s297 = sphi 0, %s283
      %s301 = sphi 0, %s301
      %s303 = sphi 0, %s301
      %s304 = sphi 0, %s303
      %s318 = sphi 0, %s304
      %s322 = sphi 0, %s322
      %s324 = sphi 0, %s322
      %s325 = sphi 0, %s324
      %s339 = sphi 0, %s325
      %s343 = sphi 0, %s343
      %s345 = sphi 0, %s343
      %s346 = sphi 0, %s345
      %s360 = sphi 0, %s346
      %s364 = sphi 0, %s364
      %s366 = sphi 0, %s364
      %s367 = sphi 0, %s366
      %s381 = sphi 0, %s367
      %s385 = sphi 0, %s385
      %s387 = sphi 0, %s385
      %s388 = sphi 0, %s387
      %s402 = sphi 0, %s388
      %s406 = sphi 0, %s406
      %s408 = sphi 0, %s406
      %s409 = sphi 0, %s408
      %s423 = sphi 0, %s409
      %s427 = sphi 0, %s427
      %s429 = sphi 0, %s427
      %s430 = sphi 0, %s429
      %s444 = sphi 0, %s430
      %s448 = sphi 0, %s448
      %s450 = sphi 0, %s448
      %s451 = sphi 0, %s450
      %s465 = sphi 0, %s451
      %s469 = sphi 0, %s469
      %s471 = sphi 0, %s469
      %s472 = sphi 0, %s471
      %s486 = sphi 0, %s472
      %s490 = sphi 0, %s490
      %s492 = sphi 0, %s490
      %s493 = sphi 0, %s492
      %s507 = sphi 0, %s493
      %s511 = sphi 0, %s511
      %s513 = sphi 0, %s511
      %s514 = sphi 0, %s513
      %s528 = sphi 0, %s514
      %s532 = sphi 0, %s532
      %s534 = sphi 0, %s532
      %s535 = sphi 0, %s534
      %s549 = sphi 0, %s535
      %s553 = sphi 0, %s553
      %s555 = sphi 0, %s553
      %s556 = sphi 0, %s555
      %s570 = sphi 0, %s556
      %s574 = sphi 0, %s574
      %s576 = sphi 0, %s574
      %s577 = sphi 0, %s576
      %s591 = sphi 0, %s577
      %s595 = sphi 0, %s595
      %s597 = sphi 0, %s595
      %s598 = sphi 0, %s597
      %s612 = sphi 0, %s598
      %s616 = sphi 0, %s616
      %s618 = sphi 0, %s616
      %s619 = sphi 0, %s618
      %s633 = sphi 0, %s619
      %s637 = sphi 0, %s637
      %s639 = sphi 0, %s637
      %s640 = sphi 0, %s639
      %s654 = sphi 0, %s640
      %s658 = sphi 0, %s658
      %s660 = sphi 0, %s658
      %s661 = sphi 0, %s660
      %s675 = sphi 0, %s661
      %s679 = sphi 0, %s679
      %s681 = sphi 0, %s679
      %s682 = sphi 0, %s681
      %s696 = sphi 0, %s682
      %s700 = sphi 0, %s700
      %s702 = sphi 0, %s700
      %s703 = sphi 0, %s702
      %s717 = sphi 0, %s703
      %s723 = sphi 0, %s725
      %s726 = sphi 0, %s723
      %s727 = sphi 0, %s726
      %s743 = sphi 0, %s727
    $region4: #{unet_forward_fused.1} parent=1 // loop_header_branch
      %81 = sbr.rel (%p79) target = $region8
    $region5: #{unet_forward_fused.1} parent=1 // loop_body
      %s83 = ssub.s32 %s78, 1
      %s84 = ssub.s32 %s78, 2
      %s85 = sadd.s32 %s78, 1
      %s86 = ssub.s32 %s78, %s85
      %p87 = scmp.eq.s32.totalorder %s86, 0
      %s89 = sadd.s32 %s88, 1
      %s90 = scalar_select %p87, %s88, %s89
      %p93 = pneg %p87
      %p94 = scmp.eq.s32.totalorder %s78, 1
      %p95 = por %p93, %p94
      %p96 = scmp.ne.s32.totalorder %s88, %s91
      %p97 = scmp.eq.s32.totalorder %s78, 0
      %p98 = por %p96, %p97
      %p99 = scmp.ne.s32.totalorder %s88, %s91
      %p100 = scmp.eq.s32.totalorder %s83, 1
      %p101 = por %p99, %p100
      %p102 = scmp.ne.s32.totalorder %s91, %s92
      %p103 = scmp.eq.s32.totalorder %s83, 0
      %p104 = por %p102, %p103
      %p105 = scmp.ne.s32.totalorder %s91, %s92
      %p106 = scmp.eq.s32.totalorder %s84, 1
      %p107 = por %p105, %p106
      %p109 = scmp.ne.s32.totalorder %s92, %s108
      %p110 = scmp.eq.s32.totalorder %s84, 0
      %p111 = por %p109, %p110
      %s113 = sadd.s32 %s112, 1
      %p116 = scmp.eq.s32.totalorder %s78, 1
      %p117 = scmp.ne.s32.totalorder %s112, %s114
      %p118 = scmp.eq.s32.totalorder %s78, 0
      %p119 = por %p117, %p118
      %p120 = scmp.ne.s32.totalorder %s112, %s114
      %p121 = scmp.eq.s32.totalorder %s83, 1
      %p122 = por %p120, %p121
      %p123 = scmp.ne.s32.totalorder %s114, %s115
      %p124 = scmp.eq.s32.totalorder %s83, 0
      %p125 = por %p123, %p124
      %p126 = scmp.ne.s32.totalorder %s114, %s115
      %p127 = scmp.eq.s32.totalorder %s84, 1
      %p128 = por %p126, %p127
      %p130 = scmp.ne.s32.totalorder %s115, %s129
      %p131 = scmp.eq.s32.totalorder %s84, 0
      %p132 = por %p130, %p131
      %s134 = sadd.s32 %s133, 1
      %p137 = scmp.eq.s32.totalorder %s78, 1
      %p138 = scmp.ne.s32.totalorder %s133, %s135
      %p139 = scmp.eq.s32.totalorder %s78, 0
      %p140 = por %p138, %p139
      %p141 = scmp.ne.s32.totalorder %s133, %s135
      %p142 = scmp.eq.s32.totalorder %s83, 1
      %p143 = por %p141, %p142
      %p144 = scmp.ne.s32.totalorder %s135, %s136
      %p145 = scmp.eq.s32.totalorder %s83, 0
      %p146 = por %p144, %p145
      %p147 = scmp.ne.s32.totalorder %s135, %s136
      %p148 = scmp.eq.s32.totalorder %s84, 1
      %p149 = por %p147, %p148
      %p151 = scmp.ne.s32.totalorder %s136, %s150
      %p152 = scmp.eq.s32.totalorder %s84, 0
      %p153 = por %p151, %p152
      %s155 = sadd.s32 %s154, 1
      %p158 = scmp.eq.s32.totalorder %s78, 1
      %p159 = scmp.ne.s32.totalorder %s154, %s156
      %p160 = scmp.eq.s32.totalorder %s78, 0
      %p161 = por %p159, %p160
      %p162 = scmp.ne.s32.totalorder %s154, %s156
      %p163 = scmp.eq.s32.totalorder %s83, 1
      %p164 = por %p162, %p163
      %p165 = scmp.ne.s32.totalorder %s156, %s157
      %p166 = scmp.eq.s32.totalorder %s83, 0
      %p167 = por %p165, %p166
      %p168 = scmp.ne.s32.totalorder %s156, %s157
      %p169 = scmp.eq.s32.totalorder %s84, 1
      %p170 = por %p168, %p169
      %p172 = scmp.ne.s32.totalorder %s157, %s171
      %p173 = scmp.eq.s32.totalorder %s84, 0
      %p174 = por %p172, %p173
      %s176 = sadd.s32 %s175, 1
      %p179 = scmp.eq.s32.totalorder %s78, 1
      %p180 = scmp.ne.s32.totalorder %s175, %s177
      %p181 = scmp.eq.s32.totalorder %s78, 0
      %p182 = por %p180, %p181
      %p183 = scmp.ne.s32.totalorder %s175, %s177
      %p184 = scmp.eq.s32.totalorder %s83, 1
      %p185 = por %p183, %p184
      %p186 = scmp.ne.s32.totalorder %s177, %s178
      %p187 = scmp.eq.s32.totalorder %s83, 0
      %p188 = por %p186, %p187
      %p189 = scmp.ne.s32.totalorder %s177, %s178
      %p190 = scmp.eq.s32.totalorder %s84, 1
      %p191 = por %p189, %p190
      %p193 = scmp.ne.s32.totalorder %s178, %s192
      %p194 = scmp.eq.s32.totalorder %s84, 0
      %p195 = por %p193, %p194
      %s197 = sadd.s32 %s196, 1
      %p200 = scmp.eq.s32.totalorder %s78, 1
      %p201 = scmp.ne.s32.totalorder %s196, %s198
      %p202 = scmp.eq.s32.totalorder %s78, 0
      %p203 = por %p201, %p202
      %p204 = scmp.ne.s32.totalorder %s196, %s198
      %p205 = scmp.eq.s32.totalorder %s83, 1
      %p206 = por %p204, %p205
      %p207 = scmp.ne.s32.totalorder %s198, %s199
      %p208 = scmp.eq.s32.totalorder %s83, 0
      %p209 = por %p207, %p208
      %p210 = scmp.ne.s32.totalorder %s198, %s199
      %p211 = scmp.eq.s32.totalorder %s84, 1
      %p212 = por %p210, %p211
      %p214 = scmp.ne.s32.totalorder %s199, %s213
      %p215 = scmp.eq.s32.totalorder %s84, 0
      %p216 = por %p214, %p215
      %s218 = sadd.s32 %s217, 1
      %p221 = scmp.eq.s32.totalorder %s78, 1
      %p222 = scmp.ne.s32.totalorder %s217, %s219
      %p223 = scmp.eq.s32.totalorder %s78, 0
      %p224 = por %p222, %p223
      %p225 = scmp.ne.s32.totalorder %s217, %s219
      %p226 = scmp.eq.s32.totalorder %s83, 1
      %p227 = por %p225, %p226
      %p228 = scmp.ne.s32.totalorder %s219, %s220
      %p229 = scmp.eq.s32.totalorder %s83, 0
      %p230 = por %p228, %p229
      %p231 = scmp.ne.s32.totalorder %s219, %s220
      %p232 = scmp.eq.s32.totalorder %s84, 1
      %p233 = por %p231, %p232
      %p235 = scmp.ne.s32.totalorder %s220, %s234
      %p236 = scmp.eq.s32.totalorder %s84, 0
      %p237 = por %p235, %p236
      %s239 = sadd.s32 %s238, 1
      %p242 = scmp.eq.s32.totalorder %s78, 1
      %p243 = scmp.ne.s32.totalorder %s238, %s240
      %p244 = scmp.eq.s32.totalorder %s78, 0
      %p245 = por %p243, %p244
      %p246 = scmp.ne.s32.totalorder %s238, %s240
      %p247 = scmp.eq.s32.totalorder %s83, 1
      %p248 = por %p246, %p247
      %p249 = scmp.ne.s32.totalorder %s240, %s241
      %p250 = scmp.eq.s32.totalorder %s83, 0
      %p251 = por %p249, %p250
      %p252 = scmp.ne.s32.totalorder %s240, %s241
      %p253 = scmp.eq.s32.totalorder %s84, 1
      %p254 = por %p252, %p253
      %p256 = scmp.ne.s32.totalorder %s241, %s255
      %p257 = scmp.eq.s32.totalorder %s84, 0
      %p258 = por %p256, %p257
      %s260 = sadd.s32 %s259, 1
      %p263 = scmp.eq.s32.totalorder %s78, 1
      %p264 = scmp.ne.s32.totalorder %s259, %s261
      %p265 = scmp.eq.s32.totalorder %s78, 0
      %p266 = por %p264, %p265
      %p267 = scmp.ne.s32.totalorder %s259, %s261
      %p268 = scmp.eq.s32.totalorder %s83, 1
      %p269 = por %p267, %p268
      %p270 = scmp.ne.s32.totalorder %s261, %s262
      %p271 = scmp.eq.s32.totalorder %s83, 0
      %p272 = por %p270, %p271
      %p273 = scmp.ne.s32.totalorder %s261, %s262
      %p274 = scmp.eq.s32.totalorder %s84, 1
      %p275 = por %p273, %p274
      %p277 = scmp.ne.s32.totalorder %s262, %s276
      %p278 = scmp.eq.s32.totalorder %s84, 0
      %p279 = por %p277, %p278
      %s281 = sadd.s32 %s280, 1
      %p284 = scmp.eq.s32.totalorder %s78, 1
      %p285 = scmp.ne.s32.totalorder %s280, %s282
      %p286 = scmp.eq.s32.totalorder %s78, 0
      %p287 = por %p285, %p286
      %p288 = scmp.ne.s32.totalorder %s280, %s282
      %p289 = scmp.eq.s32.totalorder %s83, 1
      %p290 = por %p288, %p289
      %p291 = scmp.ne.s32.totalorder %s282, %s283
      %p292 = scmp.eq.s32.totalorder %s83, 0
      %p293 = por %p291, %p292
      %p294 = scmp.ne.s32.totalorder %s282, %s283
      %p295 = scmp.eq.s32.totalorder %s84, 1
      %p296 = por %p294, %p295
      %p298 = scmp.ne.s32.totalorder %s283, %s297
      %p299 = scmp.eq.s32.totalorder %s84, 0
      %p300 = por %p298, %p299
      %s302 = sadd.s32 %s301, 1
      %p305 = scmp.eq.s32.totalorder %s78, 1
      %p306 = scmp.ne.s32.totalorder %s301, %s303
      %p307 = scmp.eq.s32.totalorder %s78, 0
      %p308 = por %p306, %p307
      %p309 = scmp.ne.s32.totalorder %s301, %s303
      %p310 = scmp.eq.s32.totalorder %s83, 1
      %p311 = por %p309, %p310
      %p312 = scmp.ne.s32.totalorder %s303, %s304
      %p313 = scmp.eq.s32.totalorder %s83, 0
      %p314 = por %p312, %p313
      %p315 = scmp.ne.s32.totalorder %s303, %s304
      %p316 = scmp.eq.s32.totalorder %s84, 1
      %p317 = por %p315, %p316
      %p319 = scmp.ne.s32.totalorder %s304, %s318
      %p320 = scmp.eq.s32.totalorder %s84, 0
      %p321 = por %p319, %p320
      %s323 = sadd.s32 %s322, 1
      %p326 = scmp.eq.s32.totalorder %s78, 1
      %p327 = scmp.ne.s32.totalorder %s322, %s324
      %p328 = scmp.eq.s32.totalorder %s78, 0
      %p329 = por %p327, %p328
      %p330 = scmp.ne.s32.totalorder %s322, %s324
      %p331 = scmp.eq.s32.totalorder %s83, 1
      %p332 = por %p330, %p331
      %p333 = scmp.ne.s32.totalorder %s324, %s325
      %p334 = scmp.eq.s32.totalorder %s83, 0
      %p335 = por %p333, %p334
      %p336 = scmp.ne.s32.totalorder %s324, %s325
      %p337 = scmp.eq.s32.totalorder %s84, 1
      %p338 = por %p336, %p337
      %p340 = scmp.ne.s32.totalorder %s325, %s339
      %p341 = scmp.eq.s32.totalorder %s84, 0
      %p342 = por %p340, %p341
      %s344 = sadd.s32 %s343, 1
      %p347 = scmp.eq.s32.totalorder %s78, 1
      %p348 = scmp.ne.s32.totalorder %s343, %s345
      %p349 = scmp.eq.s32.totalorder %s78, 0
      %p350 = por %p348, %p349
      %p351 = scmp.ne.s32.totalorder %s343, %s345
      %p352 = scmp.eq.s32.totalorder %s83, 1
      %p353 = por %p351, %p352
      %p354 = scmp.ne.s32.totalorder %s345, %s346
      %p355 = scmp.eq.s32.totalorder %s83, 0
      %p356 = por %p354, %p355
      %p357 = scmp.ne.s32.totalorder %s345, %s346
      %p358 = scmp.eq.s32.totalorder %s84, 1
      %p359 = por %p357, %p358
      %p361 = scmp.ne.s32.totalorder %s346, %s360
      %p362 = scmp.eq.s32.totalorder %s84, 0
      %p363 = por %p361, %p362
      %s365 = sadd.s32 %s364, 1
      %p368 = scmp.eq.s32.totalorder %s78, 1
      %p369 = scmp.ne.s32.totalorder %s364, %s366
      %p370 = scmp.eq.s32.totalorder %s78, 0
      %p371 = por %p369, %p370
      %p372 = scmp.ne.s32.totalorder %s364, %s366
      %p373 = scmp.eq.s32.totalorder %s83, 1
      %p374 = por %p372, %p373
      %p375 = scmp.ne.s32.totalorder %s366, %s367
      %p376 = scmp.eq.s32.totalorder %s83, 0
      %p377 = por %p375, %p376
      %p378 = scmp.ne.s32.totalorder %s366, %s367
      %p379 = scmp.eq.s32.totalorder %s84, 1
      %p380 = por %p378, %p379
      %p382 = scmp.ne.s32.totalorder %s367, %s381
      %p383 = scmp.eq.s32.totalorder %s84, 0
      %p384 = por %p382, %p383
      %s386 = sadd.s32 %s385, 1
      %p389 = scmp.eq.s32.totalorder %s78, 1
      %p390 = scmp.ne.s32.totalorder %s385, %s387
      %p391 = scmp.eq.s32.totalorder %s78, 0
      %p392 = por %p390, %p391
      %p393 = scmp.ne.s32.totalorder %s385, %s387
      %p394 = scmp.eq.s32.totalorder %s83, 1
      %p395 = por %p393, %p394
      %p396 = scmp.ne.s32.totalorder %s387, %s388
      %p397 = scmp.eq.s32.totalorder %s83, 0
      %p398 = por %p396, %p397
      %p399 = scmp.ne.s32.totalorder %s387, %s388
      %p400 = scmp.eq.s32.totalorder %s84, 1
      %p401 = por %p399, %p400
      %p403 = scmp.ne.s32.totalorder %s388, %s402
      %p404 = scmp.eq.s32.totalorder %s84, 0
      %p405 = por %p403, %p404
      %s407 = sadd.s32 %s406, 1
      %p410 = scmp.eq.s32.totalorder %s78, 1
      %p411 = scmp.ne.s32.totalorder %s406, %s408
      %p412 = scmp.eq.s32.totalorder %s78, 0
      %p413 = por %p411, %p412
      %p414 = scmp.ne.s32.totalorder %s406, %s408
      %p415 = scmp.eq.s32.totalorder %s83, 1
      %p416 = por %p414, %p415
      %p417 = scmp.ne.s32.totalorder %s408, %s409
      %p418 = scmp.eq.s32.totalorder %s83, 0
      %p419 = por %p417, %p418
      %p420 = scmp.ne.s32.totalorder %s408, %s409
      %p421 = scmp.eq.s32.totalorder %s84, 1
      %p422 = por %p420, %p421
      %p424 = scmp.ne.s32.totalorder %s409, %s423
      %p425 = scmp.eq.s32.totalorder %s84, 0
      %p426 = por %p424, %p425
      %s428 = sadd.s32 %s427, 1
      %p431 = scmp.eq.s32.totalorder %s78, 1
      %p432 = scmp.ne.s32.totalorder %s427, %s429
      %p433 = scmp.eq.s32.totalorder %s78, 0
      %p434 = por %p432, %p433
      %p435 = scmp.ne.s32.totalorder %s427, %s429
      %p436 = scmp.eq.s32.totalorder %s83, 1
      %p437 = por %p435, %p436
      %p438 = scmp.ne.s32.totalorder %s429, %s430
      %p439 = scmp.eq.s32.totalorder %s83, 0
      %p440 = por %p438, %p439
      %p441 = scmp.ne.s32.totalorder %s429, %s430
      %p442 = scmp.eq.s32.totalorder %s84, 1
      %p443 = por %p441, %p442
      %p445 = scmp.ne.s32.totalorder %s430, %s444
      %p446 = scmp.eq.s32.totalorder %s84, 0
      %p447 = por %p445, %p446
      %s449 = sadd.s32 %s448, 1
      %p452 = scmp.eq.s32.totalorder %s78, 1
      %p453 = scmp.ne.s32.totalorder %s448, %s450
      %p454 = scmp.eq.s32.totalorder %s78, 0
      %p455 = por %p453, %p454
      %p456 = scmp.ne.s32.totalorder %s448, %s450
      %p457 = scmp.eq.s32.totalorder %s83, 1
      %p458 = por %p456, %p457
      %p459 = scmp.ne.s32.totalorder %s450, %s451
      %p460 = scmp.eq.s32.totalorder %s83, 0
      %p461 = por %p459, %p460
      %p462 = scmp.ne.s32.totalorder %s450, %s451
      %p463 = scmp.eq.s32.totalorder %s84, 1
      %p464 = por %p462, %p463
      %p466 = scmp.ne.s32.totalorder %s451, %s465
      %p467 = scmp.eq.s32.totalorder %s84, 0
      %p468 = por %p466, %p467
      %s470 = sadd.s32 %s469, 1
      %p473 = scmp.eq.s32.totalorder %s78, 1
      %p474 = scmp.ne.s32.totalorder %s469, %s471
      %p475 = scmp.eq.s32.totalorder %s78, 0
      %p476 = por %p474, %p475
      %p477 = scmp.ne.s32.totalorder %s469, %s471
      %p478 = scmp.eq.s32.totalorder %s83, 1
      %p479 = por %p477, %p478
      %p480 = scmp.ne.s32.totalorder %s471, %s472
      %p481 = scmp.eq.s32.totalorder %s83, 0
      %p482 = por %p480, %p481
      %p483 = scmp.ne.s32.totalorder %s471, %s472
      %p484 = scmp.eq.s32.totalorder %s84, 1
      %p485 = por %p483, %p484
      %p487 = scmp.ne.s32.totalorder %s472, %s486
      %p488 = scmp.eq.s32.totalorder %s84, 0
      %p489 = por %p487, %p488
      %s491 = sadd.s32 %s490, 1
      %p494 = scmp.eq.s32.totalorder %s78, 1
      %p495 = scmp.ne.s32.totalorder %s490, %s492
      %p496 = scmp.eq.s32.totalorder %s78, 0
      %p497 = por %p495, %p496
      %p498 = scmp.ne.s32.totalorder %s490, %s492
      %p499 = scmp.eq.s32.totalorder %s83, 1
      %p500 = por %p498, %p499
      %p501 = scmp.ne.s32.totalorder %s492, %s493
      %p502 = scmp.eq.s32.totalorder %s83, 0
      %p503 = por %p501, %p502
      %p504 = scmp.ne.s32.totalorder %s492, %s493
      %p505 = scmp.eq.s32.totalorder %s84, 1
      %p506 = por %p504, %p505
      %p508 = scmp.ne.s32.totalorder %s493, %s507
      %p509 = scmp.eq.s32.totalorder %s84, 0
      %p510 = por %p508, %p509
      %s512 = sadd.s32 %s511, 1
      %p515 = scmp.eq.s32.totalorder %s78, 1
      %p516 = scmp.ne.s32.totalorder %s511, %s513
      %p517 = scmp.eq.s32.totalorder %s78, 0
      %p518 = por %p516, %p517
      %p519 = scmp.ne.s32.totalorder %s511, %s513
      %p520 = scmp.eq.s32.totalorder %s83, 1
      %p521 = por %p519, %p520
      %p522 = scmp.ne.s32.totalorder %s513, %s514
      %p523 = scmp.eq.s32.totalorder %s83, 0
      %p524 = por %p522, %p523
      %p525 = scmp.ne.s32.totalorder %s513, %s514
      %p526 = scmp.eq.s32.totalorder %s84, 1
      %p527 = por %p525, %p526
      %p529 = scmp.ne.s32.totalorder %s514, %s528
      %p530 = scmp.eq.s32.totalorder %s84, 0
      %p531 = por %p529, %p530
      %s533 = sadd.s32 %s532, 1
      %p536 = scmp.eq.s32.totalorder %s78, 1
      %p537 = scmp.ne.s32.totalorder %s532, %s534
      %p538 = scmp.eq.s32.totalorder %s78, 0
      %p539 = por %p537, %p538
      %p540 = scmp.ne.s32.totalorder %s532, %s534
      %p541 = scmp.eq.s32.totalorder %s83, 1
      %p542 = por %p540, %p541
      %p543 = scmp.ne.s32.totalorder %s534, %s535
      %p544 = scmp.eq.s32.totalorder %s83, 0
      %p545 = por %p543, %p544
      %p546 = scmp.ne.s32.totalorder %s534, %s535
      %p547 = scmp.eq.s32.totalorder %s84, 1
      %p548 = por %p546, %p547
      %p550 = scmp.ne.s32.totalorder %s535, %s549
      %p551 = scmp.eq.s32.totalorder %s84, 0
      %p552 = por %p550, %p551
      %s554 = sadd.s32 %s553, 1
      %p557 = scmp.eq.s32.totalorder %s78, 1
      %p558 = scmp.ne.s32.totalorder %s553, %s555
      %p559 = scmp.eq.s32.totalorder %s78, 0
      %p560 = por %p558, %p559
      %p561 = scmp.ne.s32.totalorder %s553, %s555
      %p562 = scmp.eq.s32.totalorder %s83, 1
      %p563 = por %p561, %p562
      %p564 = scmp.ne.s32.totalorder %s555, %s556
      %p565 = scmp.eq.s32.totalorder %s83, 0
      %p566 = por %p564, %p565
      %p567 = scmp.ne.s32.totalorder %s555, %s556
      %p568 = scmp.eq.s32.totalorder %s84, 1
      %p569 = por %p567, %p568
      %p571 = scmp.ne.s32.totalorder %s556, %s570
      %p572 = scmp.eq.s32.totalorder %s84, 0
      %p573 = por %p571, %p572
      %s575 = sadd.s32 %s574, 1
      %p578 = scmp.eq.s32.totalorder %s78, 1
      %p579 = scmp.ne.s32.totalorder %s574, %s576
      %p580 = scmp.eq.s32.totalorder %s78, 0
      %p581 = por %p579, %p580
      %p582 = scmp.ne.s32.totalorder %s574, %s576
      %p583 = scmp.eq.s32.totalorder %s83, 1
      %p584 = por %p582, %p583
      %p585 = scmp.ne.s32.totalorder %s576, %s577
      %p586 = scmp.eq.s32.totalorder %s83, 0
      %p587 = por %p585, %p586
      %p588 = scmp.ne.s32.totalorder %s576, %s577
      %p589 = scmp.eq.s32.totalorder %s84, 1
      %p590 = por %p588, %p589
      %p592 = scmp.ne.s32.totalorder %s577, %s591
      %p593 = scmp.eq.s32.totalorder %s84, 0
      %p594 = por %p592, %p593
      %s596 = sadd.s32 %s595, 1
      %p599 = scmp.eq.s32.totalorder %s78, 1
      %p600 = scmp.ne.s32.totalorder %s595, %s597
      %p601 = scmp.eq.s32.totalorder %s78, 0
      %p602 = por %p600, %p601
      %p603 = scmp.ne.s32.totalorder %s595, %s597
      %p604 = scmp.eq.s32.totalorder %s83, 1
      %p605 = por %p603, %p604
      %p606 = scmp.ne.s32.totalorder %s597, %s598
      %p607 = scmp.eq.s32.totalorder %s83, 0
      %p608 = por %p606, %p607
      %p609 = scmp.ne.s32.totalorder %s597, %s598
      %p610 = scmp.eq.s32.totalorder %s84, 1
      %p611 = por %p609, %p610
      %p613 = scmp.ne.s32.totalorder %s598, %s612
      %p614 = scmp.eq.s32.totalorder %s84, 0
      %p615 = por %p613, %p614
      %s617 = sadd.s32 %s616, 1
      %p620 = scmp.eq.s32.totalorder %s78, 1
      %p621 = scmp.ne.s32.totalorder %s616, %s618
      %p622 = scmp.eq.s32.totalorder %s78, 0
      %p623 = por %p621, %p622
      %p624 = scmp.ne.s32.totalorder %s616, %s618
      %p625 = scmp.eq.s32.totalorder %s83, 1
      %p626 = por %p624, %p625
      %p627 = scmp.ne.s32.totalorder %s618, %s619
      %p628 = scmp.eq.s32.totalorder %s83, 0
      %p629 = por %p627, %p628
      %p630 = scmp.ne.s32.totalorder %s618, %s619
      %p631 = scmp.eq.s32.totalorder %s84, 1
      %p632 = por %p630, %p631
      %p634 = scmp.ne.s32.totalorder %s619, %s633
      %p635 = scmp.eq.s32.totalorder %s84, 0
      %p636 = por %p634, %p635
      %s638 = sadd.s32 %s637, 1
      %p641 = scmp.eq.s32.totalorder %s78, 1
      %p642 = scmp.ne.s32.totalorder %s637, %s639
      %p643 = scmp.eq.s32.totalorder %s78, 0
      %p644 = por %p642, %p643
      %p645 = scmp.ne.s32.totalorder %s637, %s639
      %p646 = scmp.eq.s32.totalorder %s83, 1
      %p647 = por %p645, %p646
      %p648 = scmp.ne.s32.totalorder %s639, %s640
      %p649 = scmp.eq.s32.totalorder %s83, 0
      %p650 = por %p648, %p649
      %p651 = scmp.ne.s32.totalorder %s639, %s640
      %p652 = scmp.eq.s32.totalorder %s84, 1
      %p653 = por %p651, %p652
      %p655 = scmp.ne.s32.totalorder %s640, %s654
      %p656 = scmp.eq.s32.totalorder %s84, 0
      %p657 = por %p655, %p656
      %s659 = sadd.s32 %s658, 1
      %p662 = scmp.eq.s32.totalorder %s78, 1
      %p663 = scmp.ne.s32.totalorder %s658, %s660
      %p664 = scmp.eq.s32.totalorder %s78, 0
      %p665 = por %p663, %p664
      %p666 = scmp.ne.s32.totalorder %s658, %s660
      %p667 = scmp.eq.s32.totalorder %s83, 1
      %p668 = por %p666, %p667
      %p669 = scmp.ne.s32.totalorder %s660, %s661
      %p670 = scmp.eq.s32.totalorder %s83, 0
      %p671 = por %p669, %p670
      %p672 = scmp.ne.s32.totalorder %s660, %s661
      %p673 = scmp.eq.s32.totalorder %s84, 1
      %p674 = por %p672, %p673
      %p676 = scmp.ne.s32.totalorder %s661, %s675
      %p677 = scmp.eq.s32.totalorder %s84, 0
      %p678 = por %p676, %p677
      %s680 = sadd.s32 %s679, 1
      %p683 = scmp.eq.s32.totalorder %s78, 1
      %p684 = scmp.ne.s32.totalorder %s679, %s681
      %p685 = scmp.eq.s32.totalorder %s78, 0
      %p686 = por %p684, %p685
      %p687 = scmp.ne.s32.totalorder %s679, %s681
      %p688 = scmp.eq.s32.totalorder %s83, 1
      %p689 = por %p687, %p688
      %p690 = scmp.ne.s32.totalorder %s681, %s682
      %p691 = scmp.eq.s32.totalorder %s83, 0
      %p692 = por %p690, %p691
      %p693 = scmp.ne.s32.totalorder %s681, %s682
      %p694 = scmp.eq.s32.totalorder %s84, 1
      %p695 = por %p693, %p694
      %p697 = scmp.ne.s32.totalorder %s682, %s696
      %p698 = scmp.eq.s32.totalorder %s84, 0
      %p699 = por %p697, %p698
      %s701 = sadd.s32 %s700, 1
      %p704 = scmp.eq.s32.totalorder %s78, 1
      %p705 = scmp.ne.s32.totalorder %s700, %s702
      %p706 = scmp.eq.s32.totalorder %s78, 0
      %p707 = por %p705, %p706
      %p708 = scmp.ne.s32.totalorder %s700, %s702
      %p709 = scmp.eq.s32.totalorder %s83, 1
      %p710 = por %p708, %p709
      %p711 = scmp.ne.s32.totalorder %s702, %s703
      %p712 = scmp.eq.s32.totalorder %s83, 0
      %p713 = por %p711, %p712
      %p714 = scmp.ne.s32.totalorder %s702, %s703
      %p715 = scmp.eq.s32.totalorder %s84, 1
      %p716 = por %p714, %p715
      %p718 = scmp.ne.s32.totalorder %s703, %s717
      %p719 = scmp.eq.s32.totalorder %s84, 0
      %p720 = por %p718, %p719
      %s721 = ssub.s32 %s78, %s85
      %p722 = scmp.eq.s32.totalorder %s721, 0
      %s724 = sadd.s32 %s723, 1
      %s725 = scalar_select %p722, %s723, %s724
      %p728 = pneg %p722
      %p729 = scmp.eq.s32.totalorder %s78, 1
      %p730 = por %p728, %p729
      %p731 = scmp.ne.s32.totalorder %s723, %s726
      %p732 = scmp.eq.s32.totalorder %s78, 0
      %p733 = por %p731, %p732
      %p734 = scmp.ne.s32.totalorder %s723, %s726
      %p735 = scmp.eq.s32.totalorder %s83, 1
      %p736 = por %p734, %p735
      %p737 = scmp.ne.s32.totalorder %s726, %s727
      %p738 = scmp.eq.s32.totalorder %s83, 0
      %p739 = por %p737, %p738
      %p740 = scmp.ne.s32.totalorder %s726, %s727
      %p741 = scmp.eq.s32.totalorder %s84, 1
      %p742 = por %p740, %p741
      %p744 = scmp.ne.s32.totalorder %s727, %s743
      %p745 = scmp.eq.s32.totalorder %s84, 0
      %p746 = por %p744, %p745
      %p747 = scmp.le.s32.totalorder 1, %s78
      %p748 = scmp.lt.s32.totalorder %s78, 3
      %p749 = pnand %p747, %p748
      %p750 = pneg %p749
      // Predicated region
      $region9: #{unet_forward_fused.1} parent=5 // pred_check
        _
      $region10: #{unet_forward_fused.1} parent=5 // pred_check_branch
        %752 = sbr.rel (%p749) target = $region12
      $region11: #{unet_forward_fused.1} parent=5 // pred_region
        %s753 = ssub.s32 %s78, 1
        // Predicated region
        $region13: #{unet_forward_fused.1} parent=11 // pred_check
          %p754 = pneg %p125
        $region14: #{unet_forward_fused.1} parent=11 // pred_check_branch
          %756 = sbr.rel (%p754) target = $region16
        $region15: #{unet_forward_fused.1} parent=11 // pred_region
          %s758 = ssub.s32 2304, 2304
          %759 = vsyncadd [#allocation4], %s758
          %s760 = sshll.u32 [#allocation3], 4
          %s761 = int_to_ptr.vmem [resolvable:$true] %s760
          %766 = dma.hbm_to_vmem [thread:$0]  %s3, 2304, %s761, [#allocation4], 128, 128, 8
        $region16: #{unet_forward_fused.1} parent=11 // pred_fallthru
          _
        // Predicated region
        $region17: #{unet_forward_fused.1} parent=11 // pred_check
          %p767 = pneg %p146
        $region18: #{unet_forward_fused.1} parent=11 // pred_check_branch
          %769 = sbr.rel (%p767) target = $region20
        $region19: #{unet_forward_fused.1} parent=11 // pred_region
          %s771 = ssub.s32 16, 16
          %772 = vsyncadd [#allocation6], %s771
          %s774 = sshll.u32 [#allocation5], 4
          %s775 = int_to_ptr.vmem [resolvable:$true] %s774
          %777 = dma.hbm_to_vmem [thread:$0]  %s5, 16, %s775, [#allocation6]
        $region20: #{unet_forward_fused.1} parent=11 // pred_fallthru
          _
        // Predicated region
        $region21: #{unet_forward_fused.1} parent=11 // pred_check
          %p778 = pneg %p167
        $region22: #{unet_forward_fused.1} parent=11 // pred_check_branch
          %780 = sbr.rel (%p778) target = $region24
        $region23: #{unet_forward_fused.1} parent=11 // pred_region
          _
        $region24: #{unet_forward_fused.1} parent=11 // pred_fallthru
          _
        // Predicated region
        $region25: #{unet_forward_fused.1} parent=11 // pred_check
          %p781 = pneg %p188
        $region26: #{unet_forward_fused.1} parent=11 // pred_check_branch
          %783 = sbr.rel (%p781) target = $region28
        $region27: #{unet_forward_fused.1} parent=11 // pred_region
          %s785 = ssub.s32 16, 16
          %786 = vsyncadd [#allocation6], %s785
          %s788 = sshll.u32 [#allocation7], 4
          %s789 = int_to_ptr.vmem [resolvable:$true] %s788
          %791 = dma.hbm_to_vmem [thread:$0]  %s9, 16, %s789, [#allocation6]
        $region28: #{unet_forward_fused.1} parent=11 // pred_fallthru
          _
        // Predicated region
        $region29: #{unet_forward_fused.1} parent=11 // pred_check
          %p792 = pneg %p209
        $region30: #{unet_forward_fused.1} parent=11 // pred_check_branch
          %794 = sbr.rel (%p792) target = $region32
        $region31: #{unet_forward_fused.1} parent=11 // pred_region
          %s796 = ssub.s32 128, 128
          %797 = vsyncadd [#allocation9], %s796
          %s799 = sshll.u32 [#allocation8], 4
          %s800 = int_to_ptr.vmem [resolvable:$true] %s799
          %802 = dma.hbm_to_vmem [thread:$0]  %s11, 128, %s800, [#allocation9]
        $region32: #{unet_forward_fused.1} parent=11 // pred_fallthru
          _
        // Predicated region
        $region33: #{unet_forward_fused.1} parent=11 // pred_check
          %p803 = pneg %p230
        $region34: #{unet_forward_fused.1} parent=11 // pred_check_branch
          %805 = sbr.rel (%p803) target = $region36
        $region35: #{unet_forward_fused.1} parent=11 // pred_region
          %s807 = ssub.s32 128, 128
          %808 = vsyncadd [#allocation9], %s807
          %s810 = sshll.u32 [#allocation10], 4
          %s811 = int_to_ptr.vmem [resolvable:$true] %s810
          %813 = dma.hbm_to_vmem [thread:$0]  %s13, 128, %s811, [#allocation9]
        $region36: #{unet_forward_fused.1} parent=11 // pred_fallthru
          _
        // Predicated region
        $region37: #{unet_forward_fused.1} parent=11 // pred_check
          %p814 = pneg %p251
        $region38: #{unet_forward_fused.1} parent=11 // pred_check_branch
          %816 = sbr.rel (%p814) target = $region40
        $region39: #{unet_forward_fused.1} parent=11 // pred_region
          _
        $region40: #{unet_forward_fused.1} parent=11 // pred_fallthru
          _
        // Predicated region
        $region41: #{unet_forward_fused.1} parent=11 // pred_check
          %p817 = pneg %p272
        $region42: #{unet_forward_fused.1} parent=11 // pred_check_branch
          %819 = sbr.rel (%p817) target = $region44
        $region43: #{unet_forward_fused.1} parent=11 // pred_region
          _
        $region44: #{unet_forward_fused.1} parent=11 // pred_fallthru
          _
        // Predicated region
        $region45: #{unet_forward_fused.1} parent=11 // pred_check
          %p820 = pneg %p293
        $region46: #{unet_forward_fused.1} parent=11 // pred_check_branch
          %822 = sbr.rel (%p820) target = $region48
        $region47: #{unet_forward_fused.1} parent=11 // pred_region
          %s824 = ssub.s32 3072, 3072
          %825 = vsyncadd [#allocation12], %s824
          %s826 = sshll.u32 [#allocation11], 4
          %s827 = int_to_ptr.vmem [resolvable:$true] %s826
          %832 = dma.hbm_to_vmem [thread:$0]  %s19, 3072, %s827, [#allocation12], 128, 128, 8
        $region48: #{unet_forward_fused.1} parent=11 // pred_fallthru
          _
        // Predicated region
        $region49: #{unet_forward_fused.1} parent=11 // pred_check
          %p833 = pneg %p314
        $region50: #{unet_forward_fused.1} parent=11 // pred_check_branch
          %835 = sbr.rel (%p833) target = $region52
        $region51: #{unet_forward_fused.1} parent=11 // pred_region
          %s837 = ssub.s32 16, 16
          %838 = vsyncadd [#allocation12], %s837
          %s840 = sshll.u32 [#allocation13], 4
          %s841 = int_to_ptr.vmem [resolvable:$true] %s840
          %843 = dma.hbm_to_vmem [thread:$0]  %s21, 16, %s841, [#allocation12]
        $region52: #{unet_forward_fused.1} parent=11 // pred_fallthru
          _
        // Predicated region
        $region53: #{unet_forward_fused.1} parent=11 // pred_check
          %p844 = pneg %p335
        $region54: #{unet_forward_fused.1} parent=11 // pred_check_branch
          %846 = sbr.rel (%p844) target = $region56
        $region55: #{unet_forward_fused.1} parent=11 // pred_region
          _
        $region56: #{unet_forward_fused.1} parent=11 // pred_fallthru
          _
        // Predicated region
        $region57: #{unet_forward_fused.1} parent=11 // pred_check
          %p847 = pneg %p356
        $region58: #{unet_forward_fused.1} parent=11 // pred_check_branch
          %849 = sbr.rel (%p847) target = $region60
        $region59: #{unet_forward_fused.1} parent=11 // pred_region
          %s851 = ssub.s32 16, 16
          %852 = vsyncadd [#allocation15], %s851
          %s854 = sshll.u32 [#allocation14], 4
          %s855 = int_to_ptr.vmem [resolvable:$true] %s854
          %857 = dma.hbm_to_vmem [thread:$0]  %s25, 16, %s855, [#allocation15]
        $region60: #{unet_forward_fused.1} parent=11 // pred_fallthru
          _
        // Predicated region
        $region61: #{unet_forward_fused.1} parent=11 // pred_check
          %p858 = pneg %p377
        $region62: #{unet_forward_fused.1} parent=11 // pred_check_branch
          %860 = sbr.rel (%p858) target = $region64
        $region63: #{unet_forward_fused.1} parent=11 // pred_region
          %s862 = ssub.s32 64, 64
          %863 = vsyncadd [#allocation15], %s862
          %s865 = sshll.u32 [#allocation16], 4
          %s866 = int_to_ptr.vmem [resolvable:$true] %s865
          %868 = dma.hbm_to_vmem [thread:$0]  %s27, 64, %s866, [#allocation15]
        $region64: #{unet_forward_fused.1} parent=11 // pred_fallthru
          _
        // Predicated region
        $region65: #{unet_forward_fused.1} parent=11 // pred_check
          %p869 = pneg %p398
        $region66: #{unet_forward_fused.1} parent=11 // pred_check_branch
          %871 = sbr.rel (%p869) target = $region68
        $region67: #{unet_forward_fused.1} parent=11 // pred_region
          %s873 = ssub.s32 64, 64
          %874 = vsyncadd [#allocation18], %s873
          %s876 = sshll.u32 [#allocation17], 4
          %s877 = int_to_ptr.vmem [resolvable:$true] %s876
          %879 = dma.hbm_to_vmem [thread:$0]  %s29, 64, %s877, [#allocation18]
        $region68: #{unet_forward_fused.1} parent=11 // pred_fallthru
          _
        // Predicated region
        $region69: #{unet_forward_fused.1} parent=11 // pred_check
          %p880 = pneg %p419
        $region70: #{unet_forward_fused.1} parent=11 // pred_check_branch
          %882 = sbr.rel (%p880) target = $region72
        $region71: #{unet_forward_fused.1} parent=11 // pred_region
          _
        $region72: #{unet_forward_fused.1} parent=11 // pred_fallthru
          _
        // Predicated region
        $region73: #{unet_forward_fused.1} parent=11 // pred_check
          %p883 = pneg %p440
        $region74: #{unet_forward_fused.1} parent=11 // pred_check_branch
          %885 = sbr.rel (%p883) target = $region76
        $region75: #{unet_forward_fused.1} parent=11 // pred_region
          _
        $region76: #{unet_forward_fused.1} parent=11 // pred_fallthru
          _
        // Predicated region
        $region77: #{unet_forward_fused.1} parent=11 // pred_check
          %p886 = pneg %p461
        $region78: #{unet_forward_fused.1} parent=11 // pred_check_branch
          %888 = sbr.rel (%p886) target = $region80
        $region79: #{unet_forward_fused.1} parent=11 // pred_region
          %s890 = ssub.s32 3072, 3072
          %891 = vsyncadd [#allocation18], %s890
          %s892 = sshll.u32 [#allocation19], 4
          %s893 = int_to_ptr.vmem [resolvable:$true] %s892
          %898 = dma.hbm_to_vmem [thread:$0]  %s35, 3072, %s893, [#allocation18], 128, 128, 8
        $region80: #{unet_forward_fused.1} parent=11 // pred_fallthru
          _
        // Predicated region
        $region81: #{unet_forward_fused.1} parent=11 // pred_check
          %p899 = pneg %p482
        $region82: #{unet_forward_fused.1} parent=11 // pred_check_branch
          %901 = sbr.rel (%p899) target = $region84
        $region83: #{unet_forward_fused.1} parent=11 // pred_region
          %s903 = ssub.s32 16, 16
          %904 = vsyncadd [#allocation21], %s903
          %s906 = sshll.u32 [#allocation20], 4
          %s907 = int_to_ptr.vmem [resolvable:$true] %s906
          %909 = dma.hbm_to_vmem [thread:$0]  %s37, 16, %s907, [#allocation21]
        $region84: #{unet_forward_fused.1} parent=11 // pred_fallthru
          _
        // Predicated region
        $region85: #{unet_forward_fused.1} parent=11 // pred_check
          %p910 = pneg %p503
        $region86: #{unet_forward_fused.1} parent=11 // pred_check_branch
          %912 = sbr.rel (%p910) target = $region88
        $region87: #{unet_forward_fused.1} parent=11 // pred_region
          %s914 = ssub.s32 3072, 3072
          %915 = vsyncadd [#allocation21], %s914
          %s916 = sshll.u32 [#allocation22], 4
          %s917 = int_to_ptr.vmem [resolvable:$true] %s916
          %922 = dma.hbm_to_vmem [thread:$0]  %s39, 3072, %s917, [#allocation21], 128, 128, 8
        $region88: #{unet_forward_fused.1} parent=11 // pred_fallthru
          _
        // Predicated region
        $region89: #{unet_forward_fused.1} parent=11 // pred_check
          %p923 = pneg %p524
        $region90: #{unet_forward_fused.1} parent=11 // pred_check_branch
          %925 = sbr.rel (%p923) target = $region92
        $region91: #{unet_forward_fused.1} parent=11 // pred_region
          %s927 = ssub.s32 16, 16
          %928 = vsyncadd [#allocation24], %s927
          %s930 = sshll.u32 [#allocation23], 4
          %s931 = int_to_ptr.vmem [resolvable:$true] %s930
          %933 = dma.hbm_to_vmem [thread:$0]  %s41, 16, %s931, [#allocation24]
        $region92: #{unet_forward_fused.1} parent=11 // pred_fallthru
          _
        // Predicated region
        $region93: #{unet_forward_fused.1} parent=11 // pred_check
          %p934 = pneg %p545
        $region94: #{unet_forward_fused.1} parent=11 // pred_check_branch
          %936 = sbr.rel (%p934) target = $region96
        $region95: #{unet_forward_fused.1} parent=11 // pred_region
          _
        $region96: #{unet_forward_fused.1} parent=11 // pred_fallthru
          _
        // Predicated region
        $region97: #{unet_forward_fused.1} parent=11 // pred_check
          %p937 = pneg %p566
        $region98: #{unet_forward_fused.1} parent=11 // pred_check_branch
          %939 = sbr.rel (%p937) target = $region100
        $region99: #{unet_forward_fused.1} parent=11 // pred_region
          %s941 = ssub.s32 1024, 1024
          %942 = vsyncadd [#allocation24], %s941
          %s943 = sshll.u32 [#allocation25], 4
          %s944 = int_to_ptr.vmem [resolvable:$true] %s943
          %949 = dma.hbm_to_vmem [thread:$0]  %s45, 1024, %s944, [#allocation24], 128, 128, 8
        $region100: #{unet_forward_fused.1} parent=11 // pred_fallthru
          _
        // Predicated region
        $region101: #{unet_forward_fused.1} parent=11 // pred_check
          %p950 = pneg %p587
        $region102: #{unet_forward_fused.1} parent=11 // pred_check_branch
          %952 = sbr.rel (%p950) target = $region104
        $region103: #{unet_forward_fused.1} parent=11 // pred_region
          _
        $region104: #{unet_forward_fused.1} parent=11 // pred_fallthru
          _
        // Predicated region
        $region105: #{unet_forward_fused.1} parent=11 // pred_check
          %p953 = pneg %p608
        $region106: #{unet_forward_fused.1} parent=11 // pred_check_branch
          %955 = sbr.rel (%p953) target = $region108
        $region107: #{unet_forward_fused.1} parent=11 // pred_region
          %s957 = ssub.s32 6144, 6144
          %958 = vsyncadd [#allocation27], %s957
          %s959 = sshll.u32 [#allocation26], 4
          %s960 = int_to_ptr.vmem [resolvable:$true] %s959
          %965 = dma.hbm_to_vmem [thread:$0]  %s49, 6144, %s960, [#allocation27], 128, 128, 8
        $region108: #{unet_forward_fused.1} parent=11 // pred_fallthru
          _
        // Predicated region
        $region109: #{unet_forward_fused.1} parent=11 // pred_check
          %p966 = pneg %p629
        $region110: #{unet_forward_fused.1} parent=11 // pred_check_branch
          %968 = sbr.rel (%p966) target = $region112
        $region111: #{unet_forward_fused.1} parent=11 // pred_region
          %s970 = ssub.s32 16, 16
          %971 = vsyncadd [#allocation27], %s970
          %s973 = sshll.u32 [#allocation28], 4
          %s974 = int_to_ptr.vmem [resolvable:$true] %s973
          %976 = dma.hbm_to_vmem [thread:$0]  %s51, 16, %s974, [#allocation27]
        $region112: #{unet_forward_fused.1} parent=11 // pred_fallthru
          _
        // Predicated region
        $region113: #{unet_forward_fused.1} parent=11 // pred_check
          %p977 = pneg %p650
        $region114: #{unet_forward_fused.1} parent=11 // pred_check_branch
          %979 = sbr.rel (%p977) target = $region116
        $region115: #{unet_forward_fused.1} parent=11 // pred_region
          %s981 = ssub.s32 6144, 6144
          %982 = vsyncadd [#allocation30], %s981
          %s983 = sshll.u32 [#allocation29], 4
          %s984 = int_to_ptr.vmem [resolvable:$true] %s983
          %989 = dma.hbm_to_vmem [thread:$0]  %s53, 6144, %s984, [#allocation30], 128, 128, 8
        $region116: #{unet_forward_fused.1} parent=11 // pred_fallthru
          _
        // Predicated region
        $region117: #{unet_forward_fused.1} parent=11 // pred_check
          %p990 = pneg %p671
        $region118: #{unet_forward_fused.1} parent=11 // pred_check_branch
          %992 = sbr.rel (%p990) target = $region120
        $region119: #{unet_forward_fused.1} parent=11 // pred_region
          %s994 = ssub.s32 16, 16
          %995 = vsyncadd [#allocation30], %s994
          %s997 = sshll.u32 [#allocation31], 4
          %s998 = int_to_ptr.vmem [resolvable:$true] %s997
          %1000 = dma.hbm_to_vmem [thread:$0]  %s55, 16, %s998, [#allocation30]
        $region120: #{unet_forward_fused.1} parent=11 // pred_fallthru
          _
        // Predicated region
        $region121: #{unet_forward_fused.1} parent=11 // pred_check
          %p1001 = pneg %p692
        $region122: #{unet_forward_fused.1} parent=11 // pred_check_branch
          %1003 = sbr.rel (%p1001) target = $region124
        $region123: #{unet_forward_fused.1} parent=11 // pred_region
          _
        $region124: #{unet_forward_fused.1} parent=11 // pred_fallthru
          _
        // Predicated region
        $region125: #{unet_forward_fused.1} parent=11 // pred_check
          %p1004 = pneg %p713
        $region126: #{unet_forward_fused.1} parent=11 // pred_check_branch
          %1006 = sbr.rel (%p1004) target = $region128
        $region127: #{unet_forward_fused.1} parent=11 // pred_region
          %s1008 = ssub.s32 16, 16
          %1009 = vsyncadd [#allocation33], %s1008
          %s1011 = sshll.u32 [#allocation32], 4
          %s1012 = int_to_ptr.vmem [resolvable:$true] %s1011
          %1014 = dma.hbm_to_vmem [thread:$0]  %s59, 16, %s1012, [#allocation33]
        $region128: #{unet_forward_fused.1} parent=11 // pred_fallthru
          _
      $region12: #{unet_forward_fused.1} parent=5 // pred_fallthru
        _
      %p1015 = scmp.lt.s32.totalorder %s78, 2
      // Predicated region
      $region129: #{unet_forward_fused.1} parent=5 // pred_check
        %p1016 = pneg %p1015
      $region130: #{unet_forward_fused.1} parent=5 // pred_check_branch
        %1018 = sbr.rel (%p1016) target = $region132
      $region131: #{unet_forward_fused.1} parent=5 // pred_region
        // Predicated region
        $region133: #{unet_forward_fused.1} parent=131 // pred_check
          %p1019 = pneg %p98
        $region134: #{unet_forward_fused.1} parent=131 // pred_check_branch
          %1021 = sbr.rel (%p1019) target = $region136
        $region135: #{unet_forward_fused.1} parent=131 // pred_region
          %p1022 = scmp.lt.s32.totalorder %s78, 1
          %s1023 = scalar_select %p1022, %s78, 1
          %s1024 = smul.addr %s1023, 2
          %s1025 = smul.addr %s1024, 8
          %s1026 = scalar_lea.vmem %s1, %s1025
        $region136: #{unet_forward_fused.1} parent=131 // pred_fallthru
          _
      $region132: #{unet_forward_fused.1} parent=5 // pred_fallthru
        _
      %p1027 = scmp.le.s32.totalorder 1, %s78
      %p1028 = scmp.lt.s32.totalorder %s78, 3
      %p1029 = pnand %p1027, %p1028
      %p1030 = pneg %p1029
      // Predicated region
      $region137: #{unet_forward_fused.1} parent=5 // pred_check
        _
      $region138: #{unet_forward_fused.1} parent=5 // pred_check_branch
        %1032 = sbr.rel (%p1029) target = $region140
      $region139: #{unet_forward_fused.1} parent=5 // pred_region
        %s1033 = ssub.s32 %s78, 1
        // Predicated region
        $region141: #{unet_forward_fused.1} parent=139 // pred_check
          %p1034 = pneg %p125
        $region142: #{unet_forward_fused.1} parent=139 // pred_check_branch
          %1036 = sbr.rel (%p1034) target = $region144
        $region143: #{unet_forward_fused.1} parent=139 // pred_region
          %1037 = dma.done [#allocation4], 2304
        $region144: #{unet_forward_fused.1} parent=139 // pred_fallthru
          _
        // Predicated region
        $region145: #{unet_forward_fused.1} parent=139 // pred_check
          %p1038 = pneg %p146
        $region146: #{unet_forward_fused.1} parent=139 // pred_check_branch
          %1040 = sbr.rel (%p1038) target = $region148
        $region147: #{unet_forward_fused.1} parent=139 // pred_region
          %1041 = dma.done [#allocation6], 16
        $region148: #{unet_forward_fused.1} parent=139 // pred_fallthru
          _
        // Predicated region
        $region149: #{unet_forward_fused.1} parent=139 // pred_check
          %p1042 = pneg %p188
        $region150: #{unet_forward_fused.1} parent=139 // pred_check_branch
          %1044 = sbr.rel (%p1042) target = $region152
        $region151: #{unet_forward_fused.1} parent=139 // pred_region
          %1045 = dma.done [#allocation6], 16
        $region152: #{unet_forward_fused.1} parent=139 // pred_fallthru
          _
        // Predicated region
        $region153: #{unet_forward_fused.1} parent=139 // pred_check
          %p1046 = pneg %p209
        $region154: #{unet_forward_fused.1} parent=139 // pred_check_branch
          %1048 = sbr.rel (%p1046) target = $region156
        $region155: #{unet_forward_fused.1} parent=139 // pred_region
          %1049 = dma.done [#allocation9], 128
        $region156: #{unet_forward_fused.1} parent=139 // pred_fallthru
          _
        // Predicated region
        $region157: #{unet_forward_fused.1} parent=139 // pred_check
          %p1050 = pneg %p230
        $region158: #{unet_forward_fused.1} parent=139 // pred_check_branch
          %1052 = sbr.rel (%p1050) target = $region160
        $region159: #{unet_forward_fused.1} parent=139 // pred_region
          %1053 = dma.done [#allocation9], 128
        $region160: #{unet_forward_fused.1} parent=139 // pred_fallthru
          _
        // Predicated region
        $region161: #{unet_forward_fused.1} parent=139 // pred_check
          %p1054 = pneg %p293
        $region162: #{unet_forward_fused.1} parent=139 // pred_check_branch
          %1056 = sbr.rel (%p1054) target = $region164
        $region163: #{unet_forward_fused.1} parent=139 // pred_region
          %1057 = dma.done [#allocation12], 3072
        $region164: #{unet_forward_fused.1} parent=139 // pred_fallthru
          _
        // Predicated region
        $region165: #{unet_forward_fused.1} parent=139 // pred_check
          %p1058 = pneg %p314
        $region166: #{unet_forward_fused.1} parent=139 // pred_check_branch
          %1060 = sbr.rel (%p1058) target = $region168
        $region167: #{unet_forward_fused.1} parent=139 // pred_region
          %1061 = dma.done [#allocation12], 16
        $region168: #{unet_forward_fused.1} parent=139 // pred_fallthru
          _
        // Predicated region
        $region169: #{unet_forward_fused.1} parent=139 // pred_check
          %p1062 = pneg %p356
        $region170: #{unet_forward_fused.1} parent=139 // pred_check_branch
          %1064 = sbr.rel (%p1062) target = $region172
        $region171: #{unet_forward_fused.1} parent=139 // pred_region
          %1065 = dma.done [#allocation15], 16
        $region172: #{unet_forward_fused.1} parent=139 // pred_fallthru
          _
        // Predicated region
        $region173: #{unet_forward_fused.1} parent=139 // pred_check
          %p1066 = pneg %p377
        $region174: #{unet_forward_fused.1} parent=139 // pred_check_branch
          %1068 = sbr.rel (%p1066) target = $region176
        $region175: #{unet_forward_fused.1} parent=139 // pred_region
          %1069 = dma.done [#allocation15], 64
        $region176: #{unet_forward_fused.1} parent=139 // pred_fallthru
          _
        // Predicated region
        $region177: #{unet_forward_fused.1} parent=139 // pred_check
          %p1070 = pneg %p398
        $region178: #{unet_forward_fused.1} parent=139 // pred_check_branch
          %1072 = sbr.rel (%p1070) target = $region180
        $region179: #{unet_forward_fused.1} parent=139 // pred_region
          %1073 = dma.done [#allocation18], 64
        $region180: #{unet_forward_fused.1} parent=139 // pred_fallthru
          _
        // Predicated region
        $region181: #{unet_forward_fused.1} parent=139 // pred_check
          %p1074 = pneg %p461
        $region182: #{unet_forward_fused.1} parent=139 // pred_check_branch
          %1076 = sbr.rel (%p1074) target = $region184
        $region183: #{unet_forward_fused.1} parent=139 // pred_region
          %1077 = dma.done [#allocation18], 3072
        $region184: #{unet_forward_fused.1} parent=139 // pred_fallthru
          _
        // Predicated region
        $region185: #{unet_forward_fused.1} parent=139 // pred_check
          %p1078 = pneg %p482
        $region186: #{unet_forward_fused.1} parent=139 // pred_check_branch
          %1080 = sbr.rel (%p1078) target = $region188
        $region187: #{unet_forward_fused.1} parent=139 // pred_region
          %1081 = dma.done [#allocation21], 16
        $region188: #{unet_forward_fused.1} parent=139 // pred_fallthru
          _
        // Predicated region
        $region189: #{unet_forward_fused.1} parent=139 // pred_check
          %p1082 = pneg %p503
        $region190: #{unet_forward_fused.1} parent=139 // pred_check_branch
          %1084 = sbr.rel (%p1082) target = $region192
        $region191: #{unet_forward_fused.1} parent=139 // pred_region
          %1085 = dma.done [#allocation21], 3072
        $region192: #{unet_forward_fused.1} parent=139 // pred_fallthru
          _
        // Predicated region
        $region193: #{unet_forward_fused.1} parent=139 // pred_check
          %p1086 = pneg %p524
        $region194: #{unet_forward_fused.1} parent=139 // pred_check_branch
          %1088 = sbr.rel (%p1086) target = $region196
        $region195: #{unet_forward_fused.1} parent=139 // pred_region
          %1089 = dma.done [#allocation24], 16
        $region196: #{unet_forward_fused.1} parent=139 // pred_fallthru
          _
        // Predicated region
        $region197: #{unet_forward_fused.1} parent=139 // pred_check
          %p1090 = pneg %p566
        $region198: #{unet_forward_fused.1} parent=139 // pred_check_branch
          %1092 = sbr.rel (%p1090) target = $region200
        $region199: #{unet_forward_fused.1} parent=139 // pred_region
          %1093 = dma.done [#allocation24], 1024
        $region200: #{unet_forward_fused.1} parent=139 // pred_fallthru
          _
        // Predicated region
        $region201: #{unet_forward_fused.1} parent=139 // pred_check
          %p1094 = pneg %p608
        $region202: #{unet_forward_fused.1} parent=139 // pred_check_branch
          %1096 = sbr.rel (%p1094) target = $region204
        $region203: #{unet_forward_fused.1} parent=139 // pred_region
          %1097 = dma.done [#allocation27], 6144
        $region204: #{unet_forward_fused.1} parent=139 // pred_fallthru
          _
        // Predicated region
        $region205: #{unet_forward_fused.1} parent=139 // pred_check
          %p1098 = pneg %p629
        $region206: #{unet_forward_fused.1} parent=139 // pred_check_branch
          %1100 = sbr.rel (%p1098) target = $region208
        $region207: #{unet_forward_fused.1} parent=139 // pred_region
          %1101 = dma.done [#allocation27], 16
        $region208: #{unet_forward_fused.1} parent=139 // pred_fallthru
          _
        // Predicated region
        $region209: #{unet_forward_fused.1} parent=139 // pred_check
          %p1102 = pneg %p650
        $region210: #{unet_forward_fused.1} parent=139 // pred_check_branch
          %1104 = sbr.rel (%p1102) target = $region212
        $region211: #{unet_forward_fused.1} parent=139 // pred_region
          %1105 = dma.done [#allocation30], 6144
        $region212: #{unet_forward_fused.1} parent=139 // pred_fallthru
          _
        // Predicated region
        $region213: #{unet_forward_fused.1} parent=139 // pred_check
          %p1106 = pneg %p671
        $region214: #{unet_forward_fused.1} parent=139 // pred_check_branch
          %1108 = sbr.rel (%p1106) target = $region216
        $region215: #{unet_forward_fused.1} parent=139 // pred_region
          %1109 = dma.done [#allocation30], 16
        $region216: #{unet_forward_fused.1} parent=139 // pred_fallthru
          _
        // Predicated region
        $region217: #{unet_forward_fused.1} parent=139 // pred_check
          %p1110 = pneg %p713
        $region218: #{unet_forward_fused.1} parent=139 // pred_check_branch
          %1112 = sbr.rel (%p1110) target = $region220
        $region219: #{unet_forward_fused.1} parent=139 // pred_region
          %1113 = dma.done [#allocation33], 16
        $region220: #{unet_forward_fused.1} parent=139 // pred_fallthru
          _
        %p1114 = scmp.lt.s32.totalorder %s83, 1
        %s1115 = scalar_select %p1114, %s83, 1
        %s1116 = smul.addr %s1115, 2
        %s1117 = smul.addr %s1116, 8
        %s1118 = scalar_lea.vmem %s1, %s1117
        %p1119 = pneg %p104
        %p1120 = pneg %p101
        %p1121 = pneg %p125
        %p1122 = pneg %p122
        %p1123 = pneg %p146
        %p1124 = pneg %p143
        %p1125 = pneg %p167
        %p1126 = pneg %p164
        %p1127 = pneg %p188
        %p1128 = pneg %p185
        %p1129 = pneg %p209
        %p1130 = pneg %p206
        %p1131 = pneg %p230
        %p1132 = pneg %p227
        %p1133 = pneg %p251
        %p1134 = pneg %p248
        %p1135 = pneg %p272
        %p1136 = pneg %p269
        %p1137 = pneg %p293
        %p1138 = pneg %p290
        %p1139 = pneg %p314
        %p1140 = pneg %p311
        %p1141 = pneg %p335
        %p1142 = pneg %p332
        %p1143 = pneg %p356
        %p1144 = pneg %p353
        %p1145 = pneg %p377
        %p1146 = pneg %p374
        %p1147 = pneg %p398
        %p1148 = pneg %p395
        %p1149 = pneg %p419
        %p1150 = pneg %p416
        %p1151 = pneg %p440
        %p1152 = pneg %p437
        %p1153 = pneg %p461
        %p1154 = pneg %p458
        %p1155 = pneg %p482
        %p1156 = pneg %p479
        %p1157 = pneg %p503
        %p1158 = pneg %p500
        %p1159 = pneg %p524
        %p1160 = pneg %p521
        %p1161 = pneg %p545
        %p1162 = pneg %p542
        %p1163 = pneg %p566
        %p1164 = pneg %p563
        %p1165 = pneg %p587
        %p1166 = pneg %p584
        %p1167 = pneg %p608
        %p1168 = pneg %p605
        %p1169 = pneg %p629
        %p1170 = pneg %p626
        %p1171 = pneg %p650
        %p1172 = pneg %p647
        %p1173 = pneg %p671
        %p1174 = pneg %p668
        %p1175 = pneg %p692
        %p1176 = pneg %p689
        %p1177 = pneg %p713
        %p1178 = pneg %p710
        %p1179 = pneg %p739
        %p1180 = pneg %p736
        %p1181 = scmp.lt.s32.totalorder %s83, 1
        %s1182 = scalar_select %p1181, %s83, 1
        %s1183 = smul.addr %s1182, 8
        %s1184 = scalar_lea.vmem %s61, %s1183
        %p1185 = scmp.lt.s32.totalorder %s83, 1
        %s1186 = scalar_select %p1185, %s83, 1
        %s1187 = smul.addr %s1186, 2
        %s1188 = smul.addr %s1187, 8
        %s1189 = scalar_lea.vmem %s1, %s1188
        %p1190 = scmp.lt.s32.totalorder %s83, 1
        %s1191 = scalar_select %p1190, %s83, 1
        %s1192 = smul.addr %s1191, 8
        %s1193 = scalar_lea.vmem %s61, %s1192
        %v1194 = vld [vmem:[%s1189] sm:$0xff]
        %v1195 = vld [vmem:[%s1189 + $0x8] sm:$0xff]
        %1196 = vst [vmem:[#allocation2] sm:$0xff] 0.0
        %1197 = vst [vmem:[#allocation2 + $0x8] sm:$0xff] 0.0
        %1198 = vst [vmem:[#allocation2 + $0x10] sm:$0xff] 0.0
        %1199 = vst [vmem:[#allocation2 + $0x18] sm:$0x1] 0.0
        %vm1200 = vcmask 392192
        %1201 = vst.msk [vmem:[#allocation2 + $0x8] sm:$0xff] %vm1200, %v1194
        %1202 = vst.msk [vmem:[#allocation2 + $0x10] sm:$0xff] %vm1200, %v1195
        %v1203 = vld [vmem:[#allocation2 + $0x7] sm:$0xff]
        %v1204 = vld [vmem:[#allocation2 + $0xf] sm:$0xff]
        %v1205 = vld [vmem:[#allocation3] sm:$0xff]
        %v1206 = vld [vmem:[#allocation3 + $0x8] sm:$0xff]
        %v1207 = vld [vmem:[#allocation3 + $0x10] sm:$0xff]
        %v1208 = vld [vmem:[#allocation3 + $0x18] sm:$0xff]
        %v1209 = vld [vmem:[#allocation3 + $0x20] sm:$0xff]
        %v1210 = vld [vmem:[#allocation3 + $0x28] sm:$0xff]
        %v1211 = vld [vmem:[#allocation2 + $0x8] sm:$0xff]
        %v1212 = vld [vmem:[#allocation2 + $0x10] sm:$0xff]
        %s1213 = scalar_lea.vmem [#allocation3], 48
        %v1214 = vld [vmem:[%s1213] sm:$0xff]
        %v1215 = vld [vmem:[%s1213 + $0x8] sm:$0xff]
        %v1216 = vld [vmem:[%s1213 + $0x10] sm:$0xff]
        %v1217 = vld [vmem:[%s1213 + $0x18] sm:$0xff]
        %v1218 = vld [vmem:[%s1213 + $0x20] sm:$0xff]
        %v1219 = vld [vmem:[%s1213 + $0x28] sm:$0xff]
        %v1221 = vsel %vm1200, %v1211, 0
        %v1224 = vsel %vm1200, %v1212, 0
        %1226 = vmatprep.subr.mxu0 0.0
        %1227 = vmatpush1.msra.mxu0 0.0
        %1228 = vmatprep.subr.mxu0 0.0
        %1229 = vmatpush1.msra.mxu0 0.0
        %1230 = vmatprep.subr.mxu0 0.0
        %1231 = vmatpush1.msra.mxu0 0.0
        %1232 = vmatprep.subr.mxu0 0.0
        %1233 = vmatpush1.msra.mxu0 0.0
        %1234 = vmatprep.subr.mxu0 0.0
        %1235 = vmatpush1.msra.mxu0 0.0
        %1236 = vmatprep.subr.mxu0 0.0
        %1237 = vmatpush1.msra.mxu0 0.0
        %1238 = vmatprep.subr.mxu0 0.0
        %1239 = vmatpush1.msra.mxu0 0.0
        %1240 = vmatprep.subr.mxu0 0.0
        %1241 = vmatpush1.msra.mxu0 0.0
        %1242 = vmatprep.subr.mxu0 0.0
        %1243 = vmatpush1.msra.mxu0 0.0
        %1244 = vmatprep.subr.mxu0 0.0
        %1245 = vmatpush1.msra.mxu0 0.0
        %1246 = vmatprep.subr.mxu0 0.0
        %1247 = vmatpush1.msra.mxu0 %v1219
        %1248 = vmatprep.subr.mxu0 0.0
        %1249 = vmatpush1.msra.mxu0 %v1218
        %1250 = vmatprep.subr.mxu0 0.0
        %1251 = vmatpush1.msra.mxu0 %v1217
        %1252 = vmatprep.subr.mxu0 0.0
        %1253 = vmatpush1.msra.mxu0 %v1216
        %1254 = vmatprep.subr.mxu0 0.0
        %1255 = vmatpush1.msra.mxu0 %v1215
        %1256 = vmatprep.subr.mxu0 0.0
        %1257 = vmatpush1.msra.mxu0 %v1214
        %1258 = vmatprep.subr.mxu0 0.0
        %1259 = vmatpush2.msra.mxu0 0.0
        %1260 = vmatprep.subr.mxu0 0.0
        %1261 = vmatpush2.msra.mxu0 0.0
        %1262 = vmatprep.subr.mxu0 0.0
        %1263 = vmatpush2.msra.mxu0 0.0
        %1264 = vmatprep.subr.mxu0 0.0
        %1265 = vmatpush2.msra.mxu0 0.0
        %1266 = vmatprep.subr.mxu0 0.0
        %1267 = vmatpush2.msra.mxu0 0.0
        %1268 = vmatprep.subr.mxu0 0.0
        %1269 = vmatpush2.msra.mxu0 0.0
        %1270 = vmatprep.subr.mxu0 0.0
        %1271 = vmatpush2.msra.mxu0 0.0
        %1272 = vmatprep.subr.mxu0 0.0
        %1273 = vmatpush2.msra.mxu0 0.0
        %1274 = vmatprep.subr.mxu0 0.0
        %1275 = vmatpush2.msra.mxu0 0.0
        %1276 = vmatprep.subr.mxu0 0.0
        %1277 = vmatpush2.msra.mxu0 0.0
        %1278 = vmatprep.subr.mxu0 0.0
        %1279 = vmatpush2.msra.mxu0 0.0
        %1280 = vmatprep.subr.mxu0 0.0
        %1281 = vmatpush2.msra.mxu0 0.0
        %1282 = vmatprep.subr.mxu0 0.0
        %1283 = vmatpush2.msra.mxu0 0.0
        %1284 = vmatprep.subr.mxu0 0.0
        %1285 = vmatpush2.msra.mxu0 0.0
        %1286 = vmatprep.subr.mxu0 0.0
        %1287 = vmatpush2.msra.mxu0 0.0
        %1288 = vmatprep.subr.mxu0 0.0
        %1289 = vmatpush2.msra.mxu0 0.0
        %1290 = vmatprep.mubr.f32.mxu0 0.0
        %1291 = vmatmul.mubr.f32.gmra.mxu0 %v1221
        %v1292 = vpop.f32.mrf.mxu0
        %v1293 = vadd.f32 0.0, %v1292
        %v1294 = vpop.f32.mrf.mxu0
        %1295 = vmatprep.mubr.f32.mxu0 0.0
        %1296 = vmatmul.mubr.f32.gmra.mxu0 %v1224
        %v1297 = vpop.f32.mrf.mxu0
        %v1298 = vadd.f32 0.0, %v1297
        %v1299 = vpop.f32.mrf.mxu0
        %1300 = vdwg.mxu0
        %v1302 = vsel %vm1200, %v1203, 0
        %v1305 = vsel %vm1200, %v1204, 0
        %1307 = vmatprep.subr.mxu0 0.0
        %1308 = vmatpush1.msra.mxu0 0.0
        %1309 = vmatprep.subr.mxu0 0.0
        %1310 = vmatpush1.msra.mxu0 0.0
        %1311 = vmatprep.subr.mxu0 0.0
        %1312 = vmatpush1.msra.mxu0 0.0
        %1313 = vmatprep.subr.mxu0 0.0
        %1314 = vmatpush1.msra.mxu0 0.0
        %1315 = vmatprep.subr.mxu0 0.0
        %1316 = vmatpush1.msra.mxu0 0.0
        %1317 = vmatprep.subr.mxu0 0.0
        %1318 = vmatpush1.msra.mxu0 0.0
        %1319 = vmatprep.subr.mxu0 0.0
        %1320 = vmatpush1.msra.mxu0 0.0
        %1321 = vmatprep.subr.mxu0 0.0
        %1322 = vmatpush1.msra.mxu0 0.0
        %1323 = vmatprep.subr.mxu0 0.0
        %1324 = vmatpush1.msra.mxu0 0.0
        %1325 = vmatprep.subr.mxu0 0.0
        %1326 = vmatpush1.msra.mxu0 0.0
        %1327 = vmatprep.subr.mxu0 0.0
        %1328 = vmatpush1.msra.mxu0 %v1210
        %1329 = vmatprep.subr.mxu0 0.0
        %1330 = vmatpush1.msra.mxu0 %v1209
        %1331 = vmatprep.subr.mxu0 0.0
        %1332 = vmatpush1.msra.mxu0 %v1208
        %1333 = vmatprep.subr.mxu0 0.0
        %1334 = vmatpush1.msra.mxu0 %v1207
        %1335 = vmatprep.subr.mxu0 0.0
        %1336 = vmatpush1.msra.mxu0 %v1206
        %1337 = vmatprep.subr.mxu0 0.0
        %1338 = vmatpush1.msra.mxu0 %v1205
        %1339 = vmatprep.subr.mxu0 0.0
        %1340 = vmatpush2.msra.mxu0 0.0
        %1341 = vmatprep.subr.mxu0 0.0
        %1342 = vmatpush2.msra.mxu0 0.0
        %1343 = vmatprep.subr.mxu0 0.0
        %1344 = vmatpush2.msra.mxu0 0.0
        %1345 = vmatprep.subr.mxu0 0.0
        %1346 = vmatpush2.msra.mxu0 0.0
        %1347 = vmatprep.subr.mxu0 0.0
        %1348 = vmatpush2.msra.mxu0 0.0
        %1349 = vmatprep.subr.mxu0 0.0
        %1350 = vmatpush2.msra.mxu0 0.0
        %1351 = vmatprep.subr.mxu0 0.0
        %1352 = vmatpush2.msra.mxu0 0.0
        %1353 = vmatprep.subr.mxu0 0.0
        %1354 = vmatpush2.msra.mxu0 0.0
        %1355 = vmatprep.subr.mxu0 0.0
        %1356 = vmatpush2.msra.mxu0 0.0
        %1357 = vmatprep.subr.mxu0 0.0
        %1358 = vmatpush2.msra.mxu0 0.0
        %1359 = vmatprep.subr.mxu0 0.0
        %1360 = vmatpush2.msra.mxu0 0.0
        %1361 = vmatprep.subr.mxu0 0.0
        %1362 = vmatpush2.msra.mxu0 0.0
        %1363 = vmatprep.subr.mxu0 0.0
        %1364 = vmatpush2.msra.mxu0 0.0
        %1365 = vmatprep.subr.mxu0 0.0
        %1366 = vmatpush2.msra.mxu0 0.0
        %1367 = vmatprep.subr.mxu0 0.0
        %1368 = vmatpush2.msra.mxu0 0.0
        %1369 = vmatprep.subr.mxu0 0.0
        %1370 = vmatpush2.msra.mxu0 0.0
        %1371 = vmatprep.mubr.f32.mxu0 0.0
        %1372 = vmatmul.mubr.f32.gmra.mxu0 %v1302
        %v1373 = vpop.f32.mrf.mxu0
        %v1374 = vadd.f32 %v1293, %v1373
        %v1375 = vpop.f32.mrf.mxu0
        %1376 = vmatprep.mubr.f32.mxu0 0.0
        %1377 = vmatmul.mubr.f32.gmra.mxu0 %v1305
        %v1378 = vpop.f32.mrf.mxu0
        %v1379 = vadd.f32 %v1298, %v1378
        %v1380 = vpop.f32.mrf.mxu0
        %1381 = vdwg.mxu0
        %v1382 = vld [vmem:[#allocation2 + $0x9] sm:$0xff]
        %v1383 = vld [vmem:[#allocation2 + $0x11] sm:$0xff]
        %s1384 = scalar_lea.vmem [#allocation3], 96
        %v1385 = vld [vmem:[%s1384] sm:$0xff]
        %v1386 = vld [vmem:[%s1384 + $0x8] sm:$0xff]
        %v1387 = vld [vmem:[%s1384 + $0x10] sm:$0xff]
        %v1388 = vld [vmem:[%s1384 + $0x18] sm:$0xff]
        %v1389 = vld [vmem:[%s1384 + $0x20] sm:$0xff]
        %v1390 = vld [vmem:[%s1384 + $0x28] sm:$0xff]
        %v1392 = vsel %vm1200, %v1382, 0
        %v1395 = vsel %vm1200, %v1383, 0
        %1397 = vmatprep.subr.mxu0 0.0
        %1398 = vmatpush1.msra.mxu0 0.0
        %1399 = vmatprep.subr.mxu0 0.0
        %1400 = vmatpush1.msra.mxu0 0.0
        %1401 = vmatprep.subr.mxu0 0.0
        %1402 = vmatpush1.msra.mxu0 0.0
        %1403 = vmatprep.subr.mxu0 0.0
        %1404 = vmatpush1.msra.mxu0 0.0
        %1405 = vmatprep.subr.mxu0 0.0
        %1406 = vmatpush1.msra.mxu0 0.0
        %1407 = vmatprep.subr.mxu0 0.0
        %1408 = vmatpush1.msra.mxu0 0.0
        %1409 = vmatprep.subr.mxu0 0.0
        %1410 = vmatpush1.msra.mxu0 0.0
        %1411 = vmatprep.subr.mxu0 0.0
        %1412 = vmatpush1.msra.mxu0 0.0
        %1413 = vmatprep.subr.mxu0 0.0
        %1414 = vmatpush1.msra.mxu0 0.0
        %1415 = vmatprep.subr.mxu0 0.0
        %1416 = vmatpush1.msra.mxu0 0.0
        %1417 = vmatprep.subr.mxu0 0.0
        %1418 = vmatpush1.msra.mxu0 %v1390
        %1419 = vmatprep.subr.mxu0 0.0
        %1420 = vmatpush1.msra.mxu0 %v1389
        %1421 = vmatprep.subr.mxu0 0.0
        %1422 = vmatpush1.msra.mxu0 %v1388
        %1423 = vmatprep.subr.mxu0 0.0
        %1424 = vmatpush1.msra.mxu0 %v1387
        %1425 = vmatprep.subr.mxu0 0.0
        %1426 = vmatpush1.msra.mxu0 %v1386
        %1427 = vmatprep.subr.mxu0 0.0
        %1428 = vmatpush1.msra.mxu0 %v1385
        %1429 = vmatprep.subr.mxu0 0.0
        %1430 = vmatpush2.msra.mxu0 0.0
        %1431 = vmatprep.subr.mxu0 0.0
        %1432 = vmatpush2.msra.mxu0 0.0
        %1433 = vmatprep.subr.mxu0 0.0
        %1434 = vmatpush2.msra.mxu0 0.0
        %1435 = vmatprep.subr.mxu0 0.0
        %1436 = vmatpush2.msra.mxu0 0.0
        %1437 = vmatprep.subr.mxu0 0.0
        %1438 = vmatpush2.msra.mxu0 0.0
        %1439 = vmatprep.subr.mxu0 0.0
        %1440 = vmatpush2.msra.mxu0 0.0
        %1441 = vmatprep.subr.mxu0 0.0
        %1442 = vmatpush2.msra.mxu0 0.0
        %1443 = vmatprep.subr.mxu0 0.0
        %1444 = vmatpush2.msra.mxu0 0.0
        %1445 = vmatprep.subr.mxu0 0.0
        %1446 = vmatpush2.msra.mxu0 0.0
        %1447 = vmatprep.subr.mxu0 0.0
        %1448 = vmatpush2.msra.mxu0 0.0
        %1449 = vmatprep.subr.mxu0 0.0
        %1450 = vmatpush2.msra.mxu0 0.0
        %1451 = vmatprep.subr.mxu0 0.0
        %1452 = vmatpush2.msra.mxu0 0.0
        %1453 = vmatprep.subr.mxu0 0.0
        %1454 = vmatpush2.msra.mxu0 0.0
        %1455 = vmatprep.subr.mxu0 0.0
        %1456 = vmatpush2.msra.mxu0 0.0
        %1457 = vmatprep.subr.mxu0 0.0
        %1458 = vmatpush2.msra.mxu0 0.0
        %1459 = vmatprep.subr.mxu0 0.0
        %1460 = vmatpush2.msra.mxu0 0.0
        %1461 = vmatprep.mubr.f32.mxu0 0.0
        %1462 = vmatmul.mubr.f32.gmra.mxu0 %v1392
        %v1463 = vpop.f32.mrf.mxu0
        %v1464 = vadd.f32 0.0, %v1463
        %v1465 = vpop.f32.mrf.mxu0
        %1466 = vmatprep.mubr.f32.mxu0 0.0
        %1467 = vmatmul.mubr.f32.gmra.mxu0 %v1395
        %v1468 = vpop.f32.mrf.mxu0
        %v1469 = vadd.f32 0.0, %v1468
        %v1470 = vpop.f32.mrf.mxu0
        %1471 = vdwg.mxu0
        %v1472 = vadd.f32 %v1374, %v1464
        %v1473 = vadd.f32 %v1379, %v1469
        %v1474 = vld [vmem:[#allocation5] sm:$0x1]
        %v1476 = vlaneseq
        %v1477 = vshrl.u32 %v1476, 7
        %v1478 = vsub.s32 0, %v1477
        %v1479 = vrot.slane %v1474, %v1478
        %v1481 = vadd.f32 %v1472, %v1479
        %v1482 = vadd.f32 %v1473, %v1479
        %v1483 = vmax.f32 %v1481, 0.0
        %v1484 = vmax.f32 %v1482, 0.0
        %1485 = vst [vmem:[#allocation2] sm:$0xff] 0.0
        %1486 = vst [vmem:[#allocation2 + $0x8] sm:$0xff] 0.0
        %1487 = vst [vmem:[#allocation2 + $0x10] sm:$0xff] 0.0
        %1488 = vst [vmem:[#allocation2 + $0x18] sm:$0x1] 0.0
        %1489 = vst [vmem:[#allocation2 + $0x8] sm:$0xff] %v1483
        %1490 = vst [vmem:[#allocation2 + $0x10] sm:$0xff] %v1484
        %v1491 = vld [vmem:[#allocation2 + $0x7] sm:$0xff]
        %v1492 = vld [vmem:[#allocation2 + $0xf] sm:$0xff]
        %v1493 = vld [vmem:[%s7] sm:$0xff]
        %v1494 = vld [vmem:[%s7 + $0x8] sm:$0xff]
        %v1495 = vld [vmem:[%s7 + $0x10] sm:$0xff]
        %v1496 = vld [vmem:[%s7 + $0x18] sm:$0xff]
        %v1497 = vld [vmem:[%s7 + $0x20] sm:$0xff]
        %v1498 = vld [vmem:[%s7 + $0x28] sm:$0xff]
        %v1499 = vld [vmem:[%s7 + $0x30] sm:$0xff]
        %v1500 = vld [vmem:[%s7 + $0x38] sm:$0xff]
        %v1501 = vld [vmem:[%s7 + $0x40] sm:$0xff]
        %v1502 = vld [vmem:[%s7 + $0x48] sm:$0xff]
        %v1503 = vld [vmem:[%s7 + $0x50] sm:$0xff]
        %v1504 = vld [vmem:[%s7 + $0x58] sm:$0xff]
        %v1505 = vld [vmem:[%s7 + $0x60] sm:$0xff]
        %v1506 = vld [vmem:[%s7 + $0x68] sm:$0xff]
        %v1507 = vld [vmem:[%s7 + $0x70] sm:$0xff]
        %v1508 = vld [vmem:[%s7 + $0x78] sm:$0xff]
        %v1509 = vld [vmem:[#allocation2 + $0x8] sm:$0xff]
        %v1510 = vld [vmem:[#allocation2 + $0x10] sm:$0xff]
        %s1511 = scalar_lea.vmem %s7, 128
        %v1512 = vld [vmem:[%s1511] sm:$0xff]
        %v1513 = vld [vmem:[%s1511 + $0x8] sm:$0xff]
        %v1514 = vld [vmem:[%s1511 + $0x10] sm:$0xff]
        %v1515 = vld [vmem:[%s1511 + $0x18] sm:$0xff]
        %v1516 = vld [vmem:[%s1511 + $0x20] sm:$0xff]
        %v1517 = vld [vmem:[%s1511 + $0x28] sm:$0xff]
        %v1518 = vld [vmem:[%s1511 + $0x30] sm:$0xff]
        %v1519 = vld [vmem:[%s1511 + $0x38] sm:$0xff]
        %v1520 = vld [vmem:[%s1511 + $0x40] sm:$0xff]
        %v1521 = vld [vmem:[%s1511 + $0x48] sm:$0xff]
        %v1522 = vld [vmem:[%s1511 + $0x50] sm:$0xff]
        %v1523 = vld [vmem:[%s1511 + $0x58] sm:$0xff]
        %v1524 = vld [vmem:[%s1511 + $0x60] sm:$0xff]
        %v1525 = vld [vmem:[%s1511 + $0x68] sm:$0xff]
        %v1526 = vld [vmem:[%s1511 + $0x70] sm:$0xff]
        %v1527 = vld [vmem:[%s1511 + $0x78] sm:$0xff]
        %1528 = vmatprep.subr.mxu0 0.0
        %1529 = vmatpush1.msra.mxu0 %v1527
        %1530 = vmatprep.subr.mxu0 0.0
        %1531 = vmatpush1.msra.mxu0 %v1526
        %1532 = vmatprep.subr.mxu0 0.0
        %1533 = vmatpush1.msra.mxu0 %v1525
        %1534 = vmatprep.subr.mxu0 0.0
        %1535 = vmatpush1.msra.mxu0 %v1524
        %1536 = vmatprep.subr.mxu0 0.0
        %1537 = vmatpush1.msra.mxu0 %v1523
        %1538 = vmatprep.subr.mxu0 0.0
        %1539 = vmatpush1.msra.mxu0 %v1522
        %1540 = vmatprep.subr.mxu0 0.0
        %1541 = vmatpush1.msra.mxu0 %v1521
        %1542 = vmatprep.subr.mxu0 0.0
        %1543 = vmatpush1.msra.mxu0 %v1520
        %1544 = vmatprep.subr.mxu0 0.0
        %1545 = vmatpush1.msra.mxu0 %v1519
        %1546 = vmatprep.subr.mxu0 0.0
        %1547 = vmatpush1.msra.mxu0 %v1518
        %1548 = vmatprep.subr.mxu0 0.0
        %1549 = vmatpush1.msra.mxu0 %v1517
        %1550 = vmatprep.subr.mxu0 0.0
        %1551 = vmatpush1.msra.mxu0 %v1516
        %1552 = vmatprep.subr.mxu0 0.0
        %1553 = vmatpush1.msra.mxu0 %v1515
        %1554 = vmatprep.subr.mxu0 0.0
        %1555 = vmatpush1.msra.mxu0 %v1514
        %1556 = vmatprep.subr.mxu0 0.0
        %1557 = vmatpush1.msra.mxu0 %v1513
        %1558 = vmatprep.subr.mxu0 0.0
        %1559 = vmatpush1.msra.mxu0 %v1512
        %1560 = vmatprep.subr.mxu0 0.0
        %1561 = vmatpush2.msra.mxu0 0.0
        %1562 = vmatprep.subr.mxu0 0.0
        %1563 = vmatpush2.msra.mxu0 0.0
        %1564 = vmatprep.subr.mxu0 0.0
        %1565 = vmatpush2.msra.mxu0 0.0
        %1566 = vmatprep.subr.mxu0 0.0
        %1567 = vmatpush2.msra.mxu0 0.0
        %1568 = vmatprep.subr.mxu0 0.0
        %1569 = vmatpush2.msra.mxu0 0.0
        %1570 = vmatprep.subr.mxu0 0.0
        %1571 = vmatpush2.msra.mxu0 0.0
        %1572 = vmatprep.subr.mxu0 0.0
        %1573 = vmatpush2.msra.mxu0 0.0
        %1574 = vmatprep.subr.mxu0 0.0
        %1575 = vmatpush2.msra.mxu0 0.0
        %1576 = vmatprep.subr.mxu0 0.0
        %1577 = vmatpush2.msra.mxu0 0.0
        %1578 = vmatprep.subr.mxu0 0.0
        %1579 = vmatpush2.msra.mxu0 0.0
        %1580 = vmatprep.subr.mxu0 0.0
        %1581 = vmatpush2.msra.mxu0 0.0
        %1582 = vmatprep.subr.mxu0 0.0
        %1583 = vmatpush2.msra.mxu0 0.0
        %1584 = vmatprep.subr.mxu0 0.0
        %1585 = vmatpush2.msra.mxu0 0.0
        %1586 = vmatprep.subr.mxu0 0.0
        %1587 = vmatpush2.msra.mxu0 0.0
        %1588 = vmatprep.subr.mxu0 0.0
        %1589 = vmatpush2.msra.mxu0 0.0
        %1590 = vmatprep.subr.mxu0 0.0
        %1591 = vmatpush2.msra.mxu0 0.0
        %1592 = vmatprep.mubr.f32.mxu0 0.0
        %1593 = vmatmul.mubr.f32.gmra.mxu0 %v1509
        %v1594 = vpop.f32.mrf.mxu0
        %v1595 = vadd.f32 0.0, %v1594
        %v1596 = vpop.f32.mrf.mxu0
        %1597 = vmatprep.mubr.f32.mxu0 0.0
        %1598 = vmatmul.mubr.f32.gmra.mxu0 %v1510
        %v1599 = vpop.f32.mrf.mxu0
        %v1600 = vadd.f32 0.0, %v1599
        %v1601 = vpop.f32.mrf.mxu0
        %1602 = vdwg.mxu0
        %1603 = vmatprep.subr.mxu0 0.0
        %1604 = vmatpush1.msra.mxu0 %v1508
        %1605 = vmatprep.subr.mxu0 0.0
        %1606 = vmatpush1.msra.mxu0 %v1507
        %1607 = vmatprep.subr.mxu0 0.0
        %1608 = vmatpush1.msra.mxu0 %v1506
        %1609 = vmatprep.subr.mxu0 0.0
        %1610 = vmatpush1.msra.mxu0 %v1505
        %1611 = vmatprep.subr.mxu0 0.0
        %1612 = vmatpush1.msra.mxu0 %v1504
        %1613 = vmatprep.subr.mxu0 0.0
        %1614 = vmatpush1.msra.mxu0 %v1503
        %1615 = vmatprep.subr.mxu0 0.0
        %1616 = vmatpush1.msra.mxu0 %v1502
        %1617 = vmatprep.subr.mxu0 0.0
        %1618 = vmatpush1.msra.mxu0 %v1501
        %1619 = vmatprep.subr.mxu0 0.0
        %1620 = vmatpush1.msra.mxu0 %v1500
        %1621 = vmatprep.subr.mxu0 0.0
        %1622 = vmatpush1.msra.mxu0 %v1499
        %1623 = vmatprep.subr.mxu0 0.0
        %1624 = vmatpush1.msra.mxu0 %v1498
        %1625 = vmatprep.subr.mxu0 0.0
        %1626 = vmatpush1.msra.mxu0 %v1497
        %1627 = vmatprep.subr.mxu0 0.0
        %1628 = vmatpush1.msra.mxu0 %v1496
        %1629 = vmatprep.subr.mxu0 0.0
        %1630 = vmatpush1.msra.mxu0 %v1495
        %1631 = vmatprep.subr.mxu0 0.0
        %1632 = vmatpush1.msra.mxu0 %v1494
        %1633 = vmatprep.subr.mxu0 0.0
        %1634 = vmatpush1.msra.mxu0 %v1493
        %1635 = vmatprep.subr.mxu0 0.0
        %1636 = vmatpush2.msra.mxu0 0.0
        %1637 = vmatprep.subr.mxu0 0.0
        %1638 = vmatpush2.msra.mxu0 0.0
        %1639 = vmatprep.subr.mxu0 0.0
        %1640 = vmatpush2.msra.mxu0 0.0
        %1641 = vmatprep.subr.mxu0 0.0
        %1642 = vmatpush2.msra.mxu0 0.0
        %1643 = vmatprep.subr.mxu0 0.0
        %1644 = vmatpush2.msra.mxu0 0.0
        %1645 = vmatprep.subr.mxu0 0.0
        %1646 = vmatpush2.msra.mxu0 0.0
        %1647 = vmatprep.subr.mxu0 0.0
        %1648 = vmatpush2.msra.mxu0 0.0
        %1649 = vmatprep.subr.mxu0 0.0
        %1650 = vmatpush2.msra.mxu0 0.0
        %1651 = vmatprep.subr.mxu0 0.0
        %1652 = vmatpush2.msra.mxu0 0.0
        %1653 = vmatprep.subr.mxu0 0.0
        %1654 = vmatpush2.msra.mxu0 0.0
        %1655 = vmatprep.subr.mxu0 0.0
        %1656 = vmatpush2.msra.mxu0 0.0
        %1657 = vmatprep.subr.mxu0 0.0
        %1658 = vmatpush2.msra.mxu0 0.0
        %1659 = vmatprep.subr.mxu0 0.0
        %1660 = vmatpush2.msra.mxu0 0.0
        %1661 = vmatprep.subr.mxu0 0.0
        %1662 = vmatpush2.msra.mxu0 0.0
        %1663 = vmatprep.subr.mxu0 0.0
        %1664 = vmatpush2.msra.mxu0 0.0
        %1665 = vmatprep.subr.mxu0 0.0
        %1666 = vmatpush2.msra.mxu0 0.0
        %1667 = vmatprep.mubr.f32.mxu0 0.0
        %1668 = vmatmul.mubr.f32.gmra.mxu0 %v1491
        %v1669 = vpop.f32.mrf.mxu0
        %v1670 = vadd.f32 %v1595, %v1669
        %v1671 = vpop.f32.mrf.mxu0
        %1672 = vmatprep.mubr.f32.mxu0 0.0
        %1673 = vmatmul.mubr.f32.gmra.mxu0 %v1492
        %v1674 = vpop.f32.mrf.mxu0
        %v1675 = vadd.f32 %v1600, %v1674
        %v1676 = vpop.f32.mrf.mxu0
        %1677 = vdwg.mxu0
        %v1678 = vld [vmem:[#allocation2 + $0x9] sm:$0xff]
        %v1679 = vld [vmem:[#allocation2 + $0x11] sm:$0xff]
        %s1680 = scalar_lea.vmem %s7, 256
        %v1681 = vld [vmem:[%s1680] sm:$0xff]
        %v1682 = vld [vmem:[%s1680 + $0x8] sm:$0xff]
        %v1683 = vld [vmem:[%s1680 + $0x10] sm:$0xff]
        %v1684 = vld [vmem:[%s1680 + $0x18] sm:$0xff]
        %v1685 = vld [vmem:[%s1680 + $0x20] sm:$0xff]
        %v1686 = vld [vmem:[%s1680 + $0x28] sm:$0xff]
        %v1687 = vld [vmem:[%s1680 + $0x30] sm:$0xff]
        %v1688 = vld [vmem:[%s1680 + $0x38] sm:$0xff]
        %v1689 = vld [vmem:[%s1680 + $0x40] sm:$0xff]
        %v1690 = vld [vmem:[%s1680 + $0x48] sm:$0xff]
        %v1691 = vld [vmem:[%s1680 + $0x50] sm:$0xff]
        %v1692 = vld [vmem:[%s1680 + $0x58] sm:$0xff]
        %v1693 = vld [vmem:[%s1680 + $0x60] sm:$0xff]
        %v1694 = vld [vmem:[%s1680 + $0x68] sm:$0xff]
        %v1695 = vld [vmem:[%s1680 + $0x70] sm:$0xff]
        %v1696 = vld [vmem:[%s1680 + $0x78] sm:$0xff]
        %1697 = vmatprep.subr.mxu0 0.0
        %1698 = vmatpush1.msra.mxu0 %v1696
        %1699 = vmatprep.subr.mxu0 0.0
        %1700 = vmatpush1.msra.mxu0 %v1695
        %1701 = vmatprep.subr.mxu0 0.0
        %1702 = vmatpush1.msra.mxu0 %v1694
        %1703 = vmatprep.subr.mxu0 0.0
        %1704 = vmatpush1.msra.mxu0 %v1693
        %1705 = vmatprep.subr.mxu0 0.0
        %1706 = vmatpush1.msra.mxu0 %v1692
        %1707 = vmatprep.subr.mxu0 0.0
        %1708 = vmatpush1.msra.mxu0 %v1691
        %1709 = vmatprep.subr.mxu0 0.0
        %1710 = vmatpush1.msra.mxu0 %v1690
        %1711 = vmatprep.subr.mxu0 0.0
        %1712 = vmatpush1.msra.mxu0 %v1689
        %1713 = vmatprep.subr.mxu0 0.0
        %1714 = vmatpush1.msra.mxu0 %v1688
        %1715 = vmatprep.subr.mxu0 0.0
        %1716 = vmatpush1.msra.mxu0 %v1687
        %1717 = vmatprep.subr.mxu0 0.0
        %1718 = vmatpush1.msra.mxu0 %v1686
        %1719 = vmatprep.subr.mxu0 0.0
        %1720 = vmatpush1.msra.mxu0 %v1685
        %1721 = vmatprep.subr.mxu0 0.0
        %1722 = vmatpush1.msra.mxu0 %v1684
        %1723 = vmatprep.subr.mxu0 0.0
        %1724 = vmatpush1.msra.mxu0 %v1683
        %1725 = vmatprep.subr.mxu0 0.0
        %1726 = vmatpush1.msra.mxu0 %v1682
        %1727 = vmatprep.subr.mxu0 0.0
        %1728 = vmatpush1.msra.mxu0 %v1681
        %1729 = vmatprep.subr.mxu0 0.0
        %1730 = vmatpush2.msra.mxu0 0.0
        %1731 = vmatprep.subr.mxu0 0.0
        %1732 = vmatpush2.msra.mxu0 0.0
        %1733 = vmatprep.subr.mxu0 0.0
        %1734 = vmatpush2.msra.mxu0 0.0
        %1735 = vmatprep.subr.mxu0 0.0
        %1736 = vmatpush2.msra.mxu0 0.0
        %1737 = vmatprep.subr.mxu0 0.0
        %1738 = vmatpush2.msra.mxu0 0.0
        %1739 = vmatprep.subr.mxu0 0.0
        %1740 = vmatpush2.msra.mxu0 0.0
        %1741 = vmatprep.subr.mxu0 0.0
        %1742 = vmatpush2.msra.mxu0 0.0
        %1743 = vmatprep.subr.mxu0 0.0
        %1744 = vmatpush2.msra.mxu0 0.0
        %1745 = vmatprep.subr.mxu0 0.0
        %1746 = vmatpush2.msra.mxu0 0.0
        %1747 = vmatprep.subr.mxu0 0.0
        %1748 = vmatpush2.msra.mxu0 0.0
        %1749 = vmatprep.subr.mxu0 0.0
        %1750 = vmatpush2.msra.mxu0 0.0
        %1751 = vmatprep.subr.mxu0 0.0
        %1752 = vmatpush2.msra.mxu0 0.0
        %1753 = vmatprep.subr.mxu0 0.0
        %1754 = vmatpush2.msra.mxu0 0.0
        %1755 = vmatprep.subr.mxu0 0.0
        %1756 = vmatpush2.msra.mxu0 0.0
        %1757 = vmatprep.subr.mxu0 0.0
        %1758 = vmatpush2.msra.mxu0 0.0
        %1759 = vmatprep.subr.mxu0 0.0
        %1760 = vmatpush2.msra.mxu0 0.0
        %1761 = vmatprep.mubr.f32.mxu0 0.0
        %1762 = vmatmul.mubr.f32.gmra.mxu0 %v1678
        %v1763 = vpop.f32.mrf.mxu0
        %v1764 = vadd.f32 0.0, %v1763
        %v1765 = vpop.f32.mrf.mxu0
        %1766 = vmatprep.mubr.f32.mxu0 0.0
        %1767 = vmatmul.mubr.f32.gmra.mxu0 %v1679
        %v1768 = vpop.f32.mrf.mxu0
        %v1769 = vadd.f32 0.0, %v1768
        %v1770 = vpop.f32.mrf.mxu0
        %1771 = vdwg.mxu0
        %v1772 = vadd.f32 %v1670, %v1764
        %v1773 = vadd.f32 %v1675, %v1769
        %v1774 = vld [vmem:[#allocation7] sm:$0x1]
        %v1776 = vlaneseq
        %v1777 = vshrl.u32 %v1776, 7
        %v1778 = vsub.s32 0, %v1777
        %v1779 = vrot.slane %v1774, %v1778
        %v1781 = vadd.f32 %v1772, %v1779
        %v1782 = vadd.f32 %v1773, %v1779
        %v1783 = vmax.f32 %v1781, 0.0
        %v1784 = vmax.f32 %v1782, 0.0
        %v1785 = vld [vmem:[#allocation8] sm:$0xff]
        %vm1786 = vcmask 130048
        %v1788 = vsel %vm1786, %v1785, 0
        %1790 = vmatprep.subr.mxu0 0.0
        %1791 = vmatpush1.msra.mxu0 0.0
        %1792 = vmatprep.subr.mxu0 0.0
        %1793 = vmatpush1.msra.mxu0 0.0
        %1794 = vmatprep.subr.mxu0 0.0
        %1795 = vmatpush1.msra.mxu0 0.0
        %1796 = vmatprep.subr.mxu0 0.0
        %1797 = vmatpush1.msra.mxu0 0.0
        %1798 = vmatprep.subr.mxu0 0.0
        %1799 = vmatpush1.msra.mxu0 0.0
        %1800 = vmatprep.subr.mxu0 0.0
        %1801 = vmatpush1.msra.mxu0 0.0
        %1802 = vmatprep.subr.mxu0 0.0
        %1803 = vmatpush1.msra.mxu0 0.0
        %1804 = vmatprep.subr.mxu0 0.0
        %1805 = vmatpush1.msra.mxu0 0.0
        %1806 = vmatprep.subr.mxu0 0.0
        %1807 = vmatpush1.msra.mxu0 0.0
        %1808 = vmatprep.subr.mxu0 0.0
        %1809 = vmatpush1.msra.mxu0 0.0
        %1810 = vmatprep.subr.mxu0 0.0
        %1811 = vmatpush1.msra.mxu0 0.0
        %1812 = vmatprep.subr.mxu0 0.0
        %1813 = vmatpush1.msra.mxu0 0.0
        %1814 = vmatprep.subr.mxu0 0.0
        %1815 = vmatpush1.msra.mxu0 0.0
        %1816 = vmatprep.subr.mxu0 0.0
        %1817 = vmatpush1.msra.mxu0 0.0
        %1818 = vmatprep.subr.mxu0 0.0
        %1819 = vmatpush1.msra.mxu0 %v1784
        %1820 = vmatprep.subr.mxu0 0.0
        %1821 = vmatpush1.msra.mxu0 %v1783
        %1822 = vmatprep.subr.mxu0 0.0
        %1823 = vmatpush2.msra.mxu0 0.0
        %1824 = vmatprep.subr.mxu0 0.0
        %1825 = vmatpush2.msra.mxu0 0.0
        %1826 = vmatprep.subr.mxu0 0.0
        %1827 = vmatpush2.msra.mxu0 0.0
        %1828 = vmatprep.subr.mxu0 0.0
        %1829 = vmatpush2.msra.mxu0 0.0
        %1830 = vmatprep.subr.mxu0 0.0
        %1831 = vmatpush2.msra.mxu0 0.0
        %1832 = vmatprep.subr.mxu0 0.0
        %1833 = vmatpush2.msra.mxu0 0.0
        %1834 = vmatprep.subr.mxu0 0.0
        %1835 = vmatpush2.msra.mxu0 0.0
        %1836 = vmatprep.subr.mxu0 0.0
        %1837 = vmatpush2.msra.mxu0 0.0
        %1838 = vmatprep.subr.mxu0 0.0
        %1839 = vmatpush2.msra.mxu0 0.0
        %1840 = vmatprep.subr.mxu0 0.0
        %1841 = vmatpush2.msra.mxu0 0.0
        %1842 = vmatprep.subr.mxu0 0.0
        %1843 = vmatpush2.msra.mxu0 0.0
        %1844 = vmatprep.subr.mxu0 0.0
        %1845 = vmatpush2.msra.mxu0 0.0
        %1846 = vmatprep.subr.mxu0 0.0
        %1847 = vmatpush2.msra.mxu0 0.0
        %1848 = vmatprep.subr.mxu0 0.0
        %1849 = vmatpush2.msra.mxu0 0.0
        %1850 = vmatprep.subr.mxu0 0.0
        %1851 = vmatpush2.msra.mxu0 0.0
        %1852 = vmatprep.subr.mxu0 0.0
        %1853 = vmatpush2.msra.mxu0 0.0
        %1854 = vmatprep.mubr.f32.mxu0 0.0
        %1855 = vmatmul.mubr.f32.gmra.mxu0 %v1788
        %v1856 = vpop.f32.mrf.mxu0
        %v1857 = vadd.f32 0.0, %v1856
        %v1858 = vpop.f32.mrf.mxu0
        %1859 = vdwg.mxu0
        %v1860 = vld [vmem:[#allocation10] sm:$0xff]
        %v1862 = vsel %vm1786, %v1860, 0
        %1864 = vmatprep.subr.mxu0 0.0
        %1865 = vmatpush1.msra.mxu0 0.0
        %1866 = vmatprep.subr.mxu0 0.0
        %1867 = vmatpush1.msra.mxu0 0.0
        %1868 = vmatprep.subr.mxu0 0.0
        %1869 = vmatpush1.msra.mxu0 0.0
        %1870 = vmatprep.subr.mxu0 0.0
        %1871 = vmatpush1.msra.mxu0 0.0
        %1872 = vmatprep.subr.mxu0 0.0
        %1873 = vmatpush1.msra.mxu0 0.0
        %1874 = vmatprep.subr.mxu0 0.0
        %1875 = vmatpush1.msra.mxu0 0.0
        %1876 = vmatprep.subr.mxu0 0.0
        %1877 = vmatpush1.msra.mxu0 0.0
        %1878 = vmatprep.subr.mxu0 0.0
        %1879 = vmatpush1.msra.mxu0 0.0
        %1880 = vmatprep.subr.mxu0 0.0
        %1881 = vmatpush1.msra.mxu0 0.0
        %1882 = vmatprep.subr.mxu0 0.0
        %1883 = vmatpush1.msra.mxu0 0.0
        %1884 = vmatprep.subr.mxu0 0.0
        %1885 = vmatpush1.msra.mxu0 0.0
        %1886 = vmatprep.subr.mxu0 0.0
        %1887 = vmatpush1.msra.mxu0 0.0
        %1888 = vmatprep.subr.mxu0 0.0
        %1889 = vmatpush1.msra.mxu0 0.0
        %1890 = vmatprep.subr.mxu0 0.0
        %1891 = vmatpush1.msra.mxu0 0.0
        %1892 = vmatprep.subr.mxu0 0.0
        %1893 = vmatpush1.msra.mxu0 %v1784
        %1894 = vmatprep.subr.mxu0 0.0
        %1895 = vmatpush1.msra.mxu0 %v1783
        %1896 = vmatprep.subr.mxu0 0.0
        %1897 = vmatpush2.msra.mxu0 0.0
        %1898 = vmatprep.subr.mxu0 0.0
        %1899 = vmatpush2.msra.mxu0 0.0
        %1900 = vmatprep.subr.mxu0 0.0
        %1901 = vmatpush2.msra.mxu0 0.0
        %1902 = vmatprep.subr.mxu0 0.0
        %1903 = vmatpush2.msra.mxu0 0.0
        %1904 = vmatprep.subr.mxu0 0.0
        %1905 = vmatpush2.msra.mxu0 0.0
        %1906 = vmatprep.subr.mxu0 0.0
        %1907 = vmatpush2.msra.mxu0 0.0
        %1908 = vmatprep.subr.mxu0 0.0
        %1909 = vmatpush2.msra.mxu0 0.0
        %1910 = vmatprep.subr.mxu0 0.0
        %1911 = vmatpush2.msra.mxu0 0.0
        %1912 = vmatprep.subr.mxu0 0.0
        %1913 = vmatpush2.msra.mxu0 0.0
        %1914 = vmatprep.subr.mxu0 0.0
        %1915 = vmatpush2.msra.mxu0 0.0
        %1916 = vmatprep.subr.mxu0 0.0
        %1917 = vmatpush2.msra.mxu0 0.0
        %1918 = vmatprep.subr.mxu0 0.0
        %1919 = vmatpush2.msra.mxu0 0.0
        %1920 = vmatprep.subr.mxu0 0.0
        %1921 = vmatpush2.msra.mxu0 0.0
        %1922 = vmatprep.subr.mxu0 0.0
        %1923 = vmatpush2.msra.mxu0 0.0
        %1924 = vmatprep.subr.mxu0 0.0
        %1925 = vmatpush2.msra.mxu0 0.0
        %1926 = vmatprep.subr.mxu0 0.0
        %1927 = vmatpush2.msra.mxu0 0.0
        %1928 = vmatprep.mubr.f32.mxu0 0.0
        %1929 = vmatmul.mubr.f32.gmra.mxu0 %v1862
        %v1930 = vpop.f32.mrf.mxu0
        %v1931 = vadd.f32 0.0, %v1930
        %v1932 = vpop.f32.mrf.mxu0
        %1933 = vdwg.mxu0
        %v1934 = vmax.f32 %v1857, %v1931
        %v1935 = vld [vmem:[%s15] sm:$0xff]
        %v1936 = vld [vmem:[%s15 + $0x8] sm:$0xff]
        %v1937 = vld [vmem:[%s15 + $0x10] sm:$0xff]
        %v1938 = vld [vmem:[%s15 + $0x18] sm:$0xff]
        %v1939 = vld [vmem:[%s15 + $0x20] sm:$0xff]
        %v1940 = vld [vmem:[%s15 + $0x28] sm:$0xff]
        %v1941 = vld [vmem:[%s15 + $0x30] sm:$0xff]
        %v1942 = vld [vmem:[%s15 + $0x38] sm:$0xff]
        %v1943 = vld [vmem:[%s15 + $0x40] sm:$0xff]
        %v1944 = vld [vmem:[%s15 + $0x48] sm:$0xff]
        %v1945 = vld [vmem:[%s15 + $0x50] sm:$0xff]
        %v1946 = vld [vmem:[%s15 + $0x58] sm:$0xff]
        %v1947 = vld [vmem:[%s15 + $0x60] sm:$0xff]
        %v1948 = vld [vmem:[%s15 + $0x68] sm:$0xff]
        %v1949 = vld [vmem:[%s15 + $0x70] sm:$0xff]
        %v1950 = vld [vmem:[%s15 + $0x78] sm:$0xff]
        %1951 = vmatprep.subr.mxu0 0.0
        %1952 = vmatpush1.msra.mxu0 %v1950
        %1953 = vmatprep.subr.mxu0 0.0
        %1954 = vmatpush1.msra.mxu0 %v1949
        %1955 = vmatprep.subr.mxu0 0.0
        %1956 = vmatpush1.msra.mxu0 %v1948
        %1957 = vmatprep.subr.mxu0 0.0
        %1958 = vmatpush1.msra.mxu0 %v1947
        %1959 = vmatprep.subr.mxu0 0.0
        %1960 = vmatpush1.msra.mxu0 %v1946
        %1961 = vmatprep.subr.mxu0 0.0
        %1962 = vmatpush1.msra.mxu0 %v1945
        %1963 = vmatprep.subr.mxu0 0.0
        %1964 = vmatpush1.msra.mxu0 %v1944
        %1965 = vmatprep.subr.mxu0 0.0
        %1966 = vmatpush1.msra.mxu0 %v1943
        %1967 = vmatprep.subr.mxu0 0.0
        %1968 = vmatpush1.msra.mxu0 %v1942
        %1969 = vmatprep.subr.mxu0 0.0
        %1970 = vmatpush1.msra.mxu0 %v1941
        %1971 = vmatprep.subr.mxu0 0.0
        %1972 = vmatpush1.msra.mxu0 %v1940
        %1973 = vmatprep.subr.mxu0 0.0
        %1974 = vmatpush1.msra.mxu0 %v1939
        %1975 = vmatprep.subr.mxu0 0.0
        %1976 = vmatpush1.msra.mxu0 %v1938
        %1977 = vmatprep.subr.mxu0 0.0
        %1978 = vmatpush1.msra.mxu0 %v1937
        %1979 = vmatprep.subr.mxu0 0.0
        %1980 = vmatpush1.msra.mxu0 %v1936
        %1981 = vmatprep.subr.mxu0 0.0
        %1982 = vmatpush1.msra.mxu0 %v1935
        %1983 = vmatprep.subr.mxu0 0.0
        %1984 = vmatpush2.msra.mxu0 0.0
        %1985 = vmatprep.subr.mxu0 0.0
        %1986 = vmatpush2.msra.mxu0 0.0
        %1987 = vmatprep.subr.mxu0 0.0
        %1988 = vmatpush2.msra.mxu0 0.0
        %1989 = vmatprep.subr.mxu0 0.0
        %1990 = vmatpush2.msra.mxu0 0.0
        %1991 = vmatprep.subr.mxu0 0.0
        %1992 = vmatpush2.msra.mxu0 0.0
        %1993 = vmatprep.subr.mxu0 0.0
        %1994 = vmatpush2.msra.mxu0 0.0
        %1995 = vmatprep.subr.mxu0 0.0
        %1996 = vmatpush2.msra.mxu0 0.0
        %1997 = vmatprep.subr.mxu0 0.0
        %1998 = vmatpush2.msra.mxu0 0.0
        %1999 = vmatprep.subr.mxu0 0.0
        %2000 = vmatpush2.msra.mxu0 0.0
        %2001 = vmatprep.subr.mxu0 0.0
        %2002 = vmatpush2.msra.mxu0 0.0
        %2003 = vmatprep.subr.mxu0 0.0
        %2004 = vmatpush2.msra.mxu0 0.0
        %2005 = vmatprep.subr.mxu0 0.0
        %2006 = vmatpush2.msra.mxu0 0.0
        %2007 = vmatprep.subr.mxu0 0.0
        %2008 = vmatpush2.msra.mxu0 0.0
        %2009 = vmatprep.subr.mxu0 0.0
        %2010 = vmatpush2.msra.mxu0 0.0
        %2011 = vmatprep.subr.mxu0 0.0
        %2012 = vmatpush2.msra.mxu0 0.0
        %2013 = vmatprep.subr.mxu0 0.0
        %2014 = vmatpush2.msra.mxu0 0.0
        %2015 = vmatprep.mubr.f32.mxu0 0.0
        %2016 = vmatmul.mubr.f32.gmra.mxu0 %v1934
        %v2017 = vpop.f32.mrf.mxu0
        %v2018 = vadd.f32 0.0, %v2017
        %v2019 = vpop.f32.mrf.mxu0
        %2020 = vdwg.mxu0
        %v2021 = vld [vmem:[%s17] sm:$0xff]
        %v2022 = vld [vmem:[%s17 + $0x8] sm:$0xff]
        %v2023 = vld [vmem:[%s17 + $0x10] sm:$0xff]
        %v2024 = vld [vmem:[%s17 + $0x18] sm:$0xff]
        %v2025 = vld [vmem:[%s17 + $0x20] sm:$0xff]
        %v2026 = vld [vmem:[%s17 + $0x28] sm:$0xff]
        %v2027 = vld [vmem:[%s17 + $0x30] sm:$0xff]
        %v2028 = vld [vmem:[%s17 + $0x38] sm:$0xff]
        %v2029 = vld [vmem:[%s17 + $0x40] sm:$0xff]
        %v2030 = vld [vmem:[%s17 + $0x48] sm:$0xff]
        %v2031 = vld [vmem:[%s17 + $0x50] sm:$0xff]
        %v2032 = vld [vmem:[%s17 + $0x58] sm:$0xff]
        %v2033 = vld [vmem:[%s17 + $0x60] sm:$0xff]
        %v2034 = vld [vmem:[%s17 + $0x68] sm:$0xff]
        %v2035 = vld [vmem:[%s17 + $0x70] sm:$0xff]
        %v2036 = vld [vmem:[%s17 + $0x78] sm:$0xff]
        %2037 = vmatprep.subr.mxu0 0.0
        %2038 = vmatpush1.msra.mxu0 %v2036
        %2039 = vmatprep.subr.mxu0 0.0
        %2040 = vmatpush1.msra.mxu0 %v2035
        %2041 = vmatprep.subr.mxu0 0.0
        %2042 = vmatpush1.msra.mxu0 %v2034
        %2043 = vmatprep.subr.mxu0 0.0
        %2044 = vmatpush1.msra.mxu0 %v2033
        %2045 = vmatprep.subr.mxu0 0.0
        %2046 = vmatpush1.msra.mxu0 %v2032
        %2047 = vmatprep.subr.mxu0 0.0
        %2048 = vmatpush1.msra.mxu0 %v2031
        %2049 = vmatprep.subr.mxu0 0.0
        %2050 = vmatpush1.msra.mxu0 %v2030
        %2051 = vmatprep.subr.mxu0 0.0
        %2052 = vmatpush1.msra.mxu0 %v2029
        %2053 = vmatprep.subr.mxu0 0.0
        %2054 = vmatpush1.msra.mxu0 %v2028
        %2055 = vmatprep.subr.mxu0 0.0
        %2056 = vmatpush1.msra.mxu0 %v2027
        %2057 = vmatprep.subr.mxu0 0.0
        %2058 = vmatpush1.msra.mxu0 %v2026
        %2059 = vmatprep.subr.mxu0 0.0
        %2060 = vmatpush1.msra.mxu0 %v2025
        %2061 = vmatprep.subr.mxu0 0.0
        %2062 = vmatpush1.msra.mxu0 %v2024
        %2063 = vmatprep.subr.mxu0 0.0
        %2064 = vmatpush1.msra.mxu0 %v2023
        %2065 = vmatprep.subr.mxu0 0.0
        %2066 = vmatpush1.msra.mxu0 %v2022
        %2067 = vmatprep.subr.mxu0 0.0
        %2068 = vmatpush1.msra.mxu0 %v2021
        %2069 = vmatprep.subr.mxu0 0.0
        %2070 = vmatpush2.msra.mxu0 0.0
        %2071 = vmatprep.subr.mxu0 0.0
        %2072 = vmatpush2.msra.mxu0 0.0
        %2073 = vmatprep.subr.mxu0 0.0
        %2074 = vmatpush2.msra.mxu0 0.0
        %2075 = vmatprep.subr.mxu0 0.0
        %2076 = vmatpush2.msra.mxu0 0.0
        %2077 = vmatprep.subr.mxu0 0.0
        %2078 = vmatpush2.msra.mxu0 0.0
        %2079 = vmatprep.subr.mxu0 0.0
        %2080 = vmatpush2.msra.mxu0 0.0
        %2081 = vmatprep.subr.mxu0 0.0
        %2082 = vmatpush2.msra.mxu0 0.0
        %2083 = vmatprep.subr.mxu0 0.0
        %2084 = vmatpush2.msra.mxu0 0.0
        %2085 = vmatprep.subr.mxu0 0.0
        %2086 = vmatpush2.msra.mxu0 0.0
        %2087 = vmatprep.subr.mxu0 0.0
        %2088 = vmatpush2.msra.mxu0 0.0
        %2089 = vmatprep.subr.mxu0 0.0
        %2090 = vmatpush2.msra.mxu0 0.0
        %2091 = vmatprep.subr.mxu0 0.0
        %2092 = vmatpush2.msra.mxu0 0.0
        %2093 = vmatprep.subr.mxu0 0.0
        %2094 = vmatpush2.msra.mxu0 0.0
        %2095 = vmatprep.subr.mxu0 0.0
        %2096 = vmatpush2.msra.mxu0 0.0
        %2097 = vmatprep.subr.mxu0 0.0
        %2098 = vmatpush2.msra.mxu0 0.0
        %2099 = vmatprep.subr.mxu0 0.0
        %2100 = vmatpush2.msra.mxu0 0.0
        %2101 = vmatprep.mubr.f32.mxu0 0.0
        %2102 = vmatmul.mubr.f32.gmra.mxu0 %v1934
        %v2103 = vpop.f32.mrf.mxu0
        %v2104 = vadd.f32 0.0, %v2103
        %v2105 = vpop.f32.mrf.mxu0
        %2106 = vdwg.mxu0
        %v2107 = vmax.f32 %v2018, %v2104
        %2108 = vst [vmem:[#allocation2] sm:$0xff] 0.0
        %2109 = vst [vmem:[#allocation2 + $0x8] sm:$0xff] 0.0
        %2110 = vst [vmem:[#allocation2 + $0x10] sm:$0xff] 0.0
        %2111 = vst [vmem:[#allocation2 + $0x18] sm:$0x1] 0.0
        %vm2112 = vcmask 523264
        %2113 = vst.msk [vmem:[#allocation2 + $0x8] sm:$0xff] %vm2112, %v2107
        %v2114 = vld [vmem:[#allocation2 + $0x7] sm:$0xff]
        %v2115 = vld [vmem:[#allocation11] sm:$0xff]
        %v2116 = vld [vmem:[#allocation11 + $0x8] sm:$0xff]
        %v2117 = vld [vmem:[#allocation11 + $0x10] sm:$0xff]
        %v2118 = vld [vmem:[#allocation11 + $0x18] sm:$0xff]
        %v2119 = vld [vmem:[#allocation11 + $0x20] sm:$0xff]
        %v2120 = vld [vmem:[#allocation11 + $0x28] sm:$0xff]
        %v2121 = vld [vmem:[#allocation11 + $0x30] sm:$0xff]
        %v2122 = vld [vmem:[#allocation11 + $0x38] sm:$0xff]
        %v2123 = vld [vmem:[#allocation2 + $0x8] sm:$0xff]
        %s2124 = scalar_lea.vmem [#allocation11], 64
        %v2125 = vld [vmem:[%s2124] sm:$0xff]
        %v2126 = vld [vmem:[%s2124 + $0x8] sm:$0xff]
        %v2127 = vld [vmem:[%s2124 + $0x10] sm:$0xff]
        %v2128 = vld [vmem:[%s2124 + $0x18] sm:$0xff]
        %v2129 = vld [vmem:[%s2124 + $0x20] sm:$0xff]
        %v2130 = vld [vmem:[%s2124 + $0x28] sm:$0xff]
        %v2131 = vld [vmem:[%s2124 + $0x30] sm:$0xff]
        %v2132 = vld [vmem:[%s2124 + $0x38] sm:$0xff]
        %v2134 = vsel %vm2112, %v2123, 0
        %2136 = vmatprep.subr.mxu0 0.0
        %2137 = vmatpush1.msra.mxu0 0.0
        %2138 = vmatprep.subr.mxu0 0.0
        %2139 = vmatpush1.msra.mxu0 0.0
        %2140 = vmatprep.subr.mxu0 0.0
        %2141 = vmatpush1.msra.mxu0 0.0
        %2142 = vmatprep.subr.mxu0 0.0
        %2143 = vmatpush1.msra.mxu0 0.0
        %2144 = vmatprep.subr.mxu0 0.0
        %2145 = vmatpush1.msra.mxu0 0.0
        %2146 = vmatprep.subr.mxu0 0.0
        %2147 = vmatpush1.msra.mxu0 0.0
        %2148 = vmatprep.subr.mxu0 0.0
        %2149 = vmatpush1.msra.mxu0 0.0
        %2150 = vmatprep.subr.mxu0 0.0
        %2151 = vmatpush1.msra.mxu0 0.0
        %2152 = vmatprep.subr.mxu0 0.0
        %2153 = vmatpush1.msra.mxu0 %v2132
        %2154 = vmatprep.subr.mxu0 0.0
        %2155 = vmatpush1.msra.mxu0 %v2131
        %2156 = vmatprep.subr.mxu0 0.0
        %2157 = vmatpush1.msra.mxu0 %v2130
        %2158 = vmatprep.subr.mxu0 0.0
        %2159 = vmatpush1.msra.mxu0 %v2129
        %2160 = vmatprep.subr.mxu0 0.0
        %2161 = vmatpush1.msra.mxu0 %v2128
        %2162 = vmatprep.subr.mxu0 0.0
        %2163 = vmatpush1.msra.mxu0 %v2127
        %2164 = vmatprep.subr.mxu0 0.0
        %2165 = vmatpush1.msra.mxu0 %v2126
        %2166 = vmatprep.subr.mxu0 0.0
        %2167 = vmatpush1.msra.mxu0 %v2125
        %2168 = vmatprep.subr.mxu0 0.0
        %2169 = vmatpush2.msra.mxu0 0.0
        %2170 = vmatprep.subr.mxu0 0.0
        %2171 = vmatpush2.msra.mxu0 0.0
        %2172 = vmatprep.subr.mxu0 0.0
        %2173 = vmatpush2.msra.mxu0 0.0
        %2174 = vmatprep.subr.mxu0 0.0
        %2175 = vmatpush2.msra.mxu0 0.0
        %2176 = vmatprep.subr.mxu0 0.0
        %2177 = vmatpush2.msra.mxu0 0.0
        %2178 = vmatprep.subr.mxu0 0.0
        %2179 = vmatpush2.msra.mxu0 0.0
        %2180 = vmatprep.subr.mxu0 0.0
        %2181 = vmatpush2.msra.mxu0 0.0
        %2182 = vmatprep.subr.mxu0 0.0
        %2183 = vmatpush2.msra.mxu0 0.0
        %2184 = vmatprep.subr.mxu0 0.0
        %2185 = vmatpush2.msra.mxu0 0.0
        %2186 = vmatprep.subr.mxu0 0.0
        %2187 = vmatpush2.msra.mxu0 0.0
        %2188 = vmatprep.subr.mxu0 0.0
        %2189 = vmatpush2.msra.mxu0 0.0
        %2190 = vmatprep.subr.mxu0 0.0
        %2191 = vmatpush2.msra.mxu0 0.0
        %2192 = vmatprep.subr.mxu0 0.0
        %2193 = vmatpush2.msra.mxu0 0.0
        %2194 = vmatprep.subr.mxu0 0.0
        %2195 = vmatpush2.msra.mxu0 0.0
        %2196 = vmatprep.subr.mxu0 0.0
        %2197 = vmatpush2.msra.mxu0 0.0
        %2198 = vmatprep.subr.mxu0 0.0
        %2199 = vmatpush2.msra.mxu0 0.0
        %2200 = vmatprep.mubr.f32.mxu0 0.0
        %2201 = vmatmul.mubr.f32.gmra.mxu0 %v2134
        %v2202 = vpop.f32.mrf.mxu0
        %v2203 = vadd.f32 0.0, %v2202
        %v2204 = vpop.f32.mrf.mxu0
        %2205 = vdwg.mxu0
        %v2207 = vsel %vm2112, %v2114, 0
        %2209 = vmatprep.subr.mxu0 0.0
        %2210 = vmatpush1.msra.mxu0 0.0
        %2211 = vmatprep.subr.mxu0 0.0
        %2212 = vmatpush1.msra.mxu0 0.0
        %2213 = vmatprep.subr.mxu0 0.0
        %2214 = vmatpush1.msra.mxu0 0.0
        %2215 = vmatprep.subr.mxu0 0.0
        %2216 = vmatpush1.msra.mxu0 0.0
        %2217 = vmatprep.subr.mxu0 0.0
        %2218 = vmatpush1.msra.mxu0 0.0
        %2219 = vmatprep.subr.mxu0 0.0
        %2220 = vmatpush1.msra.mxu0 0.0
        %2221 = vmatprep.subr.mxu0 0.0
        %2222 = vmatpush1.msra.mxu0 0.0
        %2223 = vmatprep.subr.mxu0 0.0
        %2224 = vmatpush1.msra.mxu0 0.0
        %2225 = vmatprep.subr.mxu0 0.0
        %2226 = vmatpush1.msra.mxu0 %v2122
        %2227 = vmatprep.subr.mxu0 0.0
        %2228 = vmatpush1.msra.mxu0 %v2121
        %2229 = vmatprep.subr.mxu0 0.0
        %2230 = vmatpush1.msra.mxu0 %v2120
        %2231 = vmatprep.subr.mxu0 0.0
        %2232 = vmatpush1.msra.mxu0 %v2119
        %2233 = vmatprep.subr.mxu0 0.0
        %2234 = vmatpush1.msra.mxu0 %v2118
        %2235 = vmatprep.subr.mxu0 0.0
        %2236 = vmatpush1.msra.mxu0 %v2117
        %2237 = vmatprep.subr.mxu0 0.0
        %2238 = vmatpush1.msra.mxu0 %v2116
        %2239 = vmatprep.subr.mxu0 0.0
        %2240 = vmatpush1.msra.mxu0 %v2115
        %2241 = vmatprep.subr.mxu0 0.0
        %2242 = vmatpush2.msra.mxu0 0.0
        %2243 = vmatprep.subr.mxu0 0.0
        %2244 = vmatpush2.msra.mxu0 0.0
        %2245 = vmatprep.subr.mxu0 0.0
        %2246 = vmatpush2.msra.mxu0 0.0
        %2247 = vmatprep.subr.mxu0 0.0
        %2248 = vmatpush2.msra.mxu0 0.0
        %2249 = vmatprep.subr.mxu0 0.0
        %2250 = vmatpush2.msra.mxu0 0.0
        %2251 = vmatprep.subr.mxu0 0.0
        %2252 = vmatpush2.msra.mxu0 0.0
        %2253 = vmatprep.subr.mxu0 0.0
        %2254 = vmatpush2.msra.mxu0 0.0
        %2255 = vmatprep.subr.mxu0 0.0
        %2256 = vmatpush2.msra.mxu0 0.0
        %2257 = vmatprep.subr.mxu0 0.0
        %2258 = vmatpush2.msra.mxu0 0.0
        %2259 = vmatprep.subr.mxu0 0.0
        %2260 = vmatpush2.msra.mxu0 0.0
        %2261 = vmatprep.subr.mxu0 0.0
        %2262 = vmatpush2.msra.mxu0 0.0
        %2263 = vmatprep.subr.mxu0 0.0
        %2264 = vmatpush2.msra.mxu0 0.0
        %2265 = vmatprep.subr.mxu0 0.0
        %2266 = vmatpush2.msra.mxu0 0.0
        %2267 = vmatprep.subr.mxu0 0.0
        %2268 = vmatpush2.msra.mxu0 0.0
        %2269 = vmatprep.subr.mxu0 0.0
        %2270 = vmatpush2.msra.mxu0 0.0
        %2271 = vmatprep.subr.mxu0 0.0
        %2272 = vmatpush2.msra.mxu0 0.0
        %2273 = vmatprep.mubr.f32.mxu0 0.0
        %2274 = vmatmul.mubr.f32.gmra.mxu0 %v2207
        %v2275 = vpop.f32.mrf.mxu0
        %v2276 = vadd.f32 %v2203, %v2275
        %v2277 = vpop.f32.mrf.mxu0
        %2278 = vdwg.mxu0
        %v2279 = vld [vmem:[#allocation2 + $0x9] sm:$0xff]
        %s2280 = scalar_lea.vmem [#allocation11], 128
        %v2281 = vld [vmem:[%s2280] sm:$0xff]
        %v2282 = vld [vmem:[%s2280 + $0x8] sm:$0xff]
        %v2283 = vld [vmem:[%s2280 + $0x10] sm:$0xff]
        %v2284 = vld [vmem:[%s2280 + $0x18] sm:$0xff]
        %v2285 = vld [vmem:[%s2280 + $0x20] sm:$0xff]
        %v2286 = vld [vmem:[%s2280 + $0x28] sm:$0xff]
        %v2287 = vld [vmem:[%s2280 + $0x30] sm:$0xff]
        %v2288 = vld [vmem:[%s2280 + $0x38] sm:$0xff]
        %v2290 = vsel %vm2112, %v2279, 0
        %2292 = vmatprep.subr.mxu0 0.0
        %2293 = vmatpush1.msra.mxu0 0.0
        %2294 = vmatprep.subr.mxu0 0.0
        %2295 = vmatpush1.msra.mxu0 0.0
        %2296 = vmatprep.subr.mxu0 0.0
        %2297 = vmatpush1.msra.mxu0 0.0
        %2298 = vmatprep.subr.mxu0 0.0
        %2299 = vmatpush1.msra.mxu0 0.0
        %2300 = vmatprep.subr.mxu0 0.0
        %2301 = vmatpush1.msra.mxu0 0.0
        %2302 = vmatprep.subr.mxu0 0.0
        %2303 = vmatpush1.msra.mxu0 0.0
        %2304 = vmatprep.subr.mxu0 0.0
        %2305 = vmatpush1.msra.mxu0 0.0
        %2306 = vmatprep.subr.mxu0 0.0
        %2307 = vmatpush1.msra.mxu0 0.0
        %2308 = vmatprep.subr.mxu0 0.0
        %2309 = vmatpush1.msra.mxu0 %v2288
        %2310 = vmatprep.subr.mxu0 0.0
        %2311 = vmatpush1.msra.mxu0 %v2287
        %2312 = vmatprep.subr.mxu0 0.0
        %2313 = vmatpush1.msra.mxu0 %v2286
        %2314 = vmatprep.subr.mxu0 0.0
        %2315 = vmatpush1.msra.mxu0 %v2285
        %2316 = vmatprep.subr.mxu0 0.0
        %2317 = vmatpush1.msra.mxu0 %v2284
        %2318 = vmatprep.subr.mxu0 0.0
        %2319 = vmatpush1.msra.mxu0 %v2283
        %2320 = vmatprep.subr.mxu0 0.0
        %2321 = vmatpush1.msra.mxu0 %v2282
        %2322 = vmatprep.subr.mxu0 0.0
        %2323 = vmatpush1.msra.mxu0 %v2281
        %2324 = vmatprep.subr.mxu0 0.0
        %2325 = vmatpush2.msra.mxu0 0.0
        %2326 = vmatprep.subr.mxu0 0.0
        %2327 = vmatpush2.msra.mxu0 0.0
        %2328 = vmatprep.subr.mxu0 0.0
        %2329 = vmatpush2.msra.mxu0 0.0
        %2330 = vmatprep.subr.mxu0 0.0
        %2331 = vmatpush2.msra.mxu0 0.0
        %2332 = vmatprep.subr.mxu0 0.0
        %2333 = vmatpush2.msra.mxu0 0.0
        %2334 = vmatprep.subr.mxu0 0.0
        %2335 = vmatpush2.msra.mxu0 0.0
        %2336 = vmatprep.subr.mxu0 0.0
        %2337 = vmatpush2.msra.mxu0 0.0
        %2338 = vmatprep.subr.mxu0 0.0
        %2339 = vmatpush2.msra.mxu0 0.0
        %2340 = vmatprep.subr.mxu0 0.0
        %2341 = vmatpush2.msra.mxu0 0.0
        %2342 = vmatprep.subr.mxu0 0.0
        %2343 = vmatpush2.msra.mxu0 0.0
        %2344 = vmatprep.subr.mxu0 0.0
        %2345 = vmatpush2.msra.mxu0 0.0
        %2346 = vmatprep.subr.mxu0 0.0
        %2347 = vmatpush2.msra.mxu0 0.0
        %2348 = vmatprep.subr.mxu0 0.0
        %2349 = vmatpush2.msra.mxu0 0.0
        %2350 = vmatprep.subr.mxu0 0.0
        %2351 = vmatpush2.msra.mxu0 0.0
        %2352 = vmatprep.subr.mxu0 0.0
        %2353 = vmatpush2.msra.mxu0 0.0
        %2354 = vmatprep.subr.mxu0 0.0
        %2355 = vmatpush2.msra.mxu0 0.0
        %2356 = vmatprep.mubr.f32.mxu0 0.0
        %2357 = vmatmul.mubr.f32.gmra.mxu0 %v2290
        %v2358 = vpop.f32.mrf.mxu0
        %v2359 = vadd.f32 0.0, %v2358
        %v2360 = vpop.f32.mrf.mxu0
        %2361 = vdwg.mxu0
        %v2362 = vadd.f32 %v2276, %v2359
        %v2363 = vld [vmem:[#allocation13] sm:$0x1]
        %v2365 = vlaneseq
        %v2366 = vshrl.u32 %v2365, 7
        %v2367 = vsub.s32 0, %v2366
        %v2368 = vrot.slane %v2363, %v2367
        %v2370 = vadd.f32 %v2362, %v2368
        %v2371 = vmax.f32 %v2370, 0.0
        %2372 = vst [vmem:[#allocation2] sm:$0xff] 0.0
        %2373 = vst [vmem:[#allocation2 + $0x8] sm:$0xff] 0.0
        %2374 = vst [vmem:[#allocation2 + $0x10] sm:$0xff] 0.0
        %2375 = vst [vmem:[#allocation2 + $0x18] sm:$0x1] 0.0
        %2376 = vst [vmem:[#allocation2 + $0x8] sm:$0xff] %v2371
        %v2377 = vld [vmem:[#allocation2 + $0x7] sm:$0xff]
        %v2378 = vld [vmem:[%s23] sm:$0xff]
        %v2379 = vld [vmem:[%s23 + $0x8] sm:$0xff]
        %v2380 = vld [vmem:[%s23 + $0x10] sm:$0xff]
        %v2381 = vld [vmem:[%s23 + $0x18] sm:$0xff]
        %v2382 = vld [vmem:[%s23 + $0x20] sm:$0xff]
        %v2383 = vld [vmem:[%s23 + $0x28] sm:$0xff]
        %v2384 = vld [vmem:[%s23 + $0x30] sm:$0xff]
        %v2385 = vld [vmem:[%s23 + $0x38] sm:$0xff]
        %v2386 = vld [vmem:[%s23 + $0x40] sm:$0xff]
        %v2387 = vld [vmem:[%s23 + $0x48] sm:$0xff]
        %v2388 = vld [vmem:[%s23 + $0x50] sm:$0xff]
        %v2389 = vld [vmem:[%s23 + $0x58] sm:$0xff]
        %v2390 = vld [vmem:[%s23 + $0x60] sm:$0xff]
        %v2391 = vld [vmem:[%s23 + $0x68] sm:$0xff]
        %v2392 = vld [vmem:[%s23 + $0x70] sm:$0xff]
        %v2393 = vld [vmem:[%s23 + $0x78] sm:$0xff]
        %v2394 = vld [vmem:[#allocation2 + $0x8] sm:$0xff]
        %s2395 = scalar_lea.vmem %s23, 128
        %v2396 = vld [vmem:[%s2395] sm:$0xff]
        %v2397 = vld [vmem:[%s2395 + $0x8] sm:$0xff]
        %v2398 = vld [vmem:[%s2395 + $0x10] sm:$0xff]
        %v2399 = vld [vmem:[%s2395 + $0x18] sm:$0xff]
        %v2400 = vld [vmem:[%s2395 + $0x20] sm:$0xff]
        %v2401 = vld [vmem:[%s2395 + $0x28] sm:$0xff]
        %v2402 = vld [vmem:[%s2395 + $0x30] sm:$0xff]
        %v2403 = vld [vmem:[%s2395 + $0x38] sm:$0xff]
        %v2404 = vld [vmem:[%s2395 + $0x40] sm:$0xff]
        %v2405 = vld [vmem:[%s2395 + $0x48] sm:$0xff]
        %v2406 = vld [vmem:[%s2395 + $0x50] sm:$0xff]
        %v2407 = vld [vmem:[%s2395 + $0x58] sm:$0xff]
        %v2408 = vld [vmem:[%s2395 + $0x60] sm:$0xff]
        %v2409 = vld [vmem:[%s2395 + $0x68] sm:$0xff]
        %v2410 = vld [vmem:[%s2395 + $0x70] sm:$0xff]
        %v2411 = vld [vmem:[%s2395 + $0x78] sm:$0xff]
        %2412 = vmatprep.subr.mxu0 0.0
        %2413 = vmatpush1.msra.mxu0 %v2411
        %2414 = vmatprep.subr.mxu0 0.0
        %2415 = vmatpush1.msra.mxu0 %v2410
        %2416 = vmatprep.subr.mxu0 0.0
        %2417 = vmatpush1.msra.mxu0 %v2409
        %2418 = vmatprep.subr.mxu0 0.0
        %2419 = vmatpush1.msra.mxu0 %v2408
        %2420 = vmatprep.subr.mxu0 0.0
        %2421 = vmatpush1.msra.mxu0 %v2407
        %2422 = vmatprep.subr.mxu0 0.0
        %2423 = vmatpush1.msra.mxu0 %v2406
        %2424 = vmatprep.subr.mxu0 0.0
        %2425 = vmatpush1.msra.mxu0 %v2405
        %2426 = vmatprep.subr.mxu0 0.0
        %2427 = vmatpush1.msra.mxu0 %v2404
        %2428 = vmatprep.subr.mxu0 0.0
        %2429 = vmatpush1.msra.mxu0 %v2403
        %2430 = vmatprep.subr.mxu0 0.0
        %2431 = vmatpush1.msra.mxu0 %v2402
        %2432 = vmatprep.subr.mxu0 0.0
        %2433 = vmatpush1.msra.mxu0 %v2401
        %2434 = vmatprep.subr.mxu0 0.0
        %2435 = vmatpush1.msra.mxu0 %v2400
        %2436 = vmatprep.subr.mxu0 0.0
        %2437 = vmatpush1.msra.mxu0 %v2399
        %2438 = vmatprep.subr.mxu0 0.0
        %2439 = vmatpush1.msra.mxu0 %v2398
        %2440 = vmatprep.subr.mxu0 0.0
        %2441 = vmatpush1.msra.mxu0 %v2397
        %2442 = vmatprep.subr.mxu0 0.0
        %2443 = vmatpush1.msra.mxu0 %v2396
        %2444 = vmatprep.subr.mxu0 0.0
        %2445 = vmatpush2.msra.mxu0 0.0
        %2446 = vmatprep.subr.mxu0 0.0
        %2447 = vmatpush2.msra.mxu0 0.0
        %2448 = vmatprep.subr.mxu0 0.0
        %2449 = vmatpush2.msra.mxu0 0.0
        %2450 = vmatprep.subr.mxu0 0.0
        %2451 = vmatpush2.msra.mxu0 0.0
        %2452 = vmatprep.subr.mxu0 0.0
        %2453 = vmatpush2.msra.mxu0 0.0
        %2454 = vmatprep.subr.mxu0 0.0
        %2455 = vmatpush2.msra.mxu0 0.0
        %2456 = vmatprep.subr.mxu0 0.0
        %2457 = vmatpush2.msra.mxu0 0.0
        %2458 = vmatprep.subr.mxu0 0.0
        %2459 = vmatpush2.msra.mxu0 0.0
        %2460 = vmatprep.subr.mxu0 0.0
        %2461 = vmatpush2.msra.mxu0 0.0
        %2462 = vmatprep.subr.mxu0 0.0
        %2463 = vmatpush2.msra.mxu0 0.0
        %2464 = vmatprep.subr.mxu0 0.0
        %2465 = vmatpush2.msra.mxu0 0.0
        %2466 = vmatprep.subr.mxu0 0.0
        %2467 = vmatpush2.msra.mxu0 0.0
        %2468 = vmatprep.subr.mxu0 0.0
        %2469 = vmatpush2.msra.mxu0 0.0
        %2470 = vmatprep.subr.mxu0 0.0
        %2471 = vmatpush2.msra.mxu0 0.0
        %2472 = vmatprep.subr.mxu0 0.0
        %2473 = vmatpush2.msra.mxu0 0.0
        %2474 = vmatprep.subr.mxu0 0.0
        %2475 = vmatpush2.msra.mxu0 0.0
        %2476 = vmatprep.mubr.f32.mxu0 0.0
        %2477 = vmatmul.mubr.f32.gmra.mxu0 %v2394
        %v2478 = vpop.f32.mrf.mxu0
        %v2479 = vadd.f32 0.0, %v2478
        %v2480 = vpop.f32.mrf.mxu0
        %2481 = vdwg.mxu0
        %2482 = vmatprep.subr.mxu0 0.0
        %2483 = vmatpush1.msra.mxu0 %v2393
        %2484 = vmatprep.subr.mxu0 0.0
        %2485 = vmatpush1.msra.mxu0 %v2392
        %2486 = vmatprep.subr.mxu0 0.0
        %2487 = vmatpush1.msra.mxu0 %v2391
        %2488 = vmatprep.subr.mxu0 0.0
        %2489 = vmatpush1.msra.mxu0 %v2390
        %2490 = vmatprep.subr.mxu0 0.0
        %2491 = vmatpush1.msra.mxu0 %v2389
        %2492 = vmatprep.subr.mxu0 0.0
        %2493 = vmatpush1.msra.mxu0 %v2388
        %2494 = vmatprep.subr.mxu0 0.0
        %2495 = vmatpush1.msra.mxu0 %v2387
        %2496 = vmatprep.subr.mxu0 0.0
        %2497 = vmatpush1.msra.mxu0 %v2386
        %2498 = vmatprep.subr.mxu0 0.0
        %2499 = vmatpush1.msra.mxu0 %v2385
        %2500 = vmatprep.subr.mxu0 0.0
        %2501 = vmatpush1.msra.mxu0 %v2384
        %2502 = vmatprep.subr.mxu0 0.0
        %2503 = vmatpush1.msra.mxu0 %v2383
        %2504 = vmatprep.subr.mxu0 0.0
        %2505 = vmatpush1.msra.mxu0 %v2382
        %2506 = vmatprep.subr.mxu0 0.0
        %2507 = vmatpush1.msra.mxu0 %v2381
        %2508 = vmatprep.subr.mxu0 0.0
        %2509 = vmatpush1.msra.mxu0 %v2380
        %2510 = vmatprep.subr.mxu0 0.0
        %2511 = vmatpush1.msra.mxu0 %v2379
        %2512 = vmatprep.subr.mxu0 0.0
        %2513 = vmatpush1.msra.mxu0 %v2378
        %2514 = vmatprep.subr.mxu0 0.0
        %2515 = vmatpush2.msra.mxu0 0.0
        %2516 = vmatprep.subr.mxu0 0.0
        %2517 = vmatpush2.msra.mxu0 0.0
        %2518 = vmatprep.subr.mxu0 0.0
        %2519 = vmatpush2.msra.mxu0 0.0
        %2520 = vmatprep.subr.mxu0 0.0
        %2521 = vmatpush2.msra.mxu0 0.0
        %2522 = vmatprep.subr.mxu0 0.0
        %2523 = vmatpush2.msra.mxu0 0.0
        %2524 = vmatprep.subr.mxu0 0.0
        %2525 = vmatpush2.msra.mxu0 0.0
        %2526 = vmatprep.subr.mxu0 0.0
        %2527 = vmatpush2.msra.mxu0 0.0
        %2528 = vmatprep.subr.mxu0 0.0
        %2529 = vmatpush2.msra.mxu0 0.0
        %2530 = vmatprep.subr.mxu0 0.0
        %2531 = vmatpush2.msra.mxu0 0.0
        %2532 = vmatprep.subr.mxu0 0.0
        %2533 = vmatpush2.msra.mxu0 0.0
        %2534 = vmatprep.subr.mxu0 0.0
        %2535 = vmatpush2.msra.mxu0 0.0
        %2536 = vmatprep.subr.mxu0 0.0
        %2537 = vmatpush2.msra.mxu0 0.0
        %2538 = vmatprep.subr.mxu0 0.0
        %2539 = vmatpush2.msra.mxu0 0.0
        %2540 = vmatprep.subr.mxu0 0.0
        %2541 = vmatpush2.msra.mxu0 0.0
        %2542 = vmatprep.subr.mxu0 0.0
        %2543 = vmatpush2.msra.mxu0 0.0
        %2544 = vmatprep.subr.mxu0 0.0
        %2545 = vmatpush2.msra.mxu0 0.0
        %2546 = vmatprep.mubr.f32.mxu0 0.0
        %2547 = vmatmul.mubr.f32.gmra.mxu0 %v2377
        %v2548 = vpop.f32.mrf.mxu0
        %v2549 = vadd.f32 %v2479, %v2548
        %v2550 = vpop.f32.mrf.mxu0
        %2551 = vdwg.mxu0
        %v2552 = vld [vmem:[#allocation2 + $0x9] sm:$0xff]
        %s2553 = scalar_lea.vmem %s23, 256
        %v2554 = vld [vmem:[%s2553] sm:$0xff]
        %v2555 = vld [vmem:[%s2553 + $0x8] sm:$0xff]
        %v2556 = vld [vmem:[%s2553 + $0x10] sm:$0xff]
        %v2557 = vld [vmem:[%s2553 + $0x18] sm:$0xff]
        %v2558 = vld [vmem:[%s2553 + $0x20] sm:$0xff]
        %v2559 = vld [vmem:[%s2553 + $0x28] sm:$0xff]
        %v2560 = vld [vmem:[%s2553 + $0x30] sm:$0xff]
        %v2561 = vld [vmem:[%s2553 + $0x38] sm:$0xff]
        %v2562 = vld [vmem:[%s2553 + $0x40] sm:$0xff]
        %v2563 = vld [vmem:[%s2553 + $0x48] sm:$0xff]
        %v2564 = vld [vmem:[%s2553 + $0x50] sm:$0xff]
        %v2565 = vld [vmem:[%s2553 + $0x58] sm:$0xff]
        %v2566 = vld [vmem:[%s2553 + $0x60] sm:$0xff]
        %v2567 = vld [vmem:[%s2553 + $0x68] sm:$0xff]
        %v2568 = vld [vmem:[%s2553 + $0x70] sm:$0xff]
        %v2569 = vld [vmem:[%s2553 + $0x78] sm:$0xff]
        %2570 = vmatprep.subr.mxu0 0.0
        %2571 = vmatpush1.msra.mxu0 %v2569
        %2572 = vmatprep.subr.mxu0 0.0
        %2573 = vmatpush1.msra.mxu0 %v2568
        %2574 = vmatprep.subr.mxu0 0.0
        %2575 = vmatpush1.msra.mxu0 %v2567
        %2576 = vmatprep.subr.mxu0 0.0
        %2577 = vmatpush1.msra.mxu0 %v2566
        %2578 = vmatprep.subr.mxu0 0.0
        %2579 = vmatpush1.msra.mxu0 %v2565
        %2580 = vmatprep.subr.mxu0 0.0
        %2581 = vmatpush1.msra.mxu0 %v2564
        %2582 = vmatprep.subr.mxu0 0.0
        %2583 = vmatpush1.msra.mxu0 %v2563
        %2584 = vmatprep.subr.mxu0 0.0
        %2585 = vmatpush1.msra.mxu0 %v2562
        %2586 = vmatprep.subr.mxu0 0.0
        %2587 = vmatpush1.msra.mxu0 %v2561
        %2588 = vmatprep.subr.mxu0 0.0
        %2589 = vmatpush1.msra.mxu0 %v2560
        %2590 = vmatprep.subr.mxu0 0.0
        %2591 = vmatpush1.msra.mxu0 %v2559
        %2592 = vmatprep.subr.mxu0 0.0
        %2593 = vmatpush1.msra.mxu0 %v2558
        %2594 = vmatprep.subr.mxu0 0.0
        %2595 = vmatpush1.msra.mxu0 %v2557
        %2596 = vmatprep.subr.mxu0 0.0
        %2597 = vmatpush1.msra.mxu0 %v2556
        %2598 = vmatprep.subr.mxu0 0.0
        %2599 = vmatpush1.msra.mxu0 %v2555
        %2600 = vmatprep.subr.mxu0 0.0
        %2601 = vmatpush1.msra.mxu0 %v2554
        %2602 = vmatprep.subr.mxu0 0.0
        %2603 = vmatpush2.msra.mxu0 0.0
        %2604 = vmatprep.subr.mxu0 0.0
        %2605 = vmatpush2.msra.mxu0 0.0
        %2606 = vmatprep.subr.mxu0 0.0
        %2607 = vmatpush2.msra.mxu0 0.0
        %2608 = vmatprep.subr.mxu0 0.0
        %2609 = vmatpush2.msra.mxu0 0.0
        %2610 = vmatprep.subr.mxu0 0.0
        %2611 = vmatpush2.msra.mxu0 0.0
        %2612 = vmatprep.subr.mxu0 0.0
        %2613 = vmatpush2.msra.mxu0 0.0
        %2614 = vmatprep.subr.mxu0 0.0
        %2615 = vmatpush2.msra.mxu0 0.0
        %2616 = vmatprep.subr.mxu0 0.0
        %2617 = vmatpush2.msra.mxu0 0.0
        %2618 = vmatprep.subr.mxu0 0.0
        %2619 = vmatpush2.msra.mxu0 0.0
        %2620 = vmatprep.subr.mxu0 0.0
        %2621 = vmatpush2.msra.mxu0 0.0
        %2622 = vmatprep.subr.mxu0 0.0
        %2623 = vmatpush2.msra.mxu0 0.0
        %2624 = vmatprep.subr.mxu0 0.0
        %2625 = vmatpush2.msra.mxu0 0.0
        %2626 = vmatprep.subr.mxu0 0.0
        %2627 = vmatpush2.msra.mxu0 0.0
        %2628 = vmatprep.subr.mxu0 0.0
        %2629 = vmatpush2.msra.mxu0 0.0
        %2630 = vmatprep.subr.mxu0 0.0
        %2631 = vmatpush2.msra.mxu0 0.0
        %2632 = vmatprep.subr.mxu0 0.0
        %2633 = vmatpush2.msra.mxu0 0.0
        %2634 = vmatprep.mubr.f32.mxu0 0.0
        %2635 = vmatmul.mubr.f32.gmra.mxu0 %v2552
        %v2636 = vpop.f32.mrf.mxu0
        %v2637 = vadd.f32 0.0, %v2636
        %v2638 = vpop.f32.mrf.mxu0
        %2639 = vdwg.mxu0
        %v2640 = vadd.f32 %v2549, %v2637
        %v2641 = vld [vmem:[#allocation14] sm:$0x1]
        %v2643 = vlaneseq
        %v2644 = vshrl.u32 %v2643, 7
        %v2645 = vsub.s32 0, %v2644
        %v2646 = vrot.slane %v2641, %v2645
        %v2648 = vadd.f32 %v2640, %v2646
        %v2649 = vmax.f32 %v2648, 0.0
        %v2650 = vld [vmem:[#allocation16] sm:$0xf]
        %vm2651 = vcmask 64512
        %v2653 = vsel %vm2651, %v2650, 0
        %2655 = vmatprep.subr.mxu0 0.0
        %2656 = vmatpush1.msra.mxu0 0.0
        %2657 = vmatprep.subr.mxu0 0.0
        %2658 = vmatpush1.msra.mxu0 0.0
        %2659 = vmatprep.subr.mxu0 0.0
        %2660 = vmatpush1.msra.mxu0 0.0
        %2661 = vmatprep.subr.mxu0 0.0
        %2662 = vmatpush1.msra.mxu0 0.0
        %2663 = vmatprep.subr.mxu0 0.0
        %2664 = vmatpush1.msra.mxu0 0.0
        %2665 = vmatprep.subr.mxu0 0.0
        %2666 = vmatpush1.msra.mxu0 0.0
        %2667 = vmatprep.subr.mxu0 0.0
        %2668 = vmatpush1.msra.mxu0 0.0
        %2669 = vmatprep.subr.mxu0 0.0
        %2670 = vmatpush1.msra.mxu0 0.0
        %2671 = vmatprep.subr.mxu0 0.0
        %2672 = vmatpush1.msra.mxu0 0.0
        %2673 = vmatprep.subr.mxu0 0.0
        %2674 = vmatpush1.msra.mxu0 0.0
        %2675 = vmatprep.subr.mxu0 0.0
        %2676 = vmatpush1.msra.mxu0 0.0
        %2677 = vmatprep.subr.mxu0 0.0
        %2678 = vmatpush1.msra.mxu0 0.0
        %2679 = vmatprep.subr.mxu0 0.0
        %2680 = vmatpush1.msra.mxu0 0.0
        %2681 = vmatprep.subr.mxu0 0.0
        %2682 = vmatpush1.msra.mxu0 0.0
        %2683 = vmatprep.subr.mxu0 0.0
        %2684 = vmatpush1.msra.mxu0 0.0
        %2685 = vmatprep.subr.mxu0 0.0
        %2686 = vmatpush1.msra.mxu0 %v2649
        %2687 = vmatprep.subr.mxu0 0.0
        %2688 = vmatpush2.msra.mxu0 0.0
        %2689 = vmatprep.subr.mxu0 0.0
        %2690 = vmatpush2.msra.mxu0 0.0
        %2691 = vmatprep.subr.mxu0 0.0
        %2692 = vmatpush2.msra.mxu0 0.0
        %2693 = vmatprep.subr.mxu0 0.0
        %2694 = vmatpush2.msra.mxu0 0.0
        %2695 = vmatprep.subr.mxu0 0.0
        %2696 = vmatpush2.msra.mxu0 0.0
        %2697 = vmatprep.subr.mxu0 0.0
        %2698 = vmatpush2.msra.mxu0 0.0
        %2699 = vmatprep.subr.mxu0 0.0
        %2700 = vmatpush2.msra.mxu0 0.0
        %2701 = vmatprep.subr.mxu0 0.0
        %2702 = vmatpush2.msra.mxu0 0.0
        %2703 = vmatprep.subr.mxu0 0.0
        %2704 = vmatpush2.msra.mxu0 0.0
        %2705 = vmatprep.subr.mxu0 0.0
        %2706 = vmatpush2.msra.mxu0 0.0
        %2707 = vmatprep.subr.mxu0 0.0
        %2708 = vmatpush2.msra.mxu0 0.0
        %2709 = vmatprep.subr.mxu0 0.0
        %2710 = vmatpush2.msra.mxu0 0.0
        %2711 = vmatprep.subr.mxu0 0.0
        %2712 = vmatpush2.msra.mxu0 0.0
        %2713 = vmatprep.subr.mxu0 0.0
        %2714 = vmatpush2.msra.mxu0 0.0
        %2715 = vmatprep.subr.mxu0 0.0
        %2716 = vmatpush2.msra.mxu0 0.0
        %2717 = vmatprep.subr.mxu0 0.0
        %2718 = vmatpush2.msra.mxu0 0.0
        %2719 = vmatprep.mubr.f32.mxu0 0.0
        %2720 = vmatmul.mubr.f32.gmra.mxu0 %v2653
        %v2721 = vpop.f32.mrf.mxu0
        %v2722 = vadd.f32 0.0, %v2721
        %v2723 = vpop.f32.mrf.mxu0
        %2724 = vdwg.mxu0
        %v2725 = vld [vmem:[#allocation17] sm:$0xf]
        %v2727 = vsel %vm2651, %v2725, 0
        %2729 = vmatprep.subr.mxu0 0.0
        %2730 = vmatpush1.msra.mxu0 0.0
        %2731 = vmatprep.subr.mxu0 0.0
        %2732 = vmatpush1.msra.mxu0 0.0
        %2733 = vmatprep.subr.mxu0 0.0
        %2734 = vmatpush1.msra.mxu0 0.0
        %2735 = vmatprep.subr.mxu0 0.0
        %2736 = vmatpush1.msra.mxu0 0.0
        %2737 = vmatprep.subr.mxu0 0.0
        %2738 = vmatpush1.msra.mxu0 0.0
        %2739 = vmatprep.subr.mxu0 0.0
        %2740 = vmatpush1.msra.mxu0 0.0
        %2741 = vmatprep.subr.mxu0 0.0
        %2742 = vmatpush1.msra.mxu0 0.0
        %2743 = vmatprep.subr.mxu0 0.0
        %2744 = vmatpush1.msra.mxu0 0.0
        %2745 = vmatprep.subr.mxu0 0.0
        %2746 = vmatpush1.msra.mxu0 0.0
        %2747 = vmatprep.subr.mxu0 0.0
        %2748 = vmatpush1.msra.mxu0 0.0
        %2749 = vmatprep.subr.mxu0 0.0
        %2750 = vmatpush1.msra.mxu0 0.0
        %2751 = vmatprep.subr.mxu0 0.0
        %2752 = vmatpush1.msra.mxu0 0.0
        %2753 = vmatprep.subr.mxu0 0.0
        %2754 = vmatpush1.msra.mxu0 0.0
        %2755 = vmatprep.subr.mxu0 0.0
        %2756 = vmatpush1.msra.mxu0 0.0
        %2757 = vmatprep.subr.mxu0 0.0
        %2758 = vmatpush1.msra.mxu0 0.0
        %2759 = vmatprep.subr.mxu0 0.0
        %2760 = vmatpush1.msra.mxu0 %v2649
        %2761 = vmatprep.subr.mxu0 0.0
        %2762 = vmatpush2.msra.mxu0 0.0
        %2763 = vmatprep.subr.mxu0 0.0
        %2764 = vmatpush2.msra.mxu0 0.0
        %2765 = vmatprep.subr.mxu0 0.0
        %2766 = vmatpush2.msra.mxu0 0.0
        %2767 = vmatprep.subr.mxu0 0.0
        %2768 = vmatpush2.msra.mxu0 0.0
        %2769 = vmatprep.subr.mxu0 0.0
        %2770 = vmatpush2.msra.mxu0 0.0
        %2771 = vmatprep.subr.mxu0 0.0
        %2772 = vmatpush2.msra.mxu0 0.0
        %2773 = vmatprep.subr.mxu0 0.0
        %2774 = vmatpush2.msra.mxu0 0.0
        %2775 = vmatprep.subr.mxu0 0.0
        %2776 = vmatpush2.msra.mxu0 0.0
        %2777 = vmatprep.subr.mxu0 0.0
        %2778 = vmatpush2.msra.mxu0 0.0
        %2779 = vmatprep.subr.mxu0 0.0
        %2780 = vmatpush2.msra.mxu0 0.0
        %2781 = vmatprep.subr.mxu0 0.0
        %2782 = vmatpush2.msra.mxu0 0.0
        %2783 = vmatprep.subr.mxu0 0.0
        %2784 = vmatpush2.msra.mxu0 0.0
        %2785 = vmatprep.subr.mxu0 0.0
        %2786 = vmatpush2.msra.mxu0 0.0
        %2787 = vmatprep.subr.mxu0 0.0
        %2788 = vmatpush2.msra.mxu0 0.0
        %2789 = vmatprep.subr.mxu0 0.0
        %2790 = vmatpush2.msra.mxu0 0.0
        %2791 = vmatprep.subr.mxu0 0.0
        %2792 = vmatpush2.msra.mxu0 0.0
        %2793 = vmatprep.mubr.f32.mxu0 0.0
        %2794 = vmatmul.mubr.f32.gmra.mxu0 %v2727
        %v2795 = vpop.f32.mrf.mxu0
        %v2796 = vadd.f32 0.0, %v2795
        %v2797 = vpop.f32.mrf.mxu0
        %2798 = vdwg.mxu0
        %v2799 = vmax.f32 %v2722, %v2796
        %v2800 = vld [vmem:[%s31] sm:$0xff]
        %v2801 = vld [vmem:[%s31 + $0x8] sm:$0xff]
        %v2802 = vld [vmem:[%s31 + $0x10] sm:$0xff]
        %v2803 = vld [vmem:[%s31 + $0x18] sm:$0xff]
        %v2804 = vld [vmem:[%s31 + $0x20] sm:$0xff]
        %v2805 = vld [vmem:[%s31 + $0x28] sm:$0xff]
        %v2806 = vld [vmem:[%s31 + $0x30] sm:$0xff]
        %v2807 = vld [vmem:[%s31 + $0x38] sm:$0xff]
        %v2808 = vld [vmem:[%s31 + $0x40] sm:$0xff]
        %v2809 = vld [vmem:[%s31 + $0x48] sm:$0xff]
        %v2810 = vld [vmem:[%s31 + $0x50] sm:$0xff]
        %v2811 = vld [vmem:[%s31 + $0x58] sm:$0xff]
        %v2812 = vld [vmem:[%s31 + $0x60] sm:$0xff]
        %v2813 = vld [vmem:[%s31 + $0x68] sm:$0xff]
        %v2814 = vld [vmem:[%s31 + $0x70] sm:$0xff]
        %v2815 = vld [vmem:[%s31 + $0x78] sm:$0xff]
        %2816 = vmatprep.subr.mxu0 0.0
        %2817 = vmatpush1.msra.mxu0 %v2815
        %2818 = vmatprep.subr.mxu0 0.0
        %2819 = vmatpush1.msra.mxu0 %v2814
        %2820 = vmatprep.subr.mxu0 0.0
        %2821 = vmatpush1.msra.mxu0 %v2813
        %2822 = vmatprep.subr.mxu0 0.0
        %2823 = vmatpush1.msra.mxu0 %v2812
        %2824 = vmatprep.subr.mxu0 0.0
        %2825 = vmatpush1.msra.mxu0 %v2811
        %2826 = vmatprep.subr.mxu0 0.0
        %2827 = vmatpush1.msra.mxu0 %v2810
        %2828 = vmatprep.subr.mxu0 0.0
        %2829 = vmatpush1.msra.mxu0 %v2809
        %2830 = vmatprep.subr.mxu0 0.0
        %2831 = vmatpush1.msra.mxu0 %v2808
        %2832 = vmatprep.subr.mxu0 0.0
        %2833 = vmatpush1.msra.mxu0 %v2807
        %2834 = vmatprep.subr.mxu0 0.0
        %2835 = vmatpush1.msra.mxu0 %v2806
        %2836 = vmatprep.subr.mxu0 0.0
        %2837 = vmatpush1.msra.mxu0 %v2805
        %2838 = vmatprep.subr.mxu0 0.0
        %2839 = vmatpush1.msra.mxu0 %v2804
        %2840 = vmatprep.subr.mxu0 0.0
        %2841 = vmatpush1.msra.mxu0 %v2803
        %2842 = vmatprep.subr.mxu0 0.0
        %2843 = vmatpush1.msra.mxu0 %v2802
        %2844 = vmatprep.subr.mxu0 0.0
        %2845 = vmatpush1.msra.mxu0 %v2801
        %2846 = vmatprep.subr.mxu0 0.0
        %2847 = vmatpush1.msra.mxu0 %v2800
        %2848 = vmatprep.subr.mxu0 0.0
        %2849 = vmatpush2.msra.mxu0 0.0
        %2850 = vmatprep.subr.mxu0 0.0
        %2851 = vmatpush2.msra.mxu0 0.0
        %2852 = vmatprep.subr.mxu0 0.0
        %2853 = vmatpush2.msra.mxu0 0.0
        %2854 = vmatprep.subr.mxu0 0.0
        %2855 = vmatpush2.msra.mxu0 0.0
        %2856 = vmatprep.subr.mxu0 0.0
        %2857 = vmatpush2.msra.mxu0 0.0
        %2858 = vmatprep.subr.mxu0 0.0
        %2859 = vmatpush2.msra.mxu0 0.0
        %2860 = vmatprep.subr.mxu0 0.0
        %2861 = vmatpush2.msra.mxu0 0.0
        %2862 = vmatprep.subr.mxu0 0.0
        %2863 = vmatpush2.msra.mxu0 0.0
        %2864 = vmatprep.subr.mxu0 0.0
        %2865 = vmatpush2.msra.mxu0 0.0
        %2866 = vmatprep.subr.mxu0 0.0
        %2867 = vmatpush2.msra.mxu0 0.0
        %2868 = vmatprep.subr.mxu0 0.0
        %2869 = vmatpush2.msra.mxu0 0.0
        %2870 = vmatprep.subr.mxu0 0.0
        %2871 = vmatpush2.msra.mxu0 0.0
        %2872 = vmatprep.subr.mxu0 0.0
        %2873 = vmatpush2.msra.mxu0 0.0
        %2874 = vmatprep.subr.mxu0 0.0
        %2875 = vmatpush2.msra.mxu0 0.0
        %2876 = vmatprep.subr.mxu0 0.0
        %2877 = vmatpush2.msra.mxu0 0.0
        %2878 = vmatprep.subr.mxu0 0.0
        %2879 = vmatpush2.msra.mxu0 0.0
        %2880 = vmatprep.mubr.f32.mxu0 0.0
        %2881 = vmatmul.mubr.f32.gmra.mxu0 %v2799
        %v2882 = vpop.f32.mrf.mxu0
        %v2883 = vadd.f32 0.0, %v2882
        %v2884 = vpop.f32.mrf.mxu0
        %2885 = vdwg.mxu0
        %v2886 = vld [vmem:[%s33] sm:$0xff]
        %v2887 = vld [vmem:[%s33 + $0x8] sm:$0xff]
        %v2888 = vld [vmem:[%s33 + $0x10] sm:$0xff]
        %v2889 = vld [vmem:[%s33 + $0x18] sm:$0xff]
        %v2890 = vld [vmem:[%s33 + $0x20] sm:$0xff]
        %v2891 = vld [vmem:[%s33 + $0x28] sm:$0xff]
        %v2892 = vld [vmem:[%s33 + $0x30] sm:$0xff]
        %v2893 = vld [vmem:[%s33 + $0x38] sm:$0xff]
        %v2894 = vld [vmem:[%s33 + $0x40] sm:$0xff]
        %v2895 = vld [vmem:[%s33 + $0x48] sm:$0xff]
        %v2896 = vld [vmem:[%s33 + $0x50] sm:$0xff]
        %v2897 = vld [vmem:[%s33 + $0x58] sm:$0xff]
        %v2898 = vld [vmem:[%s33 + $0x60] sm:$0xff]
        %v2899 = vld [vmem:[%s33 + $0x68] sm:$0xff]
        %v2900 = vld [vmem:[%s33 + $0x70] sm:$0xff]
        %v2901 = vld [vmem:[%s33 + $0x78] sm:$0xff]
        %2902 = vmatprep.subr.mxu0 0.0
        %2903 = vmatpush1.msra.mxu0 %v2901
        %2904 = vmatprep.subr.mxu0 0.0
        %2905 = vmatpush1.msra.mxu0 %v2900
        %2906 = vmatprep.subr.mxu0 0.0
        %2907 = vmatpush1.msra.mxu0 %v2899
        %2908 = vmatprep.subr.mxu0 0.0
        %2909 = vmatpush1.msra.mxu0 %v2898
        %2910 = vmatprep.subr.mxu0 0.0
        %2911 = vmatpush1.msra.mxu0 %v2897
        %2912 = vmatprep.subr.mxu0 0.0
        %2913 = vmatpush1.msra.mxu0 %v2896
        %2914 = vmatprep.subr.mxu0 0.0
        %2915 = vmatpush1.msra.mxu0 %v2895
        %2916 = vmatprep.subr.mxu0 0.0
        %2917 = vmatpush1.msra.mxu0 %v2894
        %2918 = vmatprep.subr.mxu0 0.0
        %2919 = vmatpush1.msra.mxu0 %v2893
        %2920 = vmatprep.subr.mxu0 0.0
        %2921 = vmatpush1.msra.mxu0 %v2892
        %2922 = vmatprep.subr.mxu0 0.0
        %2923 = vmatpush1.msra.mxu0 %v2891
        %2924 = vmatprep.subr.mxu0 0.0
        %2925 = vmatpush1.msra.mxu0 %v2890
        %2926 = vmatprep.subr.mxu0 0.0
        %2927 = vmatpush1.msra.mxu0 %v2889
        %2928 = vmatprep.subr.mxu0 0.0
        %2929 = vmatpush1.msra.mxu0 %v2888
        %2930 = vmatprep.subr.mxu0 0.0
        %2931 = vmatpush1.msra.mxu0 %v2887
        %2932 = vmatprep.subr.mxu0 0.0
        %2933 = vmatpush1.msra.mxu0 %v2886
        %2934 = vmatprep.subr.mxu0 0.0
        %2935 = vmatpush2.msra.mxu0 0.0
        %2936 = vmatprep.subr.mxu0 0.0
        %2937 = vmatpush2.msra.mxu0 0.0
        %2938 = vmatprep.subr.mxu0 0.0
        %2939 = vmatpush2.msra.mxu0 0.0
        %2940 = vmatprep.subr.mxu0 0.0
        %2941 = vmatpush2.msra.mxu0 0.0
        %2942 = vmatprep.subr.mxu0 0.0
        %2943 = vmatpush2.msra.mxu0 0.0
        %2944 = vmatprep.subr.mxu0 0.0
        %2945 = vmatpush2.msra.mxu0 0.0
        %2946 = vmatprep.subr.mxu0 0.0
        %2947 = vmatpush2.msra.mxu0 0.0
        %2948 = vmatprep.subr.mxu0 0.0
        %2949 = vmatpush2.msra.mxu0 0.0
        %2950 = vmatprep.subr.mxu0 0.0
        %2951 = vmatpush2.msra.mxu0 0.0
        %2952 = vmatprep.subr.mxu0 0.0
        %2953 = vmatpush2.msra.mxu0 0.0
        %2954 = vmatprep.subr.mxu0 0.0
        %2955 = vmatpush2.msra.mxu0 0.0
        %2956 = vmatprep.subr.mxu0 0.0
        %2957 = vmatpush2.msra.mxu0 0.0
        %2958 = vmatprep.subr.mxu0 0.0
        %2959 = vmatpush2.msra.mxu0 0.0
        %2960 = vmatprep.subr.mxu0 0.0
        %2961 = vmatpush2.msra.mxu0 0.0
        %2962 = vmatprep.subr.mxu0 0.0
        %2963 = vmatpush2.msra.mxu0 0.0
        %2964 = vmatprep.subr.mxu0 0.0
        %2965 = vmatpush2.msra.mxu0 0.0
        %2966 = vmatprep.mubr.f32.mxu0 0.0
        %2967 = vmatmul.mubr.f32.gmra.mxu0 %v2799
        %v2968 = vpop.f32.mrf.mxu0
        %v2969 = vadd.f32 0.0, %v2968
        %v2970 = vpop.f32.mrf.mxu0
        %2971 = vdwg.mxu0
        %v2972 = vmax.f32 %v2883, %v2969
        %2973 = vst [vmem:[#allocation2] sm:$0xff] 0.0
        %2974 = vst [vmem:[#allocation2 + $0x8] sm:$0xff] 0.0
        %2975 = vst [vmem:[#allocation2 + $0x10] sm:$0xff] 0.0
        %2976 = vst [vmem:[#allocation2 + $0x18] sm:$0x1] 0.0
        %vm2977 = vcmask 519168
        %2978 = vst.msk [vmem:[#allocation2 + $0x8] sm:$0xf] %vm2977, %v2972
        %v2979 = vld [vmem:[#allocation2 + $0x7] sm:$0xf]
        %v2980 = vld [vmem:[#allocation19] sm:$0xff]
        %v2981 = vld [vmem:[#allocation19 + $0x8] sm:$0xff]
        %v2982 = vld [vmem:[#allocation19 + $0x10] sm:$0xff]
        %v2983 = vld [vmem:[#allocation19 + $0x18] sm:$0xff]
        %v2984 = vld [vmem:[#allocation19 + $0x20] sm:$0xff]
        %v2985 = vld [vmem:[#allocation19 + $0x28] sm:$0xff]
        %v2986 = vld [vmem:[#allocation19 + $0x30] sm:$0xff]
        %v2987 = vld [vmem:[#allocation19 + $0x38] sm:$0xff]
        %v2988 = vld [vmem:[#allocation2 + $0x8] sm:$0xf]
        %s2989 = scalar_lea.vmem [#allocation19], 64
        %v2990 = vld [vmem:[%s2989] sm:$0xff]
        %v2991 = vld [vmem:[%s2989 + $0x8] sm:$0xff]
        %v2992 = vld [vmem:[%s2989 + $0x10] sm:$0xff]
        %v2993 = vld [vmem:[%s2989 + $0x18] sm:$0xff]
        %v2994 = vld [vmem:[%s2989 + $0x20] sm:$0xff]
        %v2995 = vld [vmem:[%s2989 + $0x28] sm:$0xff]
        %v2996 = vld [vmem:[%s2989 + $0x30] sm:$0xff]
        %v2997 = vld [vmem:[%s2989 + $0x38] sm:$0xff]
        %v2999 = vsel %vm2112, %v2988, 0
        %3001 = vmatprep.subr.mxu0 0.0
        %3002 = vmatpush1.msra.mxu0 0.0
        %3003 = vmatprep.subr.mxu0 0.0
        %3004 = vmatpush1.msra.mxu0 0.0
        %3005 = vmatprep.subr.mxu0 0.0
        %3006 = vmatpush1.msra.mxu0 0.0
        %3007 = vmatprep.subr.mxu0 0.0
        %3008 = vmatpush1.msra.mxu0 0.0
        %3009 = vmatprep.subr.mxu0 0.0
        %3010 = vmatpush1.msra.mxu0 0.0
        %3011 = vmatprep.subr.mxu0 0.0
        %3012 = vmatpush1.msra.mxu0 0.0
        %3013 = vmatprep.subr.mxu0 0.0
        %3014 = vmatpush1.msra.mxu0 0.0
        %3015 = vmatprep.subr.mxu0 0.0
        %3016 = vmatpush1.msra.mxu0 0.0
        %3017 = vmatprep.subr.mxu0 0.0
        %3018 = vmatpush1.msra.mxu0 %v2997
        %3019 = vmatprep.subr.mxu0 0.0
        %3020 = vmatpush1.msra.mxu0 %v2996
        %3021 = vmatprep.subr.mxu0 0.0
        %3022 = vmatpush1.msra.mxu0 %v2995
        %3023 = vmatprep.subr.mxu0 0.0
        %3024 = vmatpush1.msra.mxu0 %v2994
        %3025 = vmatprep.subr.mxu0 0.0
        %3026 = vmatpush1.msra.mxu0 %v2993
        %3027 = vmatprep.subr.mxu0 0.0
        %3028 = vmatpush1.msra.mxu0 %v2992
        %3029 = vmatprep.subr.mxu0 0.0
        %3030 = vmatpush1.msra.mxu0 %v2991
        %3031 = vmatprep.subr.mxu0 0.0
        %3032 = vmatpush1.msra.mxu0 %v2990
        %3033 = vmatprep.subr.mxu0 0.0
        %3034 = vmatpush2.msra.mxu0 0.0
        %3035 = vmatprep.subr.mxu0 0.0
        %3036 = vmatpush2.msra.mxu0 0.0
        %3037 = vmatprep.subr.mxu0 0.0
        %3038 = vmatpush2.msra.mxu0 0.0
        %3039 = vmatprep.subr.mxu0 0.0
        %3040 = vmatpush2.msra.mxu0 0.0
        %3041 = vmatprep.subr.mxu0 0.0
        %3042 = vmatpush2.msra.mxu0 0.0
        %3043 = vmatprep.subr.mxu0 0.0
        %3044 = vmatpush2.msra.mxu0 0.0
        %3045 = vmatprep.subr.mxu0 0.0
        %3046 = vmatpush2.msra.mxu0 0.0
        %3047 = vmatprep.subr.mxu0 0.0
        %3048 = vmatpush2.msra.mxu0 0.0
        %3049 = vmatprep.subr.mxu0 0.0
        %3050 = vmatpush2.msra.mxu0 0.0
        %3051 = vmatprep.subr.mxu0 0.0
        %3052 = vmatpush2.msra.mxu0 0.0
        %3053 = vmatprep.subr.mxu0 0.0
        %3054 = vmatpush2.msra.mxu0 0.0
        %3055 = vmatprep.subr.mxu0 0.0
        %3056 = vmatpush2.msra.mxu0 0.0
        %3057 = vmatprep.subr.mxu0 0.0
        %3058 = vmatpush2.msra.mxu0 0.0
        %3059 = vmatprep.subr.mxu0 0.0
        %3060 = vmatpush2.msra.mxu0 0.0
        %3061 = vmatprep.subr.mxu0 0.0
        %3062 = vmatpush2.msra.mxu0 0.0
        %3063 = vmatprep.subr.mxu0 0.0
        %3064 = vmatpush2.msra.mxu0 0.0
        %3065 = vmatprep.mubr.f32.mxu0 0.0
        %3066 = vmatmul.mubr.f32.gmra.mxu0 %v2999
        %v3067 = vpop.f32.mrf.mxu0
        %v3068 = vadd.f32 0.0, %v3067
        %v3069 = vpop.f32.mrf.mxu0
        %3070 = vdwg.mxu0
        %v3072 = vsel %vm2112, %v2979, 0
        %3074 = vmatprep.subr.mxu0 0.0
        %3075 = vmatpush1.msra.mxu0 0.0
        %3076 = vmatprep.subr.mxu0 0.0
        %3077 = vmatpush1.msra.mxu0 0.0
        %3078 = vmatprep.subr.mxu0 0.0
        %3079 = vmatpush1.msra.mxu0 0.0
        %3080 = vmatprep.subr.mxu0 0.0
        %3081 = vmatpush1.msra.mxu0 0.0
        %3082 = vmatprep.subr.mxu0 0.0
        %3083 = vmatpush1.msra.mxu0 0.0
        %3084 = vmatprep.subr.mxu0 0.0
        %3085 = vmatpush1.msra.mxu0 0.0
        %3086 = vmatprep.subr.mxu0 0.0
        %3087 = vmatpush1.msra.mxu0 0.0
        %3088 = vmatprep.subr.mxu0 0.0
        %3089 = vmatpush1.msra.mxu0 0.0
        %3090 = vmatprep.subr.mxu0 0.0
        %3091 = vmatpush1.msra.mxu0 %v2987
        %3092 = vmatprep.subr.mxu0 0.0
        %3093 = vmatpush1.msra.mxu0 %v2986
        %3094 = vmatprep.subr.mxu0 0.0
        %3095 = vmatpush1.msra.mxu0 %v2985
        %3096 = vmatprep.subr.mxu0 0.0
        %3097 = vmatpush1.msra.mxu0 %v2984
        %3098 = vmatprep.subr.mxu0 0.0
        %3099 = vmatpush1.msra.mxu0 %v2983
        %3100 = vmatprep.subr.mxu0 0.0
        %3101 = vmatpush1.msra.mxu0 %v2982
        %3102 = vmatprep.subr.mxu0 0.0
        %3103 = vmatpush1.msra.mxu0 %v2981
        %3104 = vmatprep.subr.mxu0 0.0
        %3105 = vmatpush1.msra.mxu0 %v2980
        %3106 = vmatprep.subr.mxu0 0.0
        %3107 = vmatpush2.msra.mxu0 0.0
        %3108 = vmatprep.subr.mxu0 0.0
        %3109 = vmatpush2.msra.mxu0 0.0
        %3110 = vmatprep.subr.mxu0 0.0
        %3111 = vmatpush2.msra.mxu0 0.0
        %3112 = vmatprep.subr.mxu0 0.0
        %3113 = vmatpush2.msra.mxu0 0.0
        %3114 = vmatprep.subr.mxu0 0.0
        %3115 = vmatpush2.msra.mxu0 0.0
        %3116 = vmatprep.subr.mxu0 0.0
        %3117 = vmatpush2.msra.mxu0 0.0
        %3118 = vmatprep.subr.mxu0 0.0
        %3119 = vmatpush2.msra.mxu0 0.0
        %3120 = vmatprep.subr.mxu0 0.0
        %3121 = vmatpush2.msra.mxu0 0.0
        %3122 = vmatprep.subr.mxu0 0.0
        %3123 = vmatpush2.msra.mxu0 0.0
        %3124 = vmatprep.subr.mxu0 0.0
        %3125 = vmatpush2.msra.mxu0 0.0
        %3126 = vmatprep.subr.mxu0 0.0
        %3127 = vmatpush2.msra.mxu0 0.0
        %3128 = vmatprep.subr.mxu0 0.0
        %3129 = vmatpush2.msra.mxu0 0.0
        %3130 = vmatprep.subr.mxu0 0.0
        %3131 = vmatpush2.msra.mxu0 0.0
        %3132 = vmatprep.subr.mxu0 0.0
        %3133 = vmatpush2.msra.mxu0 0.0
        %3134 = vmatprep.subr.mxu0 0.0
        %3135 = vmatpush2.msra.mxu0 0.0
        %3136 = vmatprep.subr.mxu0 0.0
        %3137 = vmatpush2.msra.mxu0 0.0
        %3138 = vmatprep.mubr.f32.mxu0 0.0
        %3139 = vmatmul.mubr.f32.gmra.mxu0 %v3072
        %v3140 = vpop.f32.mrf.mxu0
        %v3141 = vadd.f32 %v3068, %v3140
        %v3142 = vpop.f32.mrf.mxu0
        %3143 = vdwg.mxu0
        %v3144 = vld [vmem:[#allocation2 + $0x9] sm:$0xf]
        %s3145 = scalar_lea.vmem [#allocation19], 128
        %v3146 = vld [vmem:[%s3145] sm:$0xff]
        %v3147 = vld [vmem:[%s3145 + $0x8] sm:$0xff]
        %v3148 = vld [vmem:[%s3145 + $0x10] sm:$0xff]
        %v3149 = vld [vmem:[%s3145 + $0x18] sm:$0xff]
        %v3150 = vld [vmem:[%s3145 + $0x20] sm:$0xff]
        %v3151 = vld [vmem:[%s3145 + $0x28] sm:$0xff]
        %v3152 = vld [vmem:[%s3145 + $0x30] sm:$0xff]
        %v3153 = vld [vmem:[%s3145 + $0x38] sm:$0xff]
        %v3155 = vsel %vm2112, %v3144, 0
        %3157 = vmatprep.subr.mxu0 0.0
        %3158 = vmatpush1.msra.mxu0 0.0
        %3159 = vmatprep.subr.mxu0 0.0
        %3160 = vmatpush1.msra.mxu0 0.0
        %3161 = vmatprep.subr.mxu0 0.0
        %3162 = vmatpush1.msra.mxu0 0.0
        %3163 = vmatprep.subr.mxu0 0.0
        %3164 = vmatpush1.msra.mxu0 0.0
        %3165 = vmatprep.subr.mxu0 0.0
        %3166 = vmatpush1.msra.mxu0 0.0
        %3167 = vmatprep.subr.mxu0 0.0
        %3168 = vmatpush1.msra.mxu0 0.0
        %3169 = vmatprep.subr.mxu0 0.0
        %3170 = vmatpush1.msra.mxu0 0.0
        %3171 = vmatprep.subr.mxu0 0.0
        %3172 = vmatpush1.msra.mxu0 0.0
        %3173 = vmatprep.subr.mxu0 0.0
        %3174 = vmatpush1.msra.mxu0 %v3153
        %3175 = vmatprep.subr.mxu0 0.0
        %3176 = vmatpush1.msra.mxu0 %v3152
        %3177 = vmatprep.subr.mxu0 0.0
        %3178 = vmatpush1.msra.mxu0 %v3151
        %3179 = vmatprep.subr.mxu0 0.0
        %3180 = vmatpush1.msra.mxu0 %v3150
        %3181 = vmatprep.subr.mxu0 0.0
        %3182 = vmatpush1.msra.mxu0 %v3149
        %3183 = vmatprep.subr.mxu0 0.0
        %3184 = vmatpush1.msra.mxu0 %v3148
        %3185 = vmatprep.subr.mxu0 0.0
        %3186 = vmatpush1.msra.mxu0 %v3147
        %3187 = vmatprep.subr.mxu0 0.0
        %3188 = vmatpush1.msra.mxu0 %v3146
        %3189 = vmatprep.subr.mxu0 0.0
        %3190 = vmatpush2.msra.mxu0 0.0
        %3191 = vmatprep.subr.mxu0 0.0
        %3192 = vmatpush2.msra.mxu0 0.0
        %3193 = vmatprep.subr.mxu0 0.0
        %3194 = vmatpush2.msra.mxu0 0.0
        %3195 = vmatprep.subr.mxu0 0.0
        %3196 = vmatpush2.msra.mxu0 0.0
        %3197 = vmatprep.subr.mxu0 0.0
        %3198 = vmatpush2.msra.mxu0 0.0
        %3199 = vmatprep.subr.mxu0 0.0
        %3200 = vmatpush2.msra.mxu0 0.0
        %3201 = vmatprep.subr.mxu0 0.0
        %3202 = vmatpush2.msra.mxu0 0.0
        %3203 = vmatprep.subr.mxu0 0.0
        %3204 = vmatpush2.msra.mxu0 0.0
        %3205 = vmatprep.subr.mxu0 0.0
        %3206 = vmatpush2.msra.mxu0 0.0
        %3207 = vmatprep.subr.mxu0 0.0
        %3208 = vmatpush2.msra.mxu0 0.0
        %3209 = vmatprep.subr.mxu0 0.0
        %3210 = vmatpush2.msra.mxu0 0.0
        %3211 = vmatprep.subr.mxu0 0.0
        %3212 = vmatpush2.msra.mxu0 0.0
        %3213 = vmatprep.subr.mxu0 0.0
        %3214 = vmatpush2.msra.mxu0 0.0
        %3215 = vmatprep.subr.mxu0 0.0
        %3216 = vmatpush2.msra.mxu0 0.0
        %3217 = vmatprep.subr.mxu0 0.0
        %3218 = vmatpush2.msra.mxu0 0.0
        %3219 = vmatprep.subr.mxu0 0.0
        %3220 = vmatpush2.msra.mxu0 0.0
        %3221 = vmatprep.mubr.f32.mxu0 0.0
        %3222 = vmatmul.mubr.f32.gmra.mxu0 %v3155
        %v3223 = vpop.f32.mrf.mxu0
        %v3224 = vadd.f32 0.0, %v3223
        %v3225 = vpop.f32.mrf.mxu0
        %3226 = vdwg.mxu0
        %v3227 = vadd.f32 %v3141, %v3224
        %v3228 = vld [vmem:[#allocation20] sm:$0x1]
        %v3230 = vlaneseq
        %v3231 = vshrl.u32 %v3230, 7
        %v3232 = vsub.s32 0, %v3231
        %v3233 = vrot.slane %v3228, %v3232
        %v3235 = vadd.f32 %v3227, %v3233
        %v3236 = vmax.f32 %v3235, 0.0
        %3237 = vst [vmem:[#allocation2] sm:$0xff] 0.0
        %3238 = vst [vmem:[#allocation2 + $0x8] sm:$0xff] 0.0
        %3239 = vst [vmem:[#allocation2 + $0x10] sm:$0xff] 0.0
        %3240 = vst [vmem:[#allocation2 + $0x18] sm:$0x1] 0.0
        %3241 = vst.msk [vmem:[#allocation2 + $0x8] sm:$0xf] %vm2977, %v3236
        %v3242 = vld [vmem:[#allocation2 + $0x7] sm:$0xf]
        %v3243 = vld [vmem:[#allocation22] sm:$0xff]
        %v3244 = vld [vmem:[#allocation22 + $0x8] sm:$0xff]
        %v3245 = vld [vmem:[#allocation22 + $0x10] sm:$0xff]
        %v3246 = vld [vmem:[#allocation22 + $0x18] sm:$0xff]
        %v3247 = vld [vmem:[#allocation22 + $0x20] sm:$0xff]
        %v3248 = vld [vmem:[#allocation22 + $0x28] sm:$0xff]
        %v3249 = vld [vmem:[#allocation22 + $0x30] sm:$0xff]
        %v3250 = vld [vmem:[#allocation22 + $0x38] sm:$0xff]
        %v3251 = vld [vmem:[#allocation2 + $0x8] sm:$0xf]
        %s3252 = scalar_lea.vmem [#allocation22], 64
        %v3253 = vld [vmem:[%s3252] sm:$0xff]
        %v3254 = vld [vmem:[%s3252 + $0x8] sm:$0xff]
        %v3255 = vld [vmem:[%s3252 + $0x10] sm:$0xff]
        %v3256 = vld [vmem:[%s3252 + $0x18] sm:$0xff]
        %v3257 = vld [vmem:[%s3252 + $0x20] sm:$0xff]
        %v3258 = vld [vmem:[%s3252 + $0x28] sm:$0xff]
        %v3259 = vld [vmem:[%s3252 + $0x30] sm:$0xff]
        %v3260 = vld [vmem:[%s3252 + $0x38] sm:$0xff]
        %v3262 = vsel %vm2112, %v3251, 0
        %3264 = vmatprep.subr.mxu0 0.0
        %3265 = vmatpush1.msra.mxu0 0.0
        %3266 = vmatprep.subr.mxu0 0.0
        %3267 = vmatpush1.msra.mxu0 0.0
        %3268 = vmatprep.subr.mxu0 0.0
        %3269 = vmatpush1.msra.mxu0 0.0
        %3270 = vmatprep.subr.mxu0 0.0
        %3271 = vmatpush1.msra.mxu0 0.0
        %3272 = vmatprep.subr.mxu0 0.0
        %3273 = vmatpush1.msra.mxu0 0.0
        %3274 = vmatprep.subr.mxu0 0.0
        %3275 = vmatpush1.msra.mxu0 0.0
        %3276 = vmatprep.subr.mxu0 0.0
        %3277 = vmatpush1.msra.mxu0 0.0
        %3278 = vmatprep.subr.mxu0 0.0
        %3279 = vmatpush1.msra.mxu0 0.0
        %3280 = vmatprep.subr.mxu0 0.0
        %3281 = vmatpush1.msra.mxu0 %v3260
        %3282 = vmatprep.subr.mxu0 0.0
        %3283 = vmatpush1.msra.mxu0 %v3259
        %3284 = vmatprep.subr.mxu0 0.0
        %3285 = vmatpush1.msra.mxu0 %v3258
        %3286 = vmatprep.subr.mxu0 0.0
        %3287 = vmatpush1.msra.mxu0 %v3257
        %3288 = vmatprep.subr.mxu0 0.0
        %3289 = vmatpush1.msra.mxu0 %v3256
        %3290 = vmatprep.subr.mxu0 0.0
        %3291 = vmatpush1.msra.mxu0 %v3255
        %3292 = vmatprep.subr.mxu0 0.0
        %3293 = vmatpush1.msra.mxu0 %v3254
        %3294 = vmatprep.subr.mxu0 0.0
        %3295 = vmatpush1.msra.mxu0 %v3253
        %3296 = vmatprep.subr.mxu0 0.0
        %3297 = vmatpush2.msra.mxu0 0.0
        %3298 = vmatprep.subr.mxu0 0.0
        %3299 = vmatpush2.msra.mxu0 0.0
        %3300 = vmatprep.subr.mxu0 0.0
        %3301 = vmatpush2.msra.mxu0 0.0
        %3302 = vmatprep.subr.mxu0 0.0
        %3303 = vmatpush2.msra.mxu0 0.0
        %3304 = vmatprep.subr.mxu0 0.0
        %3305 = vmatpush2.msra.mxu0 0.0
        %3306 = vmatprep.subr.mxu0 0.0
        %3307 = vmatpush2.msra.mxu0 0.0
        %3308 = vmatprep.subr.mxu0 0.0
        %3309 = vmatpush2.msra.mxu0 0.0
        %3310 = vmatprep.subr.mxu0 0.0
        %3311 = vmatpush2.msra.mxu0 0.0
        %3312 = vmatprep.subr.mxu0 0.0
        %3313 = vmatpush2.msra.mxu0 0.0
        %3314 = vmatprep.subr.mxu0 0.0
        %3315 = vmatpush2.msra.mxu0 0.0
        %3316 = vmatprep.subr.mxu0 0.0
        %3317 = vmatpush2.msra.mxu0 0.0
        %3318 = vmatprep.subr.mxu0 0.0
        %3319 = vmatpush2.msra.mxu0 0.0
        %3320 = vmatprep.subr.mxu0 0.0
        %3321 = vmatpush2.msra.mxu0 0.0
        %3322 = vmatprep.subr.mxu0 0.0
        %3323 = vmatpush2.msra.mxu0 0.0
        %3324 = vmatprep.subr.mxu0 0.0
        %3325 = vmatpush2.msra.mxu0 0.0
        %3326 = vmatprep.subr.mxu0 0.0
        %3327 = vmatpush2.msra.mxu0 0.0
        %3328 = vmatprep.mubr.f32.mxu0 0.0
        %3329 = vmatmul.mubr.f32.gmra.mxu0 %v3262
        %v3330 = vpop.f32.mrf.mxu0
        %v3331 = vadd.f32 0.0, %v3330
        %v3332 = vpop.f32.mrf.mxu0
        %3333 = vdwg.mxu0
        %v3335 = vsel %vm2112, %v3242, 0
        %3337 = vmatprep.subr.mxu0 0.0
        %3338 = vmatpush1.msra.mxu0 0.0
        %3339 = vmatprep.subr.mxu0 0.0
        %3340 = vmatpush1.msra.mxu0 0.0
        %3341 = vmatprep.subr.mxu0 0.0
        %3342 = vmatpush1.msra.mxu0 0.0
        %3343 = vmatprep.subr.mxu0 0.0
        %3344 = vmatpush1.msra.mxu0 0.0
        %3345 = vmatprep.subr.mxu0 0.0
        %3346 = vmatpush1.msra.mxu0 0.0
        %3347 = vmatprep.subr.mxu0 0.0
        %3348 = vmatpush1.msra.mxu0 0.0
        %3349 = vmatprep.subr.mxu0 0.0
        %3350 = vmatpush1.msra.mxu0 0.0
        %3351 = vmatprep.subr.mxu0 0.0
        %3352 = vmatpush1.msra.mxu0 0.0
        %3353 = vmatprep.subr.mxu0 0.0
        %3354 = vmatpush1.msra.mxu0 %v3250
        %3355 = vmatprep.subr.mxu0 0.0
        %3356 = vmatpush1.msra.mxu0 %v3249
        %3357 = vmatprep.subr.mxu0 0.0
        %3358 = vmatpush1.msra.mxu0 %v3248
        %3359 = vmatprep.subr.mxu0 0.0
        %3360 = vmatpush1.msra.mxu0 %v3247
        %3361 = vmatprep.subr.mxu0 0.0
        %3362 = vmatpush1.msra.mxu0 %v3246
        %3363 = vmatprep.subr.mxu0 0.0
        %3364 = vmatpush1.msra.mxu0 %v3245
        %3365 = vmatprep.subr.mxu0 0.0
        %3366 = vmatpush1.msra.mxu0 %v3244
        %3367 = vmatprep.subr.mxu0 0.0
        %3368 = vmatpush1.msra.mxu0 %v3243
        %3369 = vmatprep.subr.mxu0 0.0
        %3370 = vmatpush2.msra.mxu0 0.0
        %3371 = vmatprep.subr.mxu0 0.0
        %3372 = vmatpush2.msra.mxu0 0.0
        %3373 = vmatprep.subr.mxu0 0.0
        %3374 = vmatpush2.msra.mxu0 0.0
        %3375 = vmatprep.subr.mxu0 0.0
        %3376 = vmatpush2.msra.mxu0 0.0
        %3377 = vmatprep.subr.mxu0 0.0
        %3378 = vmatpush2.msra.mxu0 0.0
        %3379 = vmatprep.subr.mxu0 0.0
        %3380 = vmatpush2.msra.mxu0 0.0
        %3381 = vmatprep.subr.mxu0 0.0
        %3382 = vmatpush2.msra.mxu0 0.0
        %3383 = vmatprep.subr.mxu0 0.0
        %3384 = vmatpush2.msra.mxu0 0.0
        %3385 = vmatprep.subr.mxu0 0.0
        %3386 = vmatpush2.msra.mxu0 0.0
        %3387 = vmatprep.subr.mxu0 0.0
        %3388 = vmatpush2.msra.mxu0 0.0
        %3389 = vmatprep.subr.mxu0 0.0
        %3390 = vmatpush2.msra.mxu0 0.0
        %3391 = vmatprep.subr.mxu0 0.0
        %3392 = vmatpush2.msra.mxu0 0.0
        %3393 = vmatprep.subr.mxu0 0.0
        %3394 = vmatpush2.msra.mxu0 0.0
        %3395 = vmatprep.subr.mxu0 0.0
        %3396 = vmatpush2.msra.mxu0 0.0
        %3397 = vmatprep.subr.mxu0 0.0
        %3398 = vmatpush2.msra.mxu0 0.0
        %3399 = vmatprep.subr.mxu0 0.0
        %3400 = vmatpush2.msra.mxu0 0.0
        %3401 = vmatprep.mubr.f32.mxu0 0.0
        %3402 = vmatmul.mubr.f32.gmra.mxu0 %v3335
        %v3403 = vpop.f32.mrf.mxu0
        %v3404 = vadd.f32 %v3331, %v3403
        %v3405 = vpop.f32.mrf.mxu0
        %3406 = vdwg.mxu0
        %v3407 = vld [vmem:[#allocation2 + $0x9] sm:$0xf]
        %s3408 = scalar_lea.vmem [#allocation22], 128
        %v3409 = vld [vmem:[%s3408] sm:$0xff]
        %v3410 = vld [vmem:[%s3408 + $0x8] sm:$0xff]
        %v3411 = vld [vmem:[%s3408 + $0x10] sm:$0xff]
        %v3412 = vld [vmem:[%s3408 + $0x18] sm:$0xff]
        %v3413 = vld [vmem:[%s3408 + $0x20] sm:$0xff]
        %v3414 = vld [vmem:[%s3408 + $0x28] sm:$0xff]
        %v3415 = vld [vmem:[%s3408 + $0x30] sm:$0xff]
        %v3416 = vld [vmem:[%s3408 + $0x38] sm:$0xff]
        %v3418 = vsel %vm2112, %v3407, 0
        %3420 = vmatprep.subr.mxu0 0.0
        %3421 = vmatpush1.msra.mxu0 0.0
        %3422 = vmatprep.subr.mxu0 0.0
        %3423 = vmatpush1.msra.mxu0 0.0
        %3424 = vmatprep.subr.mxu0 0.0
        %3425 = vmatpush1.msra.mxu0 0.0
        %3426 = vmatprep.subr.mxu0 0.0
        %3427 = vmatpush1.msra.mxu0 0.0
        %3428 = vmatprep.subr.mxu0 0.0
        %3429 = vmatpush1.msra.mxu0 0.0
        %3430 = vmatprep.subr.mxu0 0.0
        %3431 = vmatpush1.msra.mxu0 0.0
        %3432 = vmatprep.subr.mxu0 0.0
        %3433 = vmatpush1.msra.mxu0 0.0
        %3434 = vmatprep.subr.mxu0 0.0
        %3435 = vmatpush1.msra.mxu0 0.0
        %3436 = vmatprep.subr.mxu0 0.0
        %3437 = vmatpush1.msra.mxu0 %v3416
        %3438 = vmatprep.subr.mxu0 0.0
        %3439 = vmatpush1.msra.mxu0 %v3415
        %3440 = vmatprep.subr.mxu0 0.0
        %3441 = vmatpush1.msra.mxu0 %v3414
        %3442 = vmatprep.subr.mxu0 0.0
        %3443 = vmatpush1.msra.mxu0 %v3413
        %3444 = vmatprep.subr.mxu0 0.0
        %3445 = vmatpush1.msra.mxu0 %v3412
        %3446 = vmatprep.subr.mxu0 0.0
        %3447 = vmatpush1.msra.mxu0 %v3411
        %3448 = vmatprep.subr.mxu0 0.0
        %3449 = vmatpush1.msra.mxu0 %v3410
        %3450 = vmatprep.subr.mxu0 0.0
        %3451 = vmatpush1.msra.mxu0 %v3409
        %3452 = vmatprep.subr.mxu0 0.0
        %3453 = vmatpush2.msra.mxu0 0.0
        %3454 = vmatprep.subr.mxu0 0.0
        %3455 = vmatpush2.msra.mxu0 0.0
        %3456 = vmatprep.subr.mxu0 0.0
        %3457 = vmatpush2.msra.mxu0 0.0
        %3458 = vmatprep.subr.mxu0 0.0
        %3459 = vmatpush2.msra.mxu0 0.0
        %3460 = vmatprep.subr.mxu0 0.0
        %3461 = vmatpush2.msra.mxu0 0.0
        %3462 = vmatprep.subr.mxu0 0.0
        %3463 = vmatpush2.msra.mxu0 0.0
        %3464 = vmatprep.subr.mxu0 0.0
        %3465 = vmatpush2.msra.mxu0 0.0
        %3466 = vmatprep.subr.mxu0 0.0
        %3467 = vmatpush2.msra.mxu0 0.0
        %3468 = vmatprep.subr.mxu0 0.0
        %3469 = vmatpush2.msra.mxu0 0.0
        %3470 = vmatprep.subr.mxu0 0.0
        %3471 = vmatpush2.msra.mxu0 0.0
        %3472 = vmatprep.subr.mxu0 0.0
        %3473 = vmatpush2.msra.mxu0 0.0
        %3474 = vmatprep.subr.mxu0 0.0
        %3475 = vmatpush2.msra.mxu0 0.0
        %3476 = vmatprep.subr.mxu0 0.0
        %3477 = vmatpush2.msra.mxu0 0.0
        %3478 = vmatprep.subr.mxu0 0.0
        %3479 = vmatpush2.msra.mxu0 0.0
        %3480 = vmatprep.subr.mxu0 0.0
        %3481 = vmatpush2.msra.mxu0 0.0
        %3482 = vmatprep.subr.mxu0 0.0
        %3483 = vmatpush2.msra.mxu0 0.0
        %3484 = vmatprep.mubr.f32.mxu0 0.0
        %3485 = vmatmul.mubr.f32.gmra.mxu0 %v3418
        %v3486 = vpop.f32.mrf.mxu0
        %v3487 = vadd.f32 0.0, %v3486
        %v3488 = vpop.f32.mrf.mxu0
        %3489 = vdwg.mxu0
        %v3490 = vadd.f32 %v3404, %v3487
        %v3491 = vld [vmem:[#allocation23] sm:$0x1]
        %v3493 = vlaneseq
        %v3494 = vshrl.u32 %v3493, 7
        %v3495 = vsub.s32 0, %v3494
        %v3496 = vrot.slane %v3491, %v3495
        %v3498 = vadd.f32 %v3490, %v3496
        %v3499 = vmax.f32 %v3498, 0.0
        %v3500 = vld [vmem:[%s43] sm:$0xff]
        %vm3501 = vcmask 31744
        %v3503 = vsel %vm3501, %v3500, 0
        %vm3505 = vcmask 1043456
        %v3507 = vsel %vm3505, %v3499, 0
        %3509 = vmatprep.subr.mxu0 0.0
        %3510 = vmatpush1.msra.mxu0 0.0
        %3511 = vmatprep.subr.mxu0 0.0
        %3512 = vmatpush1.msra.mxu0 0.0
        %3513 = vmatprep.subr.mxu0 0.0
        %3514 = vmatpush1.msra.mxu0 0.0
        %3515 = vmatprep.subr.mxu0 0.0
        %3516 = vmatpush1.msra.mxu0 0.0
        %3517 = vmatprep.subr.mxu0 0.0
        %3518 = vmatpush1.msra.mxu0 0.0
        %3519 = vmatprep.subr.mxu0 0.0
        %3520 = vmatpush1.msra.mxu0 0.0
        %3521 = vmatprep.subr.mxu0 0.0
        %3522 = vmatpush1.msra.mxu0 0.0
        %3523 = vmatprep.subr.mxu0 0.0
        %3524 = vmatpush1.msra.mxu0 0.0
        %3525 = vmatprep.subr.mxu0 0.0
        %3526 = vmatpush1.msra.mxu0 0.0
        %3527 = vmatprep.subr.mxu0 0.0
        %3528 = vmatpush1.msra.mxu0 0.0
        %3529 = vmatprep.subr.mxu0 0.0
        %3530 = vmatpush1.msra.mxu0 0.0
        %3531 = vmatprep.subr.mxu0 0.0
        %3532 = vmatpush1.msra.mxu0 0.0
        %3533 = vmatprep.subr.mxu0 0.0
        %3534 = vmatpush1.msra.mxu0 0.0
        %3535 = vmatprep.subr.mxu0 0.0
        %3536 = vmatpush1.msra.mxu0 0.0
        %3537 = vmatprep.subr.mxu0 0.0
        %3538 = vmatpush1.msra.mxu0 0.0
        %3539 = vmatprep.subr.mxu0 0.0
        %3540 = vmatpush1.msra.mxu0 %v3507
        %3541 = vmatprep.subr.mxu0 0.0
        %3542 = vmatpush2.msra.mxu0 0.0
        %3543 = vmatprep.subr.mxu0 0.0
        %3544 = vmatpush2.msra.mxu0 0.0
        %3545 = vmatprep.subr.mxu0 0.0
        %3546 = vmatpush2.msra.mxu0 0.0
        %3547 = vmatprep.subr.mxu0 0.0
        %3548 = vmatpush2.msra.mxu0 0.0
        %3549 = vmatprep.subr.mxu0 0.0
        %3550 = vmatpush2.msra.mxu0 0.0
        %3551 = vmatprep.subr.mxu0 0.0
        %3552 = vmatpush2.msra.mxu0 0.0
        %3553 = vmatprep.subr.mxu0 0.0
        %3554 = vmatpush2.msra.mxu0 0.0
        %3555 = vmatprep.subr.mxu0 0.0
        %3556 = vmatpush2.msra.mxu0 0.0
        %3557 = vmatprep.subr.mxu0 0.0
        %3558 = vmatpush2.msra.mxu0 0.0
        %3559 = vmatprep.subr.mxu0 0.0
        %3560 = vmatpush2.msra.mxu0 0.0
        %3561 = vmatprep.subr.mxu0 0.0
        %3562 = vmatpush2.msra.mxu0 0.0
        %3563 = vmatprep.subr.mxu0 0.0
        %3564 = vmatpush2.msra.mxu0 0.0
        %3565 = vmatprep.subr.mxu0 0.0
        %3566 = vmatpush2.msra.mxu0 0.0
        %3567 = vmatprep.subr.mxu0 0.0
        %3568 = vmatpush2.msra.mxu0 0.0
        %3569 = vmatprep.subr.mxu0 0.0
        %3570 = vmatpush2.msra.mxu0 0.0
        %3571 = vmatprep.subr.mxu0 0.0
        %3572 = vmatpush2.msra.mxu0 0.0
        %3573 = vmatprep.mubr.f32.mxu0 0.0
        %3574 = vmatmul.mubr.f32.gmra.mxu0 %v3503
        %v3575 = vpop.f32.mrf.mxu0
        %v3576 = vadd.f32 0.0, %v3575
        %v3577 = vpop.f32.mrf.mxu0
        %3578 = vdwg.mxu0
        %v3579 = vld [vmem:[#allocation25] sm:$0xff]
        %v3580 = vld [vmem:[#allocation25 + $0x8] sm:$0xff]
        %v3581 = vld [vmem:[#allocation25 + $0x10] sm:$0xff]
        %v3582 = vld [vmem:[#allocation25 + $0x18] sm:$0xff]
        %v3583 = vld [vmem:[#allocation25 + $0x20] sm:$0xff]
        %v3584 = vld [vmem:[#allocation25 + $0x28] sm:$0xff]
        %v3585 = vld [vmem:[#allocation25 + $0x30] sm:$0xff]
        %v3586 = vld [vmem:[#allocation25 + $0x38] sm:$0xff]
        %v3588 = vsel %vm2112, %v3576, 0
        %3590 = vmatprep.subr.mxu0 0.0
        %3591 = vmatpush1.msra.mxu0 0.0
        %3592 = vmatprep.subr.mxu0 0.0
        %3593 = vmatpush1.msra.mxu0 0.0
        %3594 = vmatprep.subr.mxu0 0.0
        %3595 = vmatpush1.msra.mxu0 0.0
        %3596 = vmatprep.subr.mxu0 0.0
        %3597 = vmatpush1.msra.mxu0 0.0
        %3598 = vmatprep.subr.mxu0 0.0
        %3599 = vmatpush1.msra.mxu0 0.0
        %3600 = vmatprep.subr.mxu0 0.0
        %3601 = vmatpush1.msra.mxu0 0.0
        %3602 = vmatprep.subr.mxu0 0.0
        %3603 = vmatpush1.msra.mxu0 0.0
        %3604 = vmatprep.subr.mxu0 0.0
        %3605 = vmatpush1.msra.mxu0 0.0
        %3606 = vmatprep.subr.mxu0 0.0
        %3607 = vmatpush1.msra.mxu0 %v3586
        %3608 = vmatprep.subr.mxu0 0.0
        %3609 = vmatpush1.msra.mxu0 %v3585
        %3610 = vmatprep.subr.mxu0 0.0
        %3611 = vmatpush1.msra.mxu0 %v3584
        %3612 = vmatprep.subr.mxu0 0.0
        %3613 = vmatpush1.msra.mxu0 %v3583
        %3614 = vmatprep.subr.mxu0 0.0
        %3615 = vmatpush1.msra.mxu0 %v3582
        %3616 = vmatprep.subr.mxu0 0.0
        %3617 = vmatpush1.msra.mxu0 %v3581
        %3618 = vmatprep.subr.mxu0 0.0
        %3619 = vmatpush1.msra.mxu0 %v3580
        %3620 = vmatprep.subr.mxu0 0.0
        %3621 = vmatpush1.msra.mxu0 %v3579
        %3622 = vmatprep.subr.mxu0 0.0
        %3623 = vmatpush2.msra.mxu0 0.0
        %3624 = vmatprep.subr.mxu0 0.0
        %3625 = vmatpush2.msra.mxu0 0.0
        %3626 = vmatprep.subr.mxu0 0.0
        %3627 = vmatpush2.msra.mxu0 0.0
        %3628 = vmatprep.subr.mxu0 0.0
        %3629 = vmatpush2.msra.mxu0 0.0
        %3630 = vmatprep.subr.mxu0 0.0
        %3631 = vmatpush2.msra.mxu0 0.0
        %3632 = vmatprep.subr.mxu0 0.0
        %3633 = vmatpush2.msra.mxu0 0.0
        %3634 = vmatprep.subr.mxu0 0.0
        %3635 = vmatpush2.msra.mxu0 0.0
        %3636 = vmatprep.subr.mxu0 0.0
        %3637 = vmatpush2.msra.mxu0 0.0
        %3638 = vmatprep.subr.mxu0 0.0
        %3639 = vmatpush2.msra.mxu0 0.0
        %3640 = vmatprep.subr.mxu0 0.0
        %3641 = vmatpush2.msra.mxu0 0.0
        %3642 = vmatprep.subr.mxu0 0.0
        %3643 = vmatpush2.msra.mxu0 0.0
        %3644 = vmatprep.subr.mxu0 0.0
        %3645 = vmatpush2.msra.mxu0 0.0
        %3646 = vmatprep.subr.mxu0 0.0
        %3647 = vmatpush2.msra.mxu0 0.0
        %3648 = vmatprep.subr.mxu0 0.0
        %3649 = vmatpush2.msra.mxu0 0.0
        %3650 = vmatprep.subr.mxu0 0.0
        %3651 = vmatpush2.msra.mxu0 0.0
        %3652 = vmatprep.subr.mxu0 0.0
        %3653 = vmatpush2.msra.mxu0 0.0
        %3654 = vmatprep.mubr.f32.mxu0 0.0
        %3655 = vmatmul.mubr.f32.gmra.mxu0 %v3588
        %v3656 = vpop.f32.mrf.mxu0
        %v3657 = vadd.f32 0.0, %v3656
        %v3658 = vpop.f32.mrf.mxu0
        %3659 = vdwg.mxu0
        %3660 = vst [vmem:[#allocation2] sm:$0xff] 0.0
        %3661 = vst [vmem:[#allocation2 + $0x8] sm:$0xff] 0.0
        %3662 = vst [vmem:[#allocation2 + $0x10] sm:$0xff] 0.0
        %3663 = vst [vmem:[#allocation2 + $0x18] sm:$0x1] 0.0
        %3664 = vst [vmem:[#allocation2 + $0x8] sm:$0xff] %v2649
        %v3665 = vld [vmem:[#allocation2 + $0x7] sm:$0xff]
        %v3666 = vld [vmem:[%s47] sm:$0xff]
        %v3667 = vld [vmem:[%s47 + $0x8] sm:$0xff]
        %v3668 = vld [vmem:[%s47 + $0x10] sm:$0xff]
        %v3669 = vld [vmem:[%s47 + $0x18] sm:$0xff]
        %v3670 = vld [vmem:[%s47 + $0x20] sm:$0xff]
        %v3671 = vld [vmem:[%s47 + $0x28] sm:$0xff]
        %v3672 = vld [vmem:[%s47 + $0x30] sm:$0xff]
        %v3673 = vld [vmem:[%s47 + $0x38] sm:$0xff]
        %v3674 = vld [vmem:[%s47 + $0x40] sm:$0xff]
        %v3675 = vld [vmem:[%s47 + $0x48] sm:$0xff]
        %v3676 = vld [vmem:[%s47 + $0x50] sm:$0xff]
        %v3677 = vld [vmem:[%s47 + $0x58] sm:$0xff]
        %v3678 = vld [vmem:[%s47 + $0x60] sm:$0xff]
        %v3679 = vld [vmem:[%s47 + $0x68] sm:$0xff]
        %v3680 = vld [vmem:[%s47 + $0x70] sm:$0xff]
        %v3681 = vld [vmem:[%s47 + $0x78] sm:$0xff]
        %v3682 = vld [vmem:[#allocation2 + $0x8] sm:$0xff]
        %s3683 = scalar_lea.vmem %s47, 128
        %v3684 = vld [vmem:[%s3683] sm:$0xff]
        %v3685 = vld [vmem:[%s3683 + $0x8] sm:$0xff]
        %v3686 = vld [vmem:[%s3683 + $0x10] sm:$0xff]
        %v3687 = vld [vmem:[%s3683 + $0x18] sm:$0xff]
        %v3688 = vld [vmem:[%s3683 + $0x20] sm:$0xff]
        %v3689 = vld [vmem:[%s3683 + $0x28] sm:$0xff]
        %v3690 = vld [vmem:[%s3683 + $0x30] sm:$0xff]
        %v3691 = vld [vmem:[%s3683 + $0x38] sm:$0xff]
        %v3692 = vld [vmem:[%s3683 + $0x40] sm:$0xff]
        %v3693 = vld [vmem:[%s3683 + $0x48] sm:$0xff]
        %v3694 = vld [vmem:[%s3683 + $0x50] sm:$0xff]
        %v3695 = vld [vmem:[%s3683 + $0x58] sm:$0xff]
        %v3696 = vld [vmem:[%s3683 + $0x60] sm:$0xff]
        %v3697 = vld [vmem:[%s3683 + $0x68] sm:$0xff]
        %v3698 = vld [vmem:[%s3683 + $0x70] sm:$0xff]
        %v3699 = vld [vmem:[%s3683 + $0x78] sm:$0xff]
        %3700 = vmatprep.subr.mxu0 0.0
        %3701 = vmatpush1.msra.mxu0 %v3699
        %3702 = vmatprep.subr.mxu0 0.0
        %3703 = vmatpush1.msra.mxu0 %v3698
        %3704 = vmatprep.subr.mxu0 0.0
        %3705 = vmatpush1.msra.mxu0 %v3697
        %3706 = vmatprep.subr.mxu0 0.0
        %3707 = vmatpush1.msra.mxu0 %v3696
        %3708 = vmatprep.subr.mxu0 0.0
        %3709 = vmatpush1.msra.mxu0 %v3695
        %3710 = vmatprep.subr.mxu0 0.0
        %3711 = vmatpush1.msra.mxu0 %v3694
        %3712 = vmatprep.subr.mxu0 0.0
        %3713 = vmatpush1.msra.mxu0 %v3693
        %3714 = vmatprep.subr.mxu0 0.0
        %3715 = vmatpush1.msra.mxu0 %v3692
        %3716 = vmatprep.subr.mxu0 0.0
        %3717 = vmatpush1.msra.mxu0 %v3691
        %3718 = vmatprep.subr.mxu0 0.0
        %3719 = vmatpush1.msra.mxu0 %v3690
        %3720 = vmatprep.subr.mxu0 0.0
        %3721 = vmatpush1.msra.mxu0 %v3689
        %3722 = vmatprep.subr.mxu0 0.0
        %3723 = vmatpush1.msra.mxu0 %v3688
        %3724 = vmatprep.subr.mxu0 0.0
        %3725 = vmatpush1.msra.mxu0 %v3687
        %3726 = vmatprep.subr.mxu0 0.0
        %3727 = vmatpush1.msra.mxu0 %v3686
        %3728 = vmatprep.subr.mxu0 0.0
        %3729 = vmatpush1.msra.mxu0 %v3685
        %3730 = vmatprep.subr.mxu0 0.0
        %3731 = vmatpush1.msra.mxu0 %v3684
        %3732 = vmatprep.subr.mxu0 0.0
        %3733 = vmatpush2.msra.mxu0 0.0
        %3734 = vmatprep.subr.mxu0 0.0
        %3735 = vmatpush2.msra.mxu0 0.0
        %3736 = vmatprep.subr.mxu0 0.0
        %3737 = vmatpush2.msra.mxu0 0.0
        %3738 = vmatprep.subr.mxu0 0.0
        %3739 = vmatpush2.msra.mxu0 0.0
        %3740 = vmatprep.subr.mxu0 0.0
        %3741 = vmatpush2.msra.mxu0 0.0
        %3742 = vmatprep.subr.mxu0 0.0
        %3743 = vmatpush2.msra.mxu0 0.0
        %3744 = vmatprep.subr.mxu0 0.0
        %3745 = vmatpush2.msra.mxu0 0.0
        %3746 = vmatprep.subr.mxu0 0.0
        %3747 = vmatpush2.msra.mxu0 0.0
        %3748 = vmatprep.subr.mxu0 0.0
        %3749 = vmatpush2.msra.mxu0 0.0
        %3750 = vmatprep.subr.mxu0 0.0
        %3751 = vmatpush2.msra.mxu0 0.0
        %3752 = vmatprep.subr.mxu0 0.0
        %3753 = vmatpush2.msra.mxu0 0.0
        %3754 = vmatprep.subr.mxu0 0.0
        %3755 = vmatpush2.msra.mxu0 0.0
        %3756 = vmatprep.subr.mxu0 0.0
        %3757 = vmatpush2.msra.mxu0 0.0
        %3758 = vmatprep.subr.mxu0 0.0
        %3759 = vmatpush2.msra.mxu0 0.0
        %3760 = vmatprep.subr.mxu0 0.0
        %3761 = vmatpush2.msra.mxu0 0.0
        %3762 = vmatprep.subr.mxu0 0.0
        %3763 = vmatpush2.msra.mxu0 0.0
        %3764 = vmatprep.mubr.f32.mxu0 0.0
        %3765 = vmatmul.mubr.f32.gmra.mxu0 %v3682
        %v3766 = vpop.f32.mrf.mxu0
        %v3767 = vadd.f32 0.0, %v3766
        %v3768 = vpop.f32.mrf.mxu0
        %3769 = vdwg.mxu0
        %3770 = vmatprep.subr.mxu0 0.0
        %3771 = vmatpush1.msra.mxu0 %v3681
        %3772 = vmatprep.subr.mxu0 0.0
        %3773 = vmatpush1.msra.mxu0 %v3680
        %3774 = vmatprep.subr.mxu0 0.0
        %3775 = vmatpush1.msra.mxu0 %v3679
        %3776 = vmatprep.subr.mxu0 0.0
        %3777 = vmatpush1.msra.mxu0 %v3678
        %3778 = vmatprep.subr.mxu0 0.0
        %3779 = vmatpush1.msra.mxu0 %v3677
        %3780 = vmatprep.subr.mxu0 0.0
        %3781 = vmatpush1.msra.mxu0 %v3676
        %3782 = vmatprep.subr.mxu0 0.0
        %3783 = vmatpush1.msra.mxu0 %v3675
        %3784 = vmatprep.subr.mxu0 0.0
        %3785 = vmatpush1.msra.mxu0 %v3674
        %3786 = vmatprep.subr.mxu0 0.0
        %3787 = vmatpush1.msra.mxu0 %v3673
        %3788 = vmatprep.subr.mxu0 0.0
        %3789 = vmatpush1.msra.mxu0 %v3672
        %3790 = vmatprep.subr.mxu0 0.0
        %3791 = vmatpush1.msra.mxu0 %v3671
        %3792 = vmatprep.subr.mxu0 0.0
        %3793 = vmatpush1.msra.mxu0 %v3670
        %3794 = vmatprep.subr.mxu0 0.0
        %3795 = vmatpush1.msra.mxu0 %v3669
        %3796 = vmatprep.subr.mxu0 0.0
        %3797 = vmatpush1.msra.mxu0 %v3668
        %3798 = vmatprep.subr.mxu0 0.0
        %3799 = vmatpush1.msra.mxu0 %v3667
        %3800 = vmatprep.subr.mxu0 0.0
        %3801 = vmatpush1.msra.mxu0 %v3666
        %3802 = vmatprep.subr.mxu0 0.0
        %3803 = vmatpush2.msra.mxu0 0.0
        %3804 = vmatprep.subr.mxu0 0.0
        %3805 = vmatpush2.msra.mxu0 0.0
        %3806 = vmatprep.subr.mxu0 0.0
        %3807 = vmatpush2.msra.mxu0 0.0
        %3808 = vmatprep.subr.mxu0 0.0
        %3809 = vmatpush2.msra.mxu0 0.0
        %3810 = vmatprep.subr.mxu0 0.0
        %3811 = vmatpush2.msra.mxu0 0.0
        %3812 = vmatprep.subr.mxu0 0.0
        %3813 = vmatpush2.msra.mxu0 0.0
        %3814 = vmatprep.subr.mxu0 0.0
        %3815 = vmatpush2.msra.mxu0 0.0
        %3816 = vmatprep.subr.mxu0 0.0
        %3817 = vmatpush2.msra.mxu0 0.0
        %3818 = vmatprep.subr.mxu0 0.0
        %3819 = vmatpush2.msra.mxu0 0.0
        %3820 = vmatprep.subr.mxu0 0.0
        %3821 = vmatpush2.msra.mxu0 0.0
        %3822 = vmatprep.subr.mxu0 0.0
        %3823 = vmatpush2.msra.mxu0 0.0
        %3824 = vmatprep.subr.mxu0 0.0
        %3825 = vmatpush2.msra.mxu0 0.0
        %3826 = vmatprep.subr.mxu0 0.0
        %3827 = vmatpush2.msra.mxu0 0.0
        %3828 = vmatprep.subr.mxu0 0.0
        %3829 = vmatpush2.msra.mxu0 0.0
        %3830 = vmatprep.subr.mxu0 0.0
        %3831 = vmatpush2.msra.mxu0 0.0
        %3832 = vmatprep.subr.mxu0 0.0
        %3833 = vmatpush2.msra.mxu0 0.0
        %3834 = vmatprep.mubr.f32.mxu0 0.0
        %3835 = vmatmul.mubr.f32.gmra.mxu0 %v3665
        %v3836 = vpop.f32.mrf.mxu0
        %v3837 = vadd.f32 %v3767, %v3836
        %v3838 = vpop.f32.mrf.mxu0
        %3839 = vdwg.mxu0
        %v3840 = vld [vmem:[#allocation2 + $0x9] sm:$0xff]
        %s3841 = scalar_lea.vmem %s47, 256
        %v3842 = vld [vmem:[%s3841] sm:$0xff]
        %v3843 = vld [vmem:[%s3841 + $0x8] sm:$0xff]
        %v3844 = vld [vmem:[%s3841 + $0x10] sm:$0xff]
        %v3845 = vld [vmem:[%s3841 + $0x18] sm:$0xff]
        %v3846 = vld [vmem:[%s3841 + $0x20] sm:$0xff]
        %v3847 = vld [vmem:[%s3841 + $0x28] sm:$0xff]
        %v3848 = vld [vmem:[%s3841 + $0x30] sm:$0xff]
        %v3849 = vld [vmem:[%s3841 + $0x38] sm:$0xff]
        %v3850 = vld [vmem:[%s3841 + $0x40] sm:$0xff]
        %v3851 = vld [vmem:[%s3841 + $0x48] sm:$0xff]
        %v3852 = vld [vmem:[%s3841 + $0x50] sm:$0xff]
        %v3853 = vld [vmem:[%s3841 + $0x58] sm:$0xff]
        %v3854 = vld [vmem:[%s3841 + $0x60] sm:$0xff]
        %v3855 = vld [vmem:[%s3841 + $0x68] sm:$0xff]
        %v3856 = vld [vmem:[%s3841 + $0x70] sm:$0xff]
        %v3857 = vld [vmem:[%s3841 + $0x78] sm:$0xff]
        %3858 = vmatprep.subr.mxu0 0.0
        %3859 = vmatpush1.msra.mxu0 %v3857
        %3860 = vmatprep.subr.mxu0 0.0
        %3861 = vmatpush1.msra.mxu0 %v3856
        %3862 = vmatprep.subr.mxu0 0.0
        %3863 = vmatpush1.msra.mxu0 %v3855
        %3864 = vmatprep.subr.mxu0 0.0
        %3865 = vmatpush1.msra.mxu0 %v3854
        %3866 = vmatprep.subr.mxu0 0.0
        %3867 = vmatpush1.msra.mxu0 %v3853
        %3868 = vmatprep.subr.mxu0 0.0
        %3869 = vmatpush1.msra.mxu0 %v3852
        %3870 = vmatprep.subr.mxu0 0.0
        %3871 = vmatpush1.msra.mxu0 %v3851
        %3872 = vmatprep.subr.mxu0 0.0
        %3873 = vmatpush1.msra.mxu0 %v3850
        %3874 = vmatprep.subr.mxu0 0.0
        %3875 = vmatpush1.msra.mxu0 %v3849
        %3876 = vmatprep.subr.mxu0 0.0
        %3877 = vmatpush1.msra.mxu0 %v3848
        %3878 = vmatprep.subr.mxu0 0.0
        %3879 = vmatpush1.msra.mxu0 %v3847
        %3880 = vmatprep.subr.mxu0 0.0
        %3881 = vmatpush1.msra.mxu0 %v3846
        %3882 = vmatprep.subr.mxu0 0.0
        %3883 = vmatpush1.msra.mxu0 %v3845
        %3884 = vmatprep.subr.mxu0 0.0
        %3885 = vmatpush1.msra.mxu0 %v3844
        %3886 = vmatprep.subr.mxu0 0.0
        %3887 = vmatpush1.msra.mxu0 %v3843
        %3888 = vmatprep.subr.mxu0 0.0
        %3889 = vmatpush1.msra.mxu0 %v3842
        %3890 = vmatprep.subr.mxu0 0.0
        %3891 = vmatpush2.msra.mxu0 0.0
        %3892 = vmatprep.subr.mxu0 0.0
        %3893 = vmatpush2.msra.mxu0 0.0
        %3894 = vmatprep.subr.mxu0 0.0
        %3895 = vmatpush2.msra.mxu0 0.0
        %3896 = vmatprep.subr.mxu0 0.0
        %3897 = vmatpush2.msra.mxu0 0.0
        %3898 = vmatprep.subr.mxu0 0.0
        %3899 = vmatpush2.msra.mxu0 0.0
        %3900 = vmatprep.subr.mxu0 0.0
        %3901 = vmatpush2.msra.mxu0 0.0
        %3902 = vmatprep.subr.mxu0 0.0
        %3903 = vmatpush2.msra.mxu0 0.0
        %3904 = vmatprep.subr.mxu0 0.0
        %3905 = vmatpush2.msra.mxu0 0.0
        %3906 = vmatprep.subr.mxu0 0.0
        %3907 = vmatpush2.msra.mxu0 0.0
        %3908 = vmatprep.subr.mxu0 0.0
        %3909 = vmatpush2.msra.mxu0 0.0
        %3910 = vmatprep.subr.mxu0 0.0
        %3911 = vmatpush2.msra.mxu0 0.0
        %3912 = vmatprep.subr.mxu0 0.0
        %3913 = vmatpush2.msra.mxu0 0.0
        %3914 = vmatprep.subr.mxu0 0.0
        %3915 = vmatpush2.msra.mxu0 0.0
        %3916 = vmatprep.subr.mxu0 0.0
        %3917 = vmatpush2.msra.mxu0 0.0
        %3918 = vmatprep.subr.mxu0 0.0
        %3919 = vmatpush2.msra.mxu0 0.0
        %3920 = vmatprep.subr.mxu0 0.0
        %3921 = vmatpush2.msra.mxu0 0.0
        %3922 = vmatprep.mubr.f32.mxu0 0.0
        %3923 = vmatmul.mubr.f32.gmra.mxu0 %v3840
        %v3924 = vpop.f32.mrf.mxu0
        %v3925 = vadd.f32 0.0, %v3924
        %v3926 = vpop.f32.mrf.mxu0
        %3927 = vdwg.mxu0
        %v3928 = vadd.f32 %v3837, %v3925
        %3929 = vst [vmem:[#allocation2] sm:$0xff] 0.0
        %3930 = vst [vmem:[#allocation2 + $0x8] sm:$0xff] 0.0
        %3931 = vst [vmem:[#allocation2 + $0x10] sm:$0xff] 0.0
        %3932 = vst [vmem:[#allocation2 + $0x18] sm:$0x1] 0.0
        %3933 = vst [vmem:[#allocation2 + $0x8] sm:$0xff] %v3657
        %v3934 = vld [vmem:[#allocation2 + $0x7] sm:$0xff]
        %v3935 = vld [vmem:[#allocation26] sm:$0xff]
        %v3936 = vld [vmem:[#allocation26 + $0x8] sm:$0xff]
        %v3937 = vld [vmem:[#allocation26 + $0x10] sm:$0xff]
        %v3938 = vld [vmem:[#allocation26 + $0x18] sm:$0xff]
        %v3939 = vld [vmem:[#allocation26 + $0x20] sm:$0xff]
        %v3940 = vld [vmem:[#allocation26 + $0x28] sm:$0xff]
        %v3941 = vld [vmem:[#allocation26 + $0x30] sm:$0xff]
        %v3942 = vld [vmem:[#allocation26 + $0x38] sm:$0xff]
        %v3943 = vld [vmem:[#allocation26 + $0x40] sm:$0xff]
        %v3944 = vld [vmem:[#allocation26 + $0x48] sm:$0xff]
        %v3945 = vld [vmem:[#allocation26 + $0x50] sm:$0xff]
        %v3946 = vld [vmem:[#allocation26 + $0x58] sm:$0xff]
        %v3947 = vld [vmem:[#allocation26 + $0x60] sm:$0xff]
        %v3948 = vld [vmem:[#allocation26 + $0x68] sm:$0xff]
        %v3949 = vld [vmem:[#allocation26 + $0x70] sm:$0xff]
        %v3950 = vld [vmem:[#allocation26 + $0x78] sm:$0xff]
        %3951 = vmatprep.subr.mxu0 0.0
        %3952 = vmatpush1.msra.mxu0 %v3950
        %3953 = vmatprep.subr.mxu0 0.0
        %3954 = vmatpush1.msra.mxu0 %v3949
        %3955 = vmatprep.subr.mxu0 0.0
        %3956 = vmatpush1.msra.mxu0 %v3948
        %3957 = vmatprep.subr.mxu0 0.0
        %3958 = vmatpush1.msra.mxu0 %v3947
        %3959 = vmatprep.subr.mxu0 0.0
        %3960 = vmatpush1.msra.mxu0 %v3946
        %3961 = vmatprep.subr.mxu0 0.0
        %3962 = vmatpush1.msra.mxu0 %v3945
        %3963 = vmatprep.subr.mxu0 0.0
        %3964 = vmatpush1.msra.mxu0 %v3944
        %3965 = vmatprep.subr.mxu0 0.0
        %3966 = vmatpush1.msra.mxu0 %v3943
        %3967 = vmatprep.subr.mxu0 0.0
        %3968 = vmatpush1.msra.mxu0 %v3942
        %3969 = vmatprep.subr.mxu0 0.0
        %3970 = vmatpush1.msra.mxu0 %v3941
        %3971 = vmatprep.subr.mxu0 0.0
        %3972 = vmatpush1.msra.mxu0 %v3940
        %3973 = vmatprep.subr.mxu0 0.0
        %3974 = vmatpush1.msra.mxu0 %v3939
        %3975 = vmatprep.subr.mxu0 0.0
        %3976 = vmatpush1.msra.mxu0 %v3938
        %3977 = vmatprep.subr.mxu0 0.0
        %3978 = vmatpush1.msra.mxu0 %v3937
        %3979 = vmatprep.subr.mxu0 0.0
        %3980 = vmatpush1.msra.mxu0 %v3936
        %3981 = vmatprep.subr.mxu0 0.0
        %3982 = vmatpush1.msra.mxu0 %v3935
        %3983 = vmatprep.subr.mxu0 0.0
        %3984 = vmatpush2.msra.mxu0 0.0
        %3985 = vmatprep.subr.mxu0 0.0
        %3986 = vmatpush2.msra.mxu0 0.0
        %3987 = vmatprep.subr.mxu0 0.0
        %3988 = vmatpush2.msra.mxu0 0.0
        %3989 = vmatprep.subr.mxu0 0.0
        %3990 = vmatpush2.msra.mxu0 0.0
        %3991 = vmatprep.subr.mxu0 0.0
        %3992 = vmatpush2.msra.mxu0 0.0
        %3993 = vmatprep.subr.mxu0 0.0
        %3994 = vmatpush2.msra.mxu0 0.0
        %3995 = vmatprep.subr.mxu0 0.0
        %3996 = vmatpush2.msra.mxu0 0.0
        %3997 = vmatprep.subr.mxu0 0.0
        %3998 = vmatpush2.msra.mxu0 0.0
        %3999 = vmatprep.subr.mxu0 0.0
        %4000 = vmatpush2.msra.mxu0 0.0
        %4001 = vmatprep.subr.mxu0 0.0
        %4002 = vmatpush2.msra.mxu0 0.0
        %4003 = vmatprep.subr.mxu0 0.0
        %4004 = vmatpush2.msra.mxu0 0.0
        %4005 = vmatprep.subr.mxu0 0.0
        %4006 = vmatpush2.msra.mxu0 0.0
        %4007 = vmatprep.subr.mxu0 0.0
        %4008 = vmatpush2.msra.mxu0 0.0
        %4009 = vmatprep.subr.mxu0 0.0
        %4010 = vmatpush2.msra.mxu0 0.0
        %4011 = vmatprep.subr.mxu0 0.0
        %4012 = vmatpush2.msra.mxu0 0.0
        %4013 = vmatprep.subr.mxu0 0.0
        %4014 = vmatpush2.msra.mxu0 0.0
        %4015 = vmatprep.mubr.f32.mxu0 0.0
        %4016 = vmatmul.mubr.f32.gmra.mxu0 %v3934
        %v4017 = vpop.f32.mrf.mxu0
        %v4018 = vadd.f32 0.0, %v4017
        %v4019 = vpop.f32.mrf.mxu0
        %4020 = vdwg.mxu0
        %v4021 = vadd.f32 %v3928, %v4018
        %v4022 = vld [vmem:[#allocation2 + $0x8] sm:$0xff]
        %s4023 = scalar_lea.vmem [#allocation26], 128
        %v4024 = vld [vmem:[%s4023] sm:$0xff]
        %v4025 = vld [vmem:[%s4023 + $0x8] sm:$0xff]
        %v4026 = vld [vmem:[%s4023 + $0x10] sm:$0xff]
        %v4027 = vld [vmem:[%s4023 + $0x18] sm:$0xff]
        %v4028 = vld [vmem:[%s4023 + $0x20] sm:$0xff]
        %v4029 = vld [vmem:[%s4023 + $0x28] sm:$0xff]
        %v4030 = vld [vmem:[%s4023 + $0x30] sm:$0xff]
        %v4031 = vld [vmem:[%s4023 + $0x38] sm:$0xff]
        %v4032 = vld [vmem:[%s4023 + $0x40] sm:$0xff]
        %v4033 = vld [vmem:[%s4023 + $0x48] sm:$0xff]
        %v4034 = vld [vmem:[%s4023 + $0x50] sm:$0xff]
        %v4035 = vld [vmem:[%s4023 + $0x58] sm:$0xff]
        %v4036 = vld [vmem:[%s4023 + $0x60] sm:$0xff]
        %v4037 = vld [vmem:[%s4023 + $0x68] sm:$0xff]
        %v4038 = vld [vmem:[%s4023 + $0x70] sm:$0xff]
        %v4039 = vld [vmem:[%s4023 + $0x78] sm:$0xff]
        %4040 = vmatprep.subr.mxu0 0.0
        %4041 = vmatpush1.msra.mxu0 %v4039
        %4042 = vmatprep.subr.mxu0 0.0
        %4043 = vmatpush1.msra.mxu0 %v4038
        %4044 = vmatprep.subr.mxu0 0.0
        %4045 = vmatpush1.msra.mxu0 %v4037
        %4046 = vmatprep.subr.mxu0 0.0
        %4047 = vmatpush1.msra.mxu0 %v4036
        %4048 = vmatprep.subr.mxu0 0.0
        %4049 = vmatpush1.msra.mxu0 %v4035
        %4050 = vmatprep.subr.mxu0 0.0
        %4051 = vmatpush1.msra.mxu0 %v4034
        %4052 = vmatprep.subr.mxu0 0.0
        %4053 = vmatpush1.msra.mxu0 %v4033
        %4054 = vmatprep.subr.mxu0 0.0
        %4055 = vmatpush1.msra.mxu0 %v4032
        %4056 = vmatprep.subr.mxu0 0.0
        %4057 = vmatpush1.msra.mxu0 %v4031
        %4058 = vmatprep.subr.mxu0 0.0
        %4059 = vmatpush1.msra.mxu0 %v4030
        %4060 = vmatprep.subr.mxu0 0.0
        %4061 = vmatpush1.msra.mxu0 %v4029
        %4062 = vmatprep.subr.mxu0 0.0
        %4063 = vmatpush1.msra.mxu0 %v4028
        %4064 = vmatprep.subr.mxu0 0.0
        %4065 = vmatpush1.msra.mxu0 %v4027
        %4066 = vmatprep.subr.mxu0 0.0
        %4067 = vmatpush1.msra.mxu0 %v4026
        %4068 = vmatprep.subr.mxu0 0.0
        %4069 = vmatpush1.msra.mxu0 %v4025
        %4070 = vmatprep.subr.mxu0 0.0
        %4071 = vmatpush1.msra.mxu0 %v4024
        %4072 = vmatprep.subr.mxu0 0.0
        %4073 = vmatpush2.msra.mxu0 0.0
        %4074 = vmatprep.subr.mxu0 0.0
        %4075 = vmatpush2.msra.mxu0 0.0
        %4076 = vmatprep.subr.mxu0 0.0
        %4077 = vmatpush2.msra.mxu0 0.0
        %4078 = vmatprep.subr.mxu0 0.0
        %4079 = vmatpush2.msra.mxu0 0.0
        %4080 = vmatprep.subr.mxu0 0.0
        %4081 = vmatpush2.msra.mxu0 0.0
        %4082 = vmatprep.subr.mxu0 0.0
        %4083 = vmatpush2.msra.mxu0 0.0
        %4084 = vmatprep.subr.mxu0 0.0
        %4085 = vmatpush2.msra.mxu0 0.0
        %4086 = vmatprep.subr.mxu0 0.0
        %4087 = vmatpush2.msra.mxu0 0.0
        %4088 = vmatprep.subr.mxu0 0.0
        %4089 = vmatpush2.msra.mxu0 0.0
        %4090 = vmatprep.subr.mxu0 0.0
        %4091 = vmatpush2.msra.mxu0 0.0
        %4092 = vmatprep.subr.mxu0 0.0
        %4093 = vmatpush2.msra.mxu0 0.0
        %4094 = vmatprep.subr.mxu0 0.0
        %4095 = vmatpush2.msra.mxu0 0.0
        %4096 = vmatprep.subr.mxu0 0.0
        %4097 = vmatpush2.msra.mxu0 0.0
        %4098 = vmatprep.subr.mxu0 0.0
        %4099 = vmatpush2.msra.mxu0 0.0
        %4100 = vmatprep.subr.mxu0 0.0
        %4101 = vmatpush2.msra.mxu0 0.0
        %4102 = vmatprep.subr.mxu0 0.0
        %4103 = vmatpush2.msra.mxu0 0.0
        %4104 = vmatprep.mubr.f32.mxu0 0.0
        %4105 = vmatmul.mubr.f32.gmra.mxu0 %v4022
        %v4106 = vpop.f32.mrf.mxu0
        %v4107 = vadd.f32 0.0, %v4106
        %v4108 = vpop.f32.mrf.mxu0
        %4109 = vdwg.mxu0
        %v4110 = vadd.f32 %v4021, %v4107
        %v4111 = vld [vmem:[#allocation2 + $0x9] sm:$0xff]
        %s4112 = scalar_lea.vmem [#allocation26], 256
        %v4113 = vld [vmem:[%s4112] sm:$0xff]
        %v4114 = vld [vmem:[%s4112 + $0x8] sm:$0xff]
        %v4115 = vld [vmem:[%s4112 + $0x10] sm:$0xff]
        %v4116 = vld [vmem:[%s4112 + $0x18] sm:$0xff]
        %v4117 = vld [vmem:[%s4112 + $0x20] sm:$0xff]
        %v4118 = vld [vmem:[%s4112 + $0x28] sm:$0xff]
        %v4119 = vld [vmem:[%s4112 + $0x30] sm:$0xff]
        %v4120 = vld [vmem:[%s4112 + $0x38] sm:$0xff]
        %v4121 = vld [vmem:[%s4112 + $0x40] sm:$0xff]
        %v4122 = vld [vmem:[%s4112 + $0x48] sm:$0xff]
        %v4123 = vld [vmem:[%s4112 + $0x50] sm:$0xff]
        %v4124 = vld [vmem:[%s4112 + $0x58] sm:$0xff]
        %v4125 = vld [vmem:[%s4112 + $0x60] sm:$0xff]
        %v4126 = vld [vmem:[%s4112 + $0x68] sm:$0xff]
        %v4127 = vld [vmem:[%s4112 + $0x70] sm:$0xff]
        %v4128 = vld [vmem:[%s4112 + $0x78] sm:$0xff]
        %4129 = vmatprep.subr.mxu0 0.0
        %4130 = vmatpush1.msra.mxu0 %v4128
        %4131 = vmatprep.subr.mxu0 0.0
        %4132 = vmatpush1.msra.mxu0 %v4127
        %4133 = vmatprep.subr.mxu0 0.0
        %4134 = vmatpush1.msra.mxu0 %v4126
        %4135 = vmatprep.subr.mxu0 0.0
        %4136 = vmatpush1.msra.mxu0 %v4125
        %4137 = vmatprep.subr.mxu0 0.0
        %4138 = vmatpush1.msra.mxu0 %v4124
        %4139 = vmatprep.subr.mxu0 0.0
        %4140 = vmatpush1.msra.mxu0 %v4123
        %4141 = vmatprep.subr.mxu0 0.0
        %4142 = vmatpush1.msra.mxu0 %v4122
        %4143 = vmatprep.subr.mxu0 0.0
        %4144 = vmatpush1.msra.mxu0 %v4121
        %4145 = vmatprep.subr.mxu0 0.0
        %4146 = vmatpush1.msra.mxu0 %v4120
        %4147 = vmatprep.subr.mxu0 0.0
        %4148 = vmatpush1.msra.mxu0 %v4119
        %4149 = vmatprep.subr.mxu0 0.0
        %4150 = vmatpush1.msra.mxu0 %v4118
        %4151 = vmatprep.subr.mxu0 0.0
        %4152 = vmatpush1.msra.mxu0 %v4117
        %4153 = vmatprep.subr.mxu0 0.0
        %4154 = vmatpush1.msra.mxu0 %v4116
        %4155 = vmatprep.subr.mxu0 0.0
        %4156 = vmatpush1.msra.mxu0 %v4115
        %4157 = vmatprep.subr.mxu0 0.0
        %4158 = vmatpush1.msra.mxu0 %v4114
        %4159 = vmatprep.subr.mxu0 0.0
        %4160 = vmatpush1.msra.mxu0 %v4113
        %4161 = vmatprep.subr.mxu0 0.0
        %4162 = vmatpush2.msra.mxu0 0.0
        %4163 = vmatprep.subr.mxu0 0.0
        %4164 = vmatpush2.msra.mxu0 0.0
        %4165 = vmatprep.subr.mxu0 0.0
        %4166 = vmatpush2.msra.mxu0 0.0
        %4167 = vmatprep.subr.mxu0 0.0
        %4168 = vmatpush2.msra.mxu0 0.0
        %4169 = vmatprep.subr.mxu0 0.0
        %4170 = vmatpush2.msra.mxu0 0.0
        %4171 = vmatprep.subr.mxu0 0.0
        %4172 = vmatpush2.msra.mxu0 0.0
        %4173 = vmatprep.subr.mxu0 0.0
        %4174 = vmatpush2.msra.mxu0 0.0
        %4175 = vmatprep.subr.mxu0 0.0
        %4176 = vmatpush2.msra.mxu0 0.0
        %4177 = vmatprep.subr.mxu0 0.0
        %4178 = vmatpush2.msra.mxu0 0.0
        %4179 = vmatprep.subr.mxu0 0.0
        %4180 = vmatpush2.msra.mxu0 0.0
        %4181 = vmatprep.subr.mxu0 0.0
        %4182 = vmatpush2.msra.mxu0 0.0
        %4183 = vmatprep.subr.mxu0 0.0
        %4184 = vmatpush2.msra.mxu0 0.0
        %4185 = vmatprep.subr.mxu0 0.0
        %4186 = vmatpush2.msra.mxu0 0.0
        %4187 = vmatprep.subr.mxu0 0.0
        %4188 = vmatpush2.msra.mxu0 0.0
        %4189 = vmatprep.subr.mxu0 0.0
        %4190 = vmatpush2.msra.mxu0 0.0
        %4191 = vmatprep.subr.mxu0 0.0
        %4192 = vmatpush2.msra.mxu0 0.0
        %4193 = vmatprep.mubr.f32.mxu0 0.0
        %4194 = vmatmul.mubr.f32.gmra.mxu0 %v4111
        %v4195 = vpop.f32.mrf.mxu0
        %v4196 = vadd.f32 0.0, %v4195
        %v4197 = vpop.f32.mrf.mxu0
        %4198 = vdwg.mxu0
        %v4199 = vadd.f32 %v4110, %v4196
        %v4200 = vld [vmem:[#allocation28] sm:$0x1]
        %v4202 = vlaneseq
        %v4203 = vshrl.u32 %v4202, 7
        %v4204 = vsub.s32 0, %v4203
        %v4205 = vrot.slane %v4200, %v4204
        %v4207 = vadd.f32 %v4199, %v4205
        %v4208 = vmax.f32 %v4207, 0.0
        %4209 = vst [vmem:[#allocation2] sm:$0xff] 0.0
        %4210 = vst [vmem:[#allocation2 + $0x8] sm:$0xff] 0.0
        %4211 = vst [vmem:[#allocation2 + $0x10] sm:$0xff] 0.0
        %4212 = vst [vmem:[#allocation2 + $0x18] sm:$0x1] 0.0
        %4213 = vst [vmem:[#allocation2 + $0x8] sm:$0xff] %v4208
        %v4214 = vld [vmem:[#allocation2 + $0x7] sm:$0xff]
        %v4215 = vld [vmem:[#allocation29] sm:$0xff]
        %v4216 = vld [vmem:[#allocation29 + $0x8] sm:$0xff]
        %v4217 = vld [vmem:[#allocation29 + $0x10] sm:$0xff]
        %v4218 = vld [vmem:[#allocation29 + $0x18] sm:$0xff]
        %v4219 = vld [vmem:[#allocation29 + $0x20] sm:$0xff]
        %v4220 = vld [vmem:[#allocation29 + $0x28] sm:$0xff]
        %v4221 = vld [vmem:[#allocation29 + $0x30] sm:$0xff]
        %v4222 = vld [vmem:[#allocation29 + $0x38] sm:$0xff]
        %v4223 = vld [vmem:[#allocation29 + $0x40] sm:$0xff]
        %v4224 = vld [vmem:[#allocation29 + $0x48] sm:$0xff]
        %v4225 = vld [vmem:[#allocation29 + $0x50] sm:$0xff]
        %v4226 = vld [vmem:[#allocation29 + $0x58] sm:$0xff]
        %v4227 = vld [vmem:[#allocation29 + $0x60] sm:$0xff]
        %v4228 = vld [vmem:[#allocation29 + $0x68] sm:$0xff]
        %v4229 = vld [vmem:[#allocation29 + $0x70] sm:$0xff]
        %v4230 = vld [vmem:[#allocation29 + $0x78] sm:$0xff]
        %v4231 = vld [vmem:[#allocation2 + $0x8] sm:$0xff]
        %s4232 = scalar_lea.vmem [#allocation29], 128
        %v4233 = vld [vmem:[%s4232] sm:$0xff]
        %v4234 = vld [vmem:[%s4232 + $0x8] sm:$0xff]
        %v4235 = vld [vmem:[%s4232 + $0x10] sm:$0xff]
        %v4236 = vld [vmem:[%s4232 + $0x18] sm:$0xff]
        %v4237 = vld [vmem:[%s4232 + $0x20] sm:$0xff]
        %v4238 = vld [vmem:[%s4232 + $0x28] sm:$0xff]
        %v4239 = vld [vmem:[%s4232 + $0x30] sm:$0xff]
        %v4240 = vld [vmem:[%s4232 + $0x38] sm:$0xff]
        %v4241 = vld [vmem:[%s4232 + $0x40] sm:$0xff]
        %v4242 = vld [vmem:[%s4232 + $0x48] sm:$0xff]
        %v4243 = vld [vmem:[%s4232 + $0x50] sm:$0xff]
        %v4244 = vld [vmem:[%s4232 + $0x58] sm:$0xff]
        %v4245 = vld [vmem:[%s4232 + $0x60] sm:$0xff]
        %v4246 = vld [vmem:[%s4232 + $0x68] sm:$0xff]
        %v4247 = vld [vmem:[%s4232 + $0x70] sm:$0xff]
        %v4248 = vld [vmem:[%s4232 + $0x78] sm:$0xff]
        %4249 = vmatprep.subr.mxu0 0.0
        %4250 = vmatpush1.msra.mxu0 %v4248
        %4251 = vmatprep.subr.mxu0 0.0
        %4252 = vmatpush1.msra.mxu0 %v4247
        %4253 = vmatprep.subr.mxu0 0.0
        %4254 = vmatpush1.msra.mxu0 %v4246
        %4255 = vmatprep.subr.mxu0 0.0
        %4256 = vmatpush1.msra.mxu0 %v4245
        %4257 = vmatprep.subr.mxu0 0.0
        %4258 = vmatpush1.msra.mxu0 %v4244
        %4259 = vmatprep.subr.mxu0 0.0
        %4260 = vmatpush1.msra.mxu0 %v4243
        %4261 = vmatprep.subr.mxu0 0.0
        %4262 = vmatpush1.msra.mxu0 %v4242
        %4263 = vmatprep.subr.mxu0 0.0
        %4264 = vmatpush1.msra.mxu0 %v4241
        %4265 = vmatprep.subr.mxu0 0.0
        %4266 = vmatpush1.msra.mxu0 %v4240
        %4267 = vmatprep.subr.mxu0 0.0
        %4268 = vmatpush1.msra.mxu0 %v4239
        %4269 = vmatprep.subr.mxu0 0.0
        %4270 = vmatpush1.msra.mxu0 %v4238
        %4271 = vmatprep.subr.mxu0 0.0
        %4272 = vmatpush1.msra.mxu0 %v4237
        %4273 = vmatprep.subr.mxu0 0.0
        %4274 = vmatpush1.msra.mxu0 %v4236
        %4275 = vmatprep.subr.mxu0 0.0
        %4276 = vmatpush1.msra.mxu0 %v4235
        %4277 = vmatprep.subr.mxu0 0.0
        %4278 = vmatpush1.msra.mxu0 %v4234
        %4279 = vmatprep.subr.mxu0 0.0
        %4280 = vmatpush1.msra.mxu0 %v4233
        %4281 = vmatprep.subr.mxu0 0.0
        %4282 = vmatpush2.msra.mxu0 0.0
        %4283 = vmatprep.subr.mxu0 0.0
        %4284 = vmatpush2.msra.mxu0 0.0
        %4285 = vmatprep.subr.mxu0 0.0
        %4286 = vmatpush2.msra.mxu0 0.0
        %4287 = vmatprep.subr.mxu0 0.0
        %4288 = vmatpush2.msra.mxu0 0.0
        %4289 = vmatprep.subr.mxu0 0.0
        %4290 = vmatpush2.msra.mxu0 0.0
        %4291 = vmatprep.subr.mxu0 0.0
        %4292 = vmatpush2.msra.mxu0 0.0
        %4293 = vmatprep.subr.mxu0 0.0
        %4294 = vmatpush2.msra.mxu0 0.0
        %4295 = vmatprep.subr.mxu0 0.0
        %4296 = vmatpush2.msra.mxu0 0.0
        %4297 = vmatprep.subr.mxu0 0.0
        %4298 = vmatpush2.msra.mxu0 0.0
        %4299 = vmatprep.subr.mxu0 0.0
        %4300 = vmatpush2.msra.mxu0 0.0
        %4301 = vmatprep.subr.mxu0 0.0
        %4302 = vmatpush2.msra.mxu0 0.0
        %4303 = vmatprep.subr.mxu0 0.0
        %4304 = vmatpush2.msra.mxu0 0.0
        %4305 = vmatprep.subr.mxu0 0.0
        %4306 = vmatpush2.msra.mxu0 0.0
        %4307 = vmatprep.subr.mxu0 0.0
        %4308 = vmatpush2.msra.mxu0 0.0
        %4309 = vmatprep.subr.mxu0 0.0
        %4310 = vmatpush2.msra.mxu0 0.0
        %4311 = vmatprep.subr.mxu0 0.0
        %4312 = vmatpush2.msra.mxu0 0.0
        %4313 = vmatprep.mubr.f32.mxu0 0.0
        %4314 = vmatmul.mubr.f32.gmra.mxu0 %v4231
        %v4315 = vpop.f32.mrf.mxu0
        %v4316 = vadd.f32 0.0, %v4315
        %v4317 = vpop.f32.mrf.mxu0
        %4318 = vdwg.mxu0
        %4319 = vmatprep.subr.mxu0 0.0
        %4320 = vmatpush1.msra.mxu0 %v4230
        %4321 = vmatprep.subr.mxu0 0.0
        %4322 = vmatpush1.msra.mxu0 %v4229
        %4323 = vmatprep.subr.mxu0 0.0
        %4324 = vmatpush1.msra.mxu0 %v4228
        %4325 = vmatprep.subr.mxu0 0.0
        %4326 = vmatpush1.msra.mxu0 %v4227
        %4327 = vmatprep.subr.mxu0 0.0
        %4328 = vmatpush1.msra.mxu0 %v4226
        %4329 = vmatprep.subr.mxu0 0.0
        %4330 = vmatpush1.msra.mxu0 %v4225
        %4331 = vmatprep.subr.mxu0 0.0
        %4332 = vmatpush1.msra.mxu0 %v4224
        %4333 = vmatprep.subr.mxu0 0.0
        %4334 = vmatpush1.msra.mxu0 %v4223
        %4335 = vmatprep.subr.mxu0 0.0
        %4336 = vmatpush1.msra.mxu0 %v4222
        %4337 = vmatprep.subr.mxu0 0.0
        %4338 = vmatpush1.msra.mxu0 %v4221
        %4339 = vmatprep.subr.mxu0 0.0
        %4340 = vmatpush1.msra.mxu0 %v4220
        %4341 = vmatprep.subr.mxu0 0.0
        %4342 = vmatpush1.msra.mxu0 %v4219
        %4343 = vmatprep.subr.mxu0 0.0
        %4344 = vmatpush1.msra.mxu0 %v4218
        %4345 = vmatprep.subr.mxu0 0.0
        %4346 = vmatpush1.msra.mxu0 %v4217
        %4347 = vmatprep.subr.mxu0 0.0
        %4348 = vmatpush1.msra.mxu0 %v4216
        %4349 = vmatprep.subr.mxu0 0.0
        %4350 = vmatpush1.msra.mxu0 %v4215
        %4351 = vmatprep.subr.mxu0 0.0
        %4352 = vmatpush2.msra.mxu0 0.0
        %4353 = vmatprep.subr.mxu0 0.0
        %4354 = vmatpush2.msra.mxu0 0.0
        %4355 = vmatprep.subr.mxu0 0.0
        %4356 = vmatpush2.msra.mxu0 0.0
        %4357 = vmatprep.subr.mxu0 0.0
        %4358 = vmatpush2.msra.mxu0 0.0
        %4359 = vmatprep.subr.mxu0 0.0
        %4360 = vmatpush2.msra.mxu0 0.0
        %4361 = vmatprep.subr.mxu0 0.0
        %4362 = vmatpush2.msra.mxu0 0.0
        %4363 = vmatprep.subr.mxu0 0.0
        %4364 = vmatpush2.msra.mxu0 0.0
        %4365 = vmatprep.subr.mxu0 0.0
        %4366 = vmatpush2.msra.mxu0 0.0
        %4367 = vmatprep.subr.mxu0 0.0
        %4368 = vmatpush2.msra.mxu0 0.0
        %4369 = vmatprep.subr.mxu0 0.0
        %4370 = vmatpush2.msra.mxu0 0.0
        %4371 = vmatprep.subr.mxu0 0.0
        %4372 = vmatpush2.msra.mxu0 0.0
        %4373 = vmatprep.subr.mxu0 0.0
        %4374 = vmatpush2.msra.mxu0 0.0
        %4375 = vmatprep.subr.mxu0 0.0
        %4376 = vmatpush2.msra.mxu0 0.0
        %4377 = vmatprep.subr.mxu0 0.0
        %4378 = vmatpush2.msra.mxu0 0.0
        %4379 = vmatprep.subr.mxu0 0.0
        %4380 = vmatpush2.msra.mxu0 0.0
        %4381 = vmatprep.subr.mxu0 0.0
        %4382 = vmatpush2.msra.mxu0 0.0
        %4383 = vmatprep.mubr.f32.mxu0 0.0
        %4384 = vmatmul.mubr.f32.gmra.mxu0 %v4214
        %v4385 = vpop.f32.mrf.mxu0
        %v4386 = vadd.f32 %v4316, %v4385
        %v4387 = vpop.f32.mrf.mxu0
        %4388 = vdwg.mxu0
        %v4389 = vld [vmem:[#allocation2 + $0x9] sm:$0xff]
        %s4390 = scalar_lea.vmem [#allocation29], 256
        %v4391 = vld [vmem:[%s4390] sm:$0xff]
        %v4392 = vld [vmem:[%s4390 + $0x8] sm:$0xff]
        %v4393 = vld [vmem:[%s4390 + $0x10] sm:$0xff]
        %v4394 = vld [vmem:[%s4390 + $0x18] sm:$0xff]
        %v4395 = vld [vmem:[%s4390 + $0x20] sm:$0xff]
        %v4396 = vld [vmem:[%s4390 + $0x28] sm:$0xff]
        %v4397 = vld [vmem:[%s4390 + $0x30] sm:$0xff]
        %v4398 = vld [vmem:[%s4390 + $0x38] sm:$0xff]
        %v4399 = vld [vmem:[%s4390 + $0x40] sm:$0xff]
        %v4400 = vld [vmem:[%s4390 + $0x48] sm:$0xff]
        %v4401 = vld [vmem:[%s4390 + $0x50] sm:$0xff]
        %v4402 = vld [vmem:[%s4390 + $0x58] sm:$0xff]
        %v4403 = vld [vmem:[%s4390 + $0x60] sm:$0xff]
        %v4404 = vld [vmem:[%s4390 + $0x68] sm:$0xff]
        %v4405 = vld [vmem:[%s4390 + $0x70] sm:$0xff]
        %v4406 = vld [vmem:[%s4390 + $0x78] sm:$0xff]
        %4407 = vmatprep.subr.mxu0 0.0
        %4408 = vmatpush1.msra.mxu0 %v4406
        %4409 = vmatprep.subr.mxu0 0.0
        %4410 = vmatpush1.msra.mxu0 %v4405
        %4411 = vmatprep.subr.mxu0 0.0
        %4412 = vmatpush1.msra.mxu0 %v4404
        %4413 = vmatprep.subr.mxu0 0.0
        %4414 = vmatpush1.msra.mxu0 %v4403
        %4415 = vmatprep.subr.mxu0 0.0
        %4416 = vmatpush1.msra.mxu0 %v4402
        %4417 = vmatprep.subr.mxu0 0.0
        %4418 = vmatpush1.msra.mxu0 %v4401
        %4419 = vmatprep.subr.mxu0 0.0
        %4420 = vmatpush1.msra.mxu0 %v4400
        %4421 = vmatprep.subr.mxu0 0.0
        %4422 = vmatpush1.msra.mxu0 %v4399
        %4423 = vmatprep.subr.mxu0 0.0
        %4424 = vmatpush1.msra.mxu0 %v4398
        %4425 = vmatprep.subr.mxu0 0.0
        %4426 = vmatpush1.msra.mxu0 %v4397
        %4427 = vmatprep.subr.mxu0 0.0
        %4428 = vmatpush1.msra.mxu0 %v4396
        %4429 = vmatprep.subr.mxu0 0.0
        %4430 = vmatpush1.msra.mxu0 %v4395
        %4431 = vmatprep.subr.mxu0 0.0
        %4432 = vmatpush1.msra.mxu0 %v4394
        %4433 = vmatprep.subr.mxu0 0.0
        %4434 = vmatpush1.msra.mxu0 %v4393
        %4435 = vmatprep.subr.mxu0 0.0
        %4436 = vmatpush1.msra.mxu0 %v4392
        %4437 = vmatprep.subr.mxu0 0.0
        %4438 = vmatpush1.msra.mxu0 %v4391
        %4439 = vmatprep.subr.mxu0 0.0
        %4440 = vmatpush2.msra.mxu0 0.0
        %4441 = vmatprep.subr.mxu0 0.0
        %4442 = vmatpush2.msra.mxu0 0.0
        %4443 = vmatprep.subr.mxu0 0.0
        %4444 = vmatpush2.msra.mxu0 0.0
        %4445 = vmatprep.subr.mxu0 0.0
        %4446 = vmatpush2.msra.mxu0 0.0
        %4447 = vmatprep.subr.mxu0 0.0
        %4448 = vmatpush2.msra.mxu0 0.0
        %4449 = vmatprep.subr.mxu0 0.0
        %4450 = vmatpush2.msra.mxu0 0.0
        %4451 = vmatprep.subr.mxu0 0.0
        %4452 = vmatpush2.msra.mxu0 0.0
        %4453 = vmatprep.subr.mxu0 0.0
        %4454 = vmatpush2.msra.mxu0 0.0
        %4455 = vmatprep.subr.mxu0 0.0
        %4456 = vmatpush2.msra.mxu0 0.0
        %4457 = vmatprep.subr.mxu0 0.0
        %4458 = vmatpush2.msra.mxu0 0.0
        %4459 = vmatprep.subr.mxu0 0.0
        %4460 = vmatpush2.msra.mxu0 0.0
        %4461 = vmatprep.subr.mxu0 0.0
        %4462 = vmatpush2.msra.mxu0 0.0
        %4463 = vmatprep.subr.mxu0 0.0
        %4464 = vmatpush2.msra.mxu0 0.0
        %4465 = vmatprep.subr.mxu0 0.0
        %4466 = vmatpush2.msra.mxu0 0.0
        %4467 = vmatprep.subr.mxu0 0.0
        %4468 = vmatpush2.msra.mxu0 0.0
        %4469 = vmatprep.subr.mxu0 0.0
        %4470 = vmatpush2.msra.mxu0 0.0
        %4471 = vmatprep.mubr.f32.mxu0 0.0
        %4472 = vmatmul.mubr.f32.gmra.mxu0 %v4389
        %v4473 = vpop.f32.mrf.mxu0
        %v4474 = vadd.f32 0.0, %v4473
        %v4475 = vpop.f32.mrf.mxu0
        %4476 = vdwg.mxu0
        %v4477 = vadd.f32 %v4386, %v4474
        %v4478 = vld [vmem:[#allocation31] sm:$0x1]
        %v4480 = vlaneseq
        %v4481 = vshrl.u32 %v4480, 7
        %v4482 = vsub.s32 0, %v4481
        %v4483 = vrot.slane %v4478, %v4482
        %v4485 = vadd.f32 %v4477, %v4483
        %v4486 = vmax.f32 %v4485, 0.0
        %v4487 = vld [vmem:[%s57] sm:$0xff]
        %v4488 = vld [vmem:[%s57 + $0x8] sm:$0xff]
        %v4489 = vld [vmem:[%s57 + $0x10] sm:$0xff]
        %v4490 = vld [vmem:[%s57 + $0x18] sm:$0xff]
        %v4491 = vld [vmem:[%s57 + $0x20] sm:$0xff]
        %v4492 = vld [vmem:[%s57 + $0x28] sm:$0xff]
        %v4493 = vld [vmem:[%s57 + $0x30] sm:$0xff]
        %v4494 = vld [vmem:[%s57 + $0x38] sm:$0xff]
        %v4495 = vld [vmem:[%s57 + $0x40] sm:$0xff]
        %v4496 = vld [vmem:[%s57 + $0x48] sm:$0xff]
        %v4497 = vld [vmem:[%s57 + $0x50] sm:$0xff]
        %v4498 = vld [vmem:[%s57 + $0x58] sm:$0xff]
        %v4499 = vld [vmem:[%s57 + $0x60] sm:$0xff]
        %v4500 = vld [vmem:[%s57 + $0x68] sm:$0xff]
        %v4501 = vld [vmem:[%s57 + $0x70] sm:$0xff]
        %v4502 = vld [vmem:[%s57 + $0x78] sm:$0xff]
        %v4503 = vld [vmem:[#allocation32] sm:$0x1]
        %v4505 = vlaneseq
        %v4506 = vshrl.u32 %v4505, 7
        %v4507 = vsub.s32 0, %v4506
        %v4508 = vrot.slane %v4503, %v4507
        %4510 = vmatprep.subr.mxu0 0.0
        %4511 = vmatpush1.msra.mxu0 %v4502
        %4512 = vmatprep.subr.mxu0 0.0
        %4513 = vmatpush1.msra.mxu0 %v4501
        %4514 = vmatprep.subr.mxu0 0.0
        %4515 = vmatpush1.msra.mxu0 %v4500
        %4516 = vmatprep.subr.mxu0 0.0
        %4517 = vmatpush1.msra.mxu0 %v4499
        %4518 = vmatprep.subr.mxu0 0.0
        %4519 = vmatpush1.msra.mxu0 %v4498
        %4520 = vmatprep.subr.mxu0 0.0
        %4521 = vmatpush1.msra.mxu0 %v4497
        %4522 = vmatprep.subr.mxu0 0.0
        %4523 = vmatpush1.msra.mxu0 %v4496
        %4524 = vmatprep.subr.mxu0 0.0
        %4525 = vmatpush1.msra.mxu0 %v4495
        %4526 = vmatprep.subr.mxu0 0.0
        %4527 = vmatpush1.msra.mxu0 %v4494
        %4528 = vmatprep.subr.mxu0 0.0
        %4529 = vmatpush1.msra.mxu0 %v4493
        %4530 = vmatprep.subr.mxu0 0.0
        %4531 = vmatpush1.msra.mxu0 %v4492
        %4532 = vmatprep.subr.mxu0 0.0
        %4533 = vmatpush1.msra.mxu0 %v4491
        %4534 = vmatprep.subr.mxu0 0.0
        %4535 = vmatpush1.msra.mxu0 %v4490
        %4536 = vmatprep.subr.mxu0 0.0
        %4537 = vmatpush1.msra.mxu0 %v4489
        %4538 = vmatprep.subr.mxu0 0.0
        %4539 = vmatpush1.msra.mxu0 %v4488
        %4540 = vmatprep.subr.mxu0 0.0
        %4541 = vmatpush1.msra.mxu0 %v4487
        %4542 = vmatprep.subr.mxu0 0.0
        %4543 = vmatpush2.msra.mxu0 0.0
        %4544 = vmatprep.subr.mxu0 0.0
        %4545 = vmatpush2.msra.mxu0 0.0
        %4546 = vmatprep.subr.mxu0 0.0
        %4547 = vmatpush2.msra.mxu0 0.0
        %4548 = vmatprep.subr.mxu0 0.0
        %4549 = vmatpush2.msra.mxu0 0.0
        %4550 = vmatprep.subr.mxu0 0.0
        %4551 = vmatpush2.msra.mxu0 0.0
        %4552 = vmatprep.subr.mxu0 0.0
        %4553 = vmatpush2.msra.mxu0 0.0
        %4554 = vmatprep.subr.mxu0 0.0
        %4555 = vmatpush2.msra.mxu0 0.0
        %4556 = vmatprep.subr.mxu0 0.0
        %4557 = vmatpush2.msra.mxu0 0.0
        %4558 = vmatprep.subr.mxu0 0.0
        %4559 = vmatpush2.msra.mxu0 0.0
        %4560 = vmatprep.subr.mxu0 0.0
        %4561 = vmatpush2.msra.mxu0 0.0
        %4562 = vmatprep.subr.mxu0 0.0
        %4563 = vmatpush2.msra.mxu0 0.0
        %4564 = vmatprep.subr.mxu0 0.0
        %4565 = vmatpush2.msra.mxu0 0.0
        %4566 = vmatprep.subr.mxu0 0.0
        %4567 = vmatpush2.msra.mxu0 0.0
        %4568 = vmatprep.subr.mxu0 0.0
        %4569 = vmatpush2.msra.mxu0 0.0
        %4570 = vmatprep.subr.mxu0 0.0
        %4571 = vmatpush2.msra.mxu0 0.0
        %4572 = vmatprep.subr.mxu0 0.0
        %4573 = vmatpush2.msra.mxu0 0.0
        %4574 = vmatprep.mubr.f32.mxu0 0.0
        %4575 = vmatmul.mubr.f32.gmra.mxu0 %v4486
        %v4576 = vpop.f32.mrf.mxu0
        %v4577 = vadd.f32 %v4508, %v4576
        %v4578 = vpop.f32.mrf.mxu0
        %4579 = vdwg.mxu0
        %vm4580 = vcmask 195584
        %4581 = vst.msk [vmem:[%s1193] sm:$0xff] %vm4580, %v4577
        %p4582 = scmp.lt.s32.totalorder %s83, 1
        %s4583 = scalar_select %p4582, %s83, 1
        %s4584 = smul.addr %s4583, 8
        %s4585 = scalar_lea.vmem %s61, %s4584
        // Predicated region
        $region221: #{unet_forward_fused.1} parent=139 // pred_check
          %p4586 = pneg %p736
        $region222: #{unet_forward_fused.1} parent=139 // pred_check_branch
          %4588 = sbr.rel (%p4586) target = $region224
        $region223: #{unet_forward_fused.1} parent=139 // pred_region
          _
        $region224: #{unet_forward_fused.1} parent=139 // pred_fallthru
          _
      $region140: #{unet_forward_fused.1} parent=5 // pred_fallthru
        _
      %p4589 = scmp.le.s32.totalorder 2, %s78
      // Predicated region
      $region225: #{unet_forward_fused.1} parent=5 // pred_check
        %p4590 = pneg %p4589
      $region226: #{unet_forward_fused.1} parent=5 // pred_check_branch
        %4592 = sbr.rel (%p4590) target = $region228
      $region227: #{unet_forward_fused.1} parent=5 // pred_region
        %s4593 = ssub.s32 %s78, 2
        // Predicated region
        $region229: #{unet_forward_fused.1} parent=227 // pred_check
          %p4594 = pneg %p742
        $region230: #{unet_forward_fused.1} parent=227 // pred_check_branch
          %4596 = sbr.rel (%p4594) target = $region232
        $region231: #{unet_forward_fused.1} parent=227 // pred_region
          %p4597 = scmp.lt.s32.totalorder %s84, 1
          %s4598 = scalar_select %p4597, %s84, 1
          %s4599 = smul.addr %s4598, 8
          %s4600 = scalar_lea.vmem %s61, %s4599
        $region232: #{unet_forward_fused.1} parent=227 // pred_fallthru
          _
      $region228: #{unet_forward_fused.1} parent=5 // pred_fallthru
        _
    $region6: #{unet_forward_fused.1} parent=1 // loop_footer
      %s82 = sadd.s32 1, %s78
    $region7: #{unet_forward_fused.1} parent=1 // loop_footer_branch
      %77 = sbr.rel target = $region3
    $region8: #{unet_forward_fused.1} parent=1 // loop_exit
      _
    %4601 = vsyncpa [#allocation4], 1
    %s4602 = scalar_lea.sflag [#allocation4], 1
    %4603 = vsyncpa %s4602, 1
    %4604 = vsyncpa [#allocation6], 1
    %4605 = vsyncpa [#allocation9], 1
    %4606 = vsyncpa [#allocation12], 1
    %4607 = vsyncpa [#allocation15], 1
    %4608 = vsyncpa [#allocation18], 1
    %4609 = vsyncpa [#allocation21], 1
    %4610 = vsyncpa [#allocation24], 1
    %4611 = vsyncpa [#allocation27], 1
    %4612 = vsyncpa [#allocation30], 1
    %4613 = vsyncpa [#allocation33], 1

</llo_original>
